<compile_context>
chip_gen: v6e
topology: v6e:2x2x1
jax: 0.10.0
libtpu: 0.0.40
codegen_flags: <defaults>
</compile_context>

<pallas_src>
import math
import functools

import numpy as np
import jax
import jax.numpy as jnp
from jax import lax
from jax.experimental import pallas as pl
from jax.experimental.pallas import tpu as pltpu


def _encoder_layer_kernel(src_ref, pos_ref,
                          wq_ref, wk_ref, wv_ref,
                          bq_ref, bk_ref, bv_ref,
                          wo_ref, bo_ref,
                          g1_ref, be1_ref,
                          w1_ref, b1_ref, w2_ref, b2_ref,
                          g2_ref, be2_ref,
                          out_ref,
                          *, nhead, ln_eps):
    # src_ref / pos_ref / out_ref: (1, L, E) VMEM blocks (one batch element).
    x = src_ref[0]            # (L, E)
    p = pos_ref[0]            # (L, E)
    L, E = x.shape
    hd = E // nhead
    scale = 1.0 / math.sqrt(hd)

    # ---- Multi-head self-attention -------------------------------------
    qk_in = x + p             # with_pos_embed(src, pos)
    q = jnp.dot(qk_in, wq_ref[...], preferred_element_type=jnp.float32) + bq_ref[...]
    k = jnp.dot(qk_in, wk_ref[...], preferred_element_type=jnp.float32) + bk_ref[...]
    v = jnp.dot(x,     wv_ref[...], preferred_element_type=jnp.float32) + bv_ref[...]

    wo = wo_ref[...]          # (E, E), pre-transposed (in, out)

    # Per-head attention, statically unrolled; out-projection fused per head
    # so no lane-concatenate is needed.
    attn = jnp.zeros((L, E), jnp.float32)
    for h in range(nhead):
        sl = slice(h * hd, (h + 1) * hd)
        qh = q[:, sl] * scale                      # (L, hd)
        kh = k[:, sl]                              # (L, hd)
        vh = v[:, sl]                              # (L, hd)
        # scores = qh @ kh^T  (contract last dims; no explicit transpose)
        s = lax.dot_general(qh, kh, (((1,), (1,)), ((), ())),
                            preferred_element_type=jnp.float32)     # (L, L)
        s = s - jnp.max(s, axis=-1, keepdims=True)
        e = jnp.exp(s)
        a = e / jnp.sum(e, axis=-1, keepdims=True)
        oh = jnp.dot(a, vh, preferred_element_type=jnp.float32)     # (L, hd)
        attn = attn + jnp.dot(oh, wo[sl, :],
                              preferred_element_type=jnp.float32)   # (L, E)
    attn = attn + bo_ref[...]

    # ---- Residual + LayerNorm1 (dropout1 = identity) --------------------
    y = x + attn
    mu = jnp.mean(y, axis=-1, keepdims=True)
    d = y - mu
    var = jnp.mean(d * d, axis=-1, keepdims=True)
    y = d * lax.rsqrt(var + ln_eps) * g1_ref[...] + be1_ref[...]

    # ---- Feed-forward: linear2(relu(linear1(y))) -------------------------
    h1 = jnp.dot(y, w1_ref[...], preferred_element_type=jnp.float32) + b1_ref[...]
    h1 = jnp.maximum(h1, 0.0)
    ff = jnp.dot(h1, w2_ref[...], preferred_element_type=jnp.float32) + b2_ref[...]

    # ---- Residual + LayerNorm2 (dropout2 = identity) --------------------
    z = y + ff
    mu2 = jnp.mean(z, axis=-1, keepdims=True)
    d2 = z - mu2
    var2 = jnp.mean(d2 * d2, axis=-1, keepdims=True)
    out_ref[0] = d2 * lax.rsqrt(var2 + ln_eps) * g2_ref[...] + be2_ref[...]


def transformer_encoder_layer(src, pos, params, *, nhead, ln_eps=1e-5):
    """JAX/Pallas equivalent of TransformerEncoderLayer.forward (post-norm).

    src, pos: (L, N, E) float32 (seq-first, like PyTorch nn.MultiheadAttention).
    params: dict of pre-transposed weights (in, out) and (1, dim) biases.
    """
    L, N, E = src.shape
    dff = params["w1"].shape[1]

    # layout glue: batch-major so each grid step grabs one lane-dense (L, E) slab
    src_t = jnp.transpose(src, (1, 0, 2))   # (N, L, E)
    pos_t = jnp.transpose(pos, (1, 0, 2))   # (N, L, E)

    def rep(shape):                         # parameter spec: same block every step
        n = len(shape)
        return pl.BlockSpec(shape, lambda b, n=n: (0,) * n)

    kernel = functools.partial(_encoder_layer_kernel, nhead=nhead, ln_eps=ln_eps)

    out = pl.pallas_call(
        kernel,
        out_shape=jax.ShapeDtypeStruct((N, L, E), jnp.float32),
        grid_spec=pltpu.PrefetchScalarGridSpec(
            num_scalar_prefetch=0,
            grid=(N,),
            in_specs=[
                pl.BlockSpec((1, L, E), lambda b: (b, 0, 0)),   # src
                pl.BlockSpec((1, L, E), lambda b: (b, 0, 0)),   # pos
                rep((E, E)), rep((E, E)), rep((E, E)),          # wq, wk, wv
                rep((1, E)), rep((1, E)), rep((1, E)),          # bq, bk, bv
                rep((E, E)), rep((1, E)),                       # wo, bo
                rep((1, E)), rep((1, E)),                       # gamma1, beta1
                rep((E, dff)), rep((1, dff)),                   # w1, b1
                rep((dff, E)), rep((1, E)),                     # w2, b2
                rep((1, E)), rep((1, E)),                       # gamma2, beta2
            ],
            out_specs=pl.BlockSpec((1, L, E), lambda b: (b, 0, 0)),
        ),
        compiler_params=pltpu.CompilerParams(dimension_semantics=("parallel",)),
    )(src_t, pos_t,
      params["wq"], params["wk"], params["wv"],
      params["bq"], params["bk"], params["bv"],
      params["wo"], params["bo"],
      params["g1"], params["be1"],
      params["w1"], params["b1"], params["w2"], params["b2"],
      params["g2"], params["be2"])

    return jnp.transpose(out, (1, 0, 2))    # back to (L, N, E)


def _reference_numpy(src, pos, p, nhead, ln_eps=1e-5):
    """Pure NumPy transcription of forward_post (eval mode) for verification."""
    src = np.asarray(src, np.float32)
    pos = np.asarray(pos, np.float32)
    L, N, E = src.shape
    hd = E // nhead
    out = np.zeros_like(src)
    for n in range(N):
        x = src[:, n, :]
        pe = pos[:, n, :]
        qk_in = x + pe
        q = qk_in @ np.asarray(p["wq"]) + np.asarray(p["bq"])[0]
        k = qk_in @ np.asarray(p["wk"]) + np.asarray(p["bk"])[0]
        v = x @ np.asarray(p["wv"]) + np.asarray(p["bv"])[0]
        attn = np.zeros((L, E), np.float32)
        for h in range(nhead):
            sl = slice(h * hd, (h + 1) * hd)
            s = (q[:, sl] / math.sqrt(hd)) @ k[:, sl].T
            s = s - s.max(axis=-1, keepdims=True)
            e = np.exp(s)
            a = e / e.sum(axis=-1, keepdims=True)
            attn[:, sl] = a @ v[:, sl]
        attn = attn @ np.asarray(p["wo"]) + np.asarray(p["bo"])[0]
        y = x + attn
        mu = y.mean(-1, keepdims=True)
        var = ((y - mu) ** 2).mean(-1, keepdims=True)
        y = (y - mu) / np.sqrt(var + ln_eps) * np.asarray(p["g1"])[0] + np.asarray(p["be1"])[0]
        h1 = np.maximum(y @ np.asarray(p["w1"]) + np.asarray(p["b1"])[0], 0.0)
        ff = h1 @ np.asarray(p["w2"]) + np.asarray(p["b2"])[0]
        z = y + ff
        mu2 = z.mean(-1, keepdims=True)
        var2 = ((z - mu2) ** 2).mean(-1, keepdims=True)
        out[:, n, :] = ((z - mu2) / np.sqrt(var2 + ln_eps)
                        * np.asarray(p["g2"])[0] + np.asarray(p["be2"])[0])
    return out


if __name__ == "__main__":
    # Small shapes consistent with the module (d_model, nhead, dim_feedforward
    # scaled down; d_model kept lane-aligned at 128).
    L, N, E = 16, 2, 128          # seq, batch, d_model
    NHEAD = 8
    DFF = 256

    key = jax.random.PRNGKey(0)
    ks = jax.random.split(key, 16)

    def rnd(k, shape, s=0.1):
        return jax.random.normal(k, shape, dtype=jnp.float32) * s

    params = dict(
        wq=rnd(ks[0], (E, E)), wk=rnd(ks[1], (E, E)), wv=rnd(ks[2], (E, E)),
        bq=rnd(ks[3], (1, E)), bk=rnd(ks[4], (1, E)), bv=rnd(ks[5], (1, E)),
        wo=rnd(ks[6], (E, E)), bo=rnd(ks[7], (1, E)),
        g1=1.0 + rnd(ks[8], (1, E)), be1=rnd(ks[9], (1, E)),
        w1=rnd(ks[10], (E, DFF)), b1=rnd(ks[11], (1, DFF)),
        w2=rnd(ks[12], (DFF, E)), b2=rnd(ks[13], (1, E)),
        g2=1.0 + rnd(ks[14], (1, E)), be2=rnd(ks[15], (1, E)),
    )

    k_src, k_pos = jax.random.split(jax.random.PRNGKey(1))
    src = jax.random.normal(k_src, (L, N, E), dtype=jnp.float32)
    pos = jax.random.normal(k_pos, (L, N, E), dtype=jnp.float32)

    out = transformer_encoder_layer(src, pos, params, nhead=NHEAD)
    out = jax.block_until_ready(out)

    ref = _reference_numpy(src, pos, params, NHEAD)

    assert out.shape == (L, N, E), out.shape
    assert np.allclose(np.asarray(out), ref, atol=2e-3, rtol=2e-3), \
        f"Pallas output != reference (max abs err {np.abs(np.asarray(out) - ref).max()})"

    print("KERNEL_OK")
</pallas_src>

<mosaic_0001>
module attributes {stable_mosaic.version = 11 : i64} {
  func.func @_encoder_layer_kernel(%arg0: i32, %arg1: memref<1x16x128xf32, #tpu.memory_space<vmem>>, %arg2: memref<1x16x128xf32, #tpu.memory_space<vmem>>, %arg3: memref<128x128xf32, #tpu.memory_space<vmem>>, %arg4: memref<128x128xf32, #tpu.memory_space<vmem>>, %arg5: memref<128x128xf32, #tpu.memory_space<vmem>>, %arg6: memref<1x128xf32, #tpu.memory_space<vmem>>, %arg7: memref<1x128xf32, #tpu.memory_space<vmem>>, %arg8: memref<1x128xf32, #tpu.memory_space<vmem>>, %arg9: memref<128x128xf32, #tpu.memory_space<vmem>>, %arg10: memref<1x128xf32, #tpu.memory_space<vmem>>, %arg11: memref<1x128xf32, #tpu.memory_space<vmem>>, %arg12: memref<1x128xf32, #tpu.memory_space<vmem>>, %arg13: memref<128x256xf32, #tpu.memory_space<vmem>>, %arg14: memref<1x256xf32, #tpu.memory_space<vmem>>, %arg15: memref<256x128xf32, #tpu.memory_space<vmem>>, %arg16: memref<1x128xf32, #tpu.memory_space<vmem>>, %arg17: memref<1x128xf32, #tpu.memory_space<vmem>>, %arg18: memref<1x128xf32, #tpu.memory_space<vmem>>, %arg19: memref<1x16x128xf32, #tpu.memory_space<vmem>>) attributes {dimension_semantics = [#tpu.dimension_semantics<parallel>], iteration_bounds = array<i64: 2>, scalar_prefetch = 0 : i64, scratch_operands = 0 : i64, tpu.core_type = #tpu.core_type<tc>, window_params = [{transform_indices = @transform_0, window_bounds = array<i64: 1, 16, 128>}, {transform_indices = @transform_1, window_bounds = array<i64: 1, 16, 128>}, {pipeline_mode = #tpu.pipeline_mode<synchronous>, transform_indices = @transform_2, window_bounds = array<i64: 128, 128>}, {pipeline_mode = #tpu.pipeline_mode<synchronous>, transform_indices = @transform_3, window_bounds = array<i64: 128, 128>}, {pipeline_mode = #tpu.pipeline_mode<synchronous>, transform_indices = @transform_4, window_bounds = array<i64: 128, 128>}, {pipeline_mode = #tpu.pipeline_mode<synchronous>, transform_indices = @transform_5, window_bounds = array<i64: 1, 128>}, {pipeline_mode = #tpu.pipeline_mode<synchronous>, transform_indices = @transform_6, window_bounds = array<i64: 1, 128>}, {pipeline_mode = #tpu.pipeline_mode<synchronous>, transform_indices = @transform_7, window_bounds = array<i64: 1, 128>}, {pipeline_mode = #tpu.pipeline_mode<synchronous>, transform_indices = @transform_8, window_bounds = array<i64: 128, 128>}, {pipeline_mode = #tpu.pipeline_mode<synchronous>, transform_indices = @transform_9, window_bounds = array<i64: 1, 128>}, {pipeline_mode = #tpu.pipeline_mode<synchronous>, transform_indices = @transform_10, window_bounds = array<i64: 1, 128>}, {pipeline_mode = #tpu.pipeline_mode<synchronous>, transform_indices = @transform_11, window_bounds = array<i64: 1, 128>}, {pipeline_mode = #tpu.pipeline_mode<synchronous>, transform_indices = @transform_12, window_bounds = array<i64: 128, 256>}, {pipeline_mode = #tpu.pipeline_mode<synchronous>, transform_indices = @transform_13, window_bounds = array<i64: 1, 256>}, {pipeline_mode = #tpu.pipeline_mode<synchronous>, transform_indices = @transform_14, window_bounds = array<i64: 256, 128>}, {pipeline_mode = #tpu.pipeline_mode<synchronous>, transform_indices = @transform_15, window_bounds = array<i64: 1, 128>}, {pipeline_mode = #tpu.pipeline_mode<synchronous>, transform_indices = @transform_16, window_bounds = array<i64: 1, 128>}, {pipeline_mode = #tpu.pipeline_mode<synchronous>, transform_indices = @transform_17, window_bounds = array<i64: 1, 128>}, {transform_indices = @transform_18, window_bounds = array<i64: 1, 16, 128>}]} {
    %c0 = arith.constant 0 : index
    %c0_0 = arith.constant 0 : index
    %c0_1 = arith.constant 0 : index
    %0 = vector.load %arg1[%c0, %c0_0, %c0_1] : memref<1x16x128xf32, #tpu.memory_space<vmem>>, vector<1x16x128xf32>
    %1 = vector.shape_cast %0 : vector<1x16x128xf32> to vector<16x128xf32>
    %c0_2 = arith.constant 0 : index
    %c0_3 = arith.constant 0 : index
    %c0_4 = arith.constant 0 : index
    %2 = vector.load %arg2[%c0_2, %c0_3, %c0_4] : memref<1x16x128xf32, #tpu.memory_space<vmem>>, vector<1x16x128xf32>
    %3 = vector.shape_cast %2 : vector<1x16x128xf32> to vector<16x128xf32>
    %4 = arith.addf %1, %3 : vector<16x128xf32>
    %c0_5 = arith.constant 0 : index
    %c0_6 = arith.constant 0 : index
    %5 = vector.load %arg3[%c0_5, %c0_6] : memref<128x128xf32, #tpu.memory_space<vmem>>, vector<128x128xf32>
    %cst = arith.constant dense<0.000000e+00> : vector<16x128xf32>
    %6 = tpu.matmul %4, %5, %cst {dimension_numbers = #tpu.dot_dimension_numbers<[1], [0], [0], [1], [0, 0, 1, 1], [], []>} : vector<16x128xf32>, vector<128x128xf32>, vector<16x128xf32> -> vector<16x128xf32>
    %c0_7 = arith.constant 0 : index
    %c0_8 = arith.constant 0 : index
    %7 = vector.load %arg6[%c0_7, %c0_8] : memref<1x128xf32, #tpu.memory_space<vmem>>, vector<1x128xf32>
    %8 = vector.broadcast %7 : vector<1x128xf32> to vector<16x128xf32>
    %9 = arith.addf %6, %8 : vector<16x128xf32>
    %c0_9 = arith.constant 0 : index
    %c0_10 = arith.constant 0 : index
    %10 = vector.load %arg4[%c0_9, %c0_10] : memref<128x128xf32, #tpu.memory_space<vmem>>, vector<128x128xf32>
    %cst_11 = arith.constant dense<0.000000e+00> : vector<16x128xf32>
    %11 = tpu.matmul %4, %10, %cst_11 {dimension_numbers = #tpu.dot_dimension_numbers<[1], [0], [0], [1], [0, 0, 1, 1], [], []>} : vector<16x128xf32>, vector<128x128xf32>, vector<16x128xf32> -> vector<16x128xf32>
    %c0_12 = arith.constant 0 : index
    %c0_13 = arith.constant 0 : index
    %12 = vector.load %arg7[%c0_12, %c0_13] : memref<1x128xf32, #tpu.memory_space<vmem>>, vector<1x128xf32>
    %13 = vector.broadcast %12 : vector<1x128xf32> to vector<16x128xf32>
    %14 = arith.addf %11, %13 : vector<16x128xf32>
    %c0_14 = arith.constant 0 : index
    %c0_15 = arith.constant 0 : index
    %15 = vector.load %arg5[%c0_14, %c0_15] : memref<128x128xf32, #tpu.memory_space<vmem>>, vector<128x128xf32>
    %cst_16 = arith.constant dense<0.000000e+00> : vector<16x128xf32>
    %16 = tpu.matmul %1, %15, %cst_16 {dimension_numbers = #tpu.dot_dimension_numbers<[1], [0], [0], [1], [0, 0, 1, 1], [], []>} : vector<16x128xf32>, vector<128x128xf32>, vector<16x128xf32> -> vector<16x128xf32>
    %c0_17 = arith.constant 0 : index
    %c0_18 = arith.constant 0 : index
    %17 = vector.load %arg8[%c0_17, %c0_18] : memref<1x128xf32, #tpu.memory_space<vmem>>, vector<1x128xf32>
    %18 = vector.broadcast %17 : vector<1x128xf32> to vector<16x128xf32>
    %19 = arith.addf %16, %18 : vector<16x128xf32>
    %c0_19 = arith.constant 0 : index
    %c0_20 = arith.constant 0 : index
    %20 = vector.load %arg9[%c0_19, %c0_20] : memref<128x128xf32, #tpu.memory_space<vmem>>, vector<128x128xf32>
    %cst_21 = arith.constant 0.000000e+00 : f32
    %21 = vector.broadcast %cst_21 : f32 to vector<16x128xf32>
    %22 = vector.extract_strided_slice %9 {offsets = [0, 0], sizes = [16, 16], strides = [1, 1]} : vector<16x128xf32> to vector<16x16xf32>
    %cst_22 = arith.constant 2.500000e-01 : f32
    %23 = vector.broadcast %cst_22 : f32 to vector<16x16xf32>
    %24 = arith.mulf %22, %23 : vector<16x16xf32>
    %25 = vector.extract_strided_slice %14 {offsets = [0, 0], sizes = [16, 16], strides = [1, 1]} : vector<16x128xf32> to vector<16x16xf32>
    %26 = vector.extract_strided_slice %19 {offsets = [0, 0], sizes = [16, 16], strides = [1, 1]} : vector<16x128xf32> to vector<16x16xf32>
    %cst_23 = arith.constant dense<0.000000e+00> : vector<16x16xf32>
    %27 = tpu.matmul %24, %25, %cst_23 {dimension_numbers = #tpu.dot_dimension_numbers<[1], [1], [0], [0], [0, 0, 1, 0], [], []>} : vector<16x16xf32>, vector<16x16xf32>, vector<16x16xf32> -> vector<16x16xf32>
    %cst_24 = arith.constant dense<0xFF800000> : vector<16xf32>
    %28 = vector.multi_reduction <maximumf>, %27, %cst_24 [1] : vector<16x16xf32> to vector<16xf32>
    %29 = vector.shape_cast %28 : vector<16xf32> to vector<16x1xf32>
    %30 = vector.broadcast %29 : vector<16x1xf32> to vector<16x16xf32>
    %31 = arith.subf %27, %30 : vector<16x16xf32>
    %32 = math.exp %31 : vector<16x16xf32>
    %cst_25 = arith.constant dense<0.000000e+00> : vector<16xf32>
    %33 = vector.multi_reduction <add>, %32, %cst_25 [1] : vector<16x16xf32> to vector<16xf32>
    %34 = vector.shape_cast %33 : vector<16xf32> to vector<16x1xf32>
    %35 = vector.broadcast %34 : vector<16x1xf32> to vector<16x16xf32>
    %36 = arith.divf %32, %35 : vector<16x16xf32>
    %cst_26 = arith.constant dense<0.000000e+00> : vector<16x16xf32>
    %37 = tpu.matmul %36, %26, %cst_26 {dimension_numbers = #tpu.dot_dimension_numbers<[1], [0], [0], [1], [0, 0, 1, 1], [], []>} : vector<16x16xf32>, vector<16x16xf32>, vector<16x16xf32> -> vector<16x16xf32>
    %38 = vector.extract_strided_slice %20 {offsets = [0, 0], sizes = [16, 128], strides = [1, 1]} : vector<128x128xf32> to vector<16x128xf32>
    %cst_27 = arith.constant dense<0.000000e+00> : vector<16x128xf32>
    %39 = tpu.matmul %37, %38, %cst_27 {dimension_numbers = #tpu.dot_dimension_numbers<[1], [0], [0], [1], [0, 0, 1, 1], [], []>} : vector<16x16xf32>, vector<16x128xf32>, vector<16x128xf32> -> vector<16x128xf32>
    %40 = arith.addf %21, %39 : vector<16x128xf32>
    %41 = vector.extract_strided_slice %9 {offsets = [0, 16], sizes = [16, 16], strides = [1, 1]} : vector<16x128xf32> to vector<16x16xf32>
    %cst_28 = arith.constant 2.500000e-01 : f32
    %42 = vector.broadcast %cst_28 : f32 to vector<16x16xf32>
    %43 = arith.mulf %41, %42 : vector<16x16xf32>
    %44 = vector.extract_strided_slice %14 {offsets = [0, 16], sizes = [16, 16], strides = [1, 1]} : vector<16x128xf32> to vector<16x16xf32>
    %45 = vector.extract_strided_slice %19 {offsets = [0, 16], sizes = [16, 16], strides = [1, 1]} : vector<16x128xf32> to vector<16x16xf32>
    %cst_29 = arith.constant dense<0.000000e+00> : vector<16x16xf32>
    %46 = tpu.matmul %43, %44, %cst_29 {dimension_numbers = #tpu.dot_dimension_numbers<[1], [1], [0], [0], [0, 0, 1, 0], [], []>} : vector<16x16xf32>, vector<16x16xf32>, vector<16x16xf32> -> vector<16x16xf32>
    %cst_30 = arith.constant dense<0xFF800000> : vector<16xf32>
    %47 = vector.multi_reduction <maximumf>, %46, %cst_30 [1] : vector<16x16xf32> to vector<16xf32>
    %48 = vector.shape_cast %47 : vector<16xf32> to vector<16x1xf32>
    %49 = vector.broadcast %48 : vector<16x1xf32> to vector<16x16xf32>
    %50 = arith.subf %46, %49 : vector<16x16xf32>
    %51 = math.exp %50 : vector<16x16xf32>
    %cst_31 = arith.constant dense<0.000000e+00> : vector<16xf32>
    %52 = vector.multi_reduction <add>, %51, %cst_31 [1] : vector<16x16xf32> to vector<16xf32>
    %53 = vector.shape_cast %52 : vector<16xf32> to vector<16x1xf32>
    %54 = vector.broadcast %53 : vector<16x1xf32> to vector<16x16xf32>
    %55 = arith.divf %51, %54 : vector<16x16xf32>
    %cst_32 = arith.constant dense<0.000000e+00> : vector<16x16xf32>
    %56 = tpu.matmul %55, %45, %cst_32 {dimension_numbers = #tpu.dot_dimension_numbers<[1], [0], [0], [1], [0, 0, 1, 1], [], []>} : vector<16x16xf32>, vector<16x16xf32>, vector<16x16xf32> -> vector<16x16xf32>
    %57 = vector.extract_strided_slice %20 {offsets = [16, 0], sizes = [16, 128], strides = [1, 1]} : vector<128x128xf32> to vector<16x128xf32>
    %cst_33 = arith.constant dense<0.000000e+00> : vector<16x128xf32>
    %58 = tpu.matmul %56, %57, %cst_33 {dimension_numbers = #tpu.dot_dimension_numbers<[1], [0], [0], [1], [0, 0, 1, 1], [], []>} : vector<16x16xf32>, vector<16x128xf32>, vector<16x128xf32> -> vector<16x128xf32>
    %59 = arith.addf %40, %58 : vector<16x128xf32>
    %60 = vector.extract_strided_slice %9 {offsets = [0, 32], sizes = [16, 16], strides = [1, 1]} : vector<16x128xf32> to vector<16x16xf32>
    %cst_34 = arith.constant 2.500000e-01 : f32
    %61 = vector.broadcast %cst_34 : f32 to vector<16x16xf32>
    %62 = arith.mulf %60, %61 : vector<16x16xf32>
    %63 = vector.extract_strided_slice %14 {offsets = [0, 32], sizes = [16, 16], strides = [1, 1]} : vector<16x128xf32> to vector<16x16xf32>
    %64 = vector.extract_strided_slice %19 {offsets = [0, 32], sizes = [16, 16], strides = [1, 1]} : vector<16x128xf32> to vector<16x16xf32>
    %cst_35 = arith.constant dense<0.000000e+00> : vector<16x16xf32>
    %65 = tpu.matmul %62, %63, %cst_35 {dimension_numbers = #tpu.dot_dimension_numbers<[1], [1], [0], [0], [0, 0, 1, 0], [], []>} : vector<16x16xf32>, vector<16x16xf32>, vector<16x16xf32> -> vector<16x16xf32>
    %cst_36 = arith.constant dense<0xFF800000> : vector<16xf32>
    %66 = vector.multi_reduction <maximumf>, %65, %cst_36 [1] : vector<16x16xf32> to vector<16xf32>
    %67 = vector.shape_cast %66 : vector<16xf32> to vector<16x1xf32>
    %68 = vector.broadcast %67 : vector<16x1xf32> to vector<16x16xf32>
    %69 = arith.subf %65, %68 : vector<16x16xf32>
    %70 = math.exp %69 : vector<16x16xf32>
    %cst_37 = arith.constant dense<0.000000e+00> : vector<16xf32>
    %71 = vector.multi_reduction <add>, %70, %cst_37 [1] : vector<16x16xf32> to vector<16xf32>
    %72 = vector.shape_cast %71 : vector<16xf32> to vector<16x1xf32>
    %73 = vector.broadcast %72 : vector<16x1xf32> to vector<16x16xf32>
    %74 = arith.divf %70, %73 : vector<16x16xf32>
    %cst_38 = arith.constant dense<0.000000e+00> : vector<16x16xf32>
    %75 = tpu.matmul %74, %64, %cst_38 {dimension_numbers = #tpu.dot_dimension_numbers<[1], [0], [0], [1], [0, 0, 1, 1], [], []>} : vector<16x16xf32>, vector<16x16xf32>, vector<16x16xf32> -> vector<16x16xf32>
    %76 = vector.extract_strided_slice %20 {offsets = [32, 0], sizes = [16, 128], strides = [1, 1]} : vector<128x128xf32> to vector<16x128xf32>
    %cst_39 = arith.constant dense<0.000000e+00> : vector<16x128xf32>
    %77 = tpu.matmul %75, %76, %cst_39 {dimension_numbers = #tpu.dot_dimension_numbers<[1], [0], [0], [1], [0, 0, 1, 1], [], []>} : vector<16x16xf32>, vector<16x128xf32>, vector<16x128xf32> -> vector<16x128xf32>
    %78 = arith.addf %59, %77 : vector<16x128xf32>
    %79 = vector.extract_strided_slice %9 {offsets = [0, 48], sizes = [16, 16], strides = [1, 1]} : vector<16x128xf32> to vector<16x16xf32>
    %cst_40 = arith.constant 2.500000e-01 : f32
    %80 = vector.broadcast %cst_40 : f32 to vector<16x16xf32>
    %81 = arith.mulf %79, %80 : vector<16x16xf32>
    %82 = vector.extract_strided_slice %14 {offsets = [0, 48], sizes = [16, 16], strides = [1, 1]} : vector<16x128xf32> to vector<16x16xf32>
    %83 = vector.extract_strided_slice %19 {offsets = [0, 48], sizes = [16, 16], strides = [1, 1]} : vector<16x128xf32> to vector<16x16xf32>
    %cst_41 = arith.constant dense<0.000000e+00> : vector<16x16xf32>
    %84 = tpu.matmul %81, %82, %cst_41 {dimension_numbers = #tpu.dot_dimension_numbers<[1], [1], [0], [0], [0, 0, 1, 0], [], []>} : vector<16x16xf32>, vector<16x16xf32>, vector<16x16xf32> -> vector<16x16xf32>
    %cst_42 = arith.constant dense<0xFF800000> : vector<16xf32>
    %85 = vector.multi_reduction <maximumf>, %84, %cst_42 [1] : vector<16x16xf32> to vector<16xf32>
    %86 = vector.shape_cast %85 : vector<16xf32> to vector<16x1xf32>
    %87 = vector.broadcast %86 : vector<16x1xf32> to vector<16x16xf32>
    %88 = arith.subf %84, %87 : vector<16x16xf32>
    %89 = math.exp %88 : vector<16x16xf32>
    %cst_43 = arith.constant dense<0.000000e+00> : vector<16xf32>
    %90 = vector.multi_reduction <add>, %89, %cst_43 [1] : vector<16x16xf32> to vector<16xf32>
    %91 = vector.shape_cast %90 : vector<16xf32> to vector<16x1xf32>
    %92 = vector.broadcast %91 : vector<16x1xf32> to vector<16x16xf32>
    %93 = arith.divf %89, %92 : vector<16x16xf32>
    %cst_44 = arith.constant dense<0.000000e+00> : vector<16x16xf32>
    %94 = tpu.matmul %93, %83, %cst_44 {dimension_numbers = #tpu.dot_dimension_numbers<[1], [0], [0], [1], [0, 0, 1, 1], [], []>} : vector<16x16xf32>, vector<16x16xf32>, vector<16x16xf32> -> vector<16x16xf32>
    %95 = vector.extract_strided_slice %20 {offsets = [48, 0], sizes = [16, 128], strides = [1, 1]} : vector<128x128xf32> to vector<16x128xf32>
    %cst_45 = arith.constant dense<0.000000e+00> : vector<16x128xf32>
    %96 = tpu.matmul %94, %95, %cst_45 {dimension_numbers = #tpu.dot_dimension_numbers<[1], [0], [0], [1], [0, 0, 1, 1], [], []>} : vector<16x16xf32>, vector<16x128xf32>, vector<16x128xf32> -> vector<16x128xf32>
    %97 = arith.addf %78, %96 : vector<16x128xf32>
    %98 = vector.extract_strided_slice %9 {offsets = [0, 64], sizes = [16, 16], strides = [1, 1]} : vector<16x128xf32> to vector<16x16xf32>
    %cst_46 = arith.constant 2.500000e-01 : f32
    %99 = vector.broadcast %cst_46 : f32 to vector<16x16xf32>
    %100 = arith.mulf %98, %99 : vector<16x16xf32>
    %101 = vector.extract_strided_slice %14 {offsets = [0, 64], sizes = [16, 16], strides = [1, 1]} : vector<16x128xf32> to vector<16x16xf32>
    %102 = vector.extract_strided_slice %19 {offsets = [0, 64], sizes = [16, 16], strides = [1, 1]} : vector<16x128xf32> to vector<16x16xf32>
    %cst_47 = arith.constant dense<0.000000e+00> : vector<16x16xf32>
    %103 = tpu.matmul %100, %101, %cst_47 {dimension_numbers = #tpu.dot_dimension_numbers<[1], [1], [0], [0], [0, 0, 1, 0], [], []>} : vector<16x16xf32>, vector<16x16xf32>, vector<16x16xf32> -> vector<16x16xf32>
    %cst_48 = arith.constant dense<0xFF800000> : vector<16xf32>
    %104 = vector.multi_reduction <maximumf>, %103, %cst_48 [1] : vector<16x16xf32> to vector<16xf32>
    %105 = vector.shape_cast %104 : vector<16xf32> to vector<16x1xf32>
    %106 = vector.broadcast %105 : vector<16x1xf32> to vector<16x16xf32>
    %107 = arith.subf %103, %106 : vector<16x16xf32>
    %108 = math.exp %107 : vector<16x16xf32>
    %cst_49 = arith.constant dense<0.000000e+00> : vector<16xf32>
    %109 = vector.multi_reduction <add>, %108, %cst_49 [1] : vector<16x16xf32> to vector<16xf32>
    %110 = vector.shape_cast %109 : vector<16xf32> to vector<16x1xf32>
    %111 = vector.broadcast %110 : vector<16x1xf32> to vector<16x16xf32>
    %112 = arith.divf %108, %111 : vector<16x16xf32>
    %cst_50 = arith.constant dense<0.000000e+00> : vector<16x16xf32>
    %113 = tpu.matmul %112, %102, %cst_50 {dimension_numbers = #tpu.dot_dimension_numbers<[1], [0], [0], [1], [0, 0, 1, 1], [], []>} : vector<16x16xf32>, vector<16x16xf32>, vector<16x16xf32> -> vector<16x16xf32>
    %114 = vector.extract_strided_slice %20 {offsets = [64, 0], sizes = [16, 128], strides = [1, 1]} : vector<128x128xf32> to vector<16x128xf32>
    %cst_51 = arith.constant dense<0.000000e+00> : vector<16x128xf32>
    %115 = tpu.matmul %113, %114, %cst_51 {dimension_numbers = #tpu.dot_dimension_numbers<[1], [0], [0], [1], [0, 0, 1, 1], [], []>} : vector<16x16xf32>, vector<16x128xf32>, vector<16x128xf32> -> vector<16x128xf32>
    %116 = arith.addf %97, %115 : vector<16x128xf32>
    %117 = vector.extract_strided_slice %9 {offsets = [0, 80], sizes = [16, 16], strides = [1, 1]} : vector<16x128xf32> to vector<16x16xf32>
    %cst_52 = arith.constant 2.500000e-01 : f32
    %118 = vector.broadcast %cst_52 : f32 to vector<16x16xf32>
    %119 = arith.mulf %117, %118 : vector<16x16xf32>
    %120 = vector.extract_strided_slice %14 {offsets = [0, 80], sizes = [16, 16], strides = [1, 1]} : vector<16x128xf32> to vector<16x16xf32>
    %121 = vector.extract_strided_slice %19 {offsets = [0, 80], sizes = [16, 16], strides = [1, 1]} : vector<16x128xf32> to vector<16x16xf32>
    %cst_53 = arith.constant dense<0.000000e+00> : vector<16x16xf32>
    %122 = tpu.matmul %119, %120, %cst_53 {dimension_numbers = #tpu.dot_dimension_numbers<[1], [1], [0], [0], [0, 0, 1, 0], [], []>} : vector<16x16xf32>, vector<16x16xf32>, vector<16x16xf32> -> vector<16x16xf32>
    %cst_54 = arith.constant dense<0xFF800000> : vector<16xf32>
    %123 = vector.multi_reduction <maximumf>, %122, %cst_54 [1] : vector<16x16xf32> to vector<16xf32>
    %124 = vector.shape_cast %123 : vector<16xf32> to vector<16x1xf32>
    %125 = vector.broadcast %124 : vector<16x1xf32> to vector<16x16xf32>
    %126 = arith.subf %122, %125 : vector<16x16xf32>
    %127 = math.exp %126 : vector<16x16xf32>
    %cst_55 = arith.constant dense<0.000000e+00> : vector<16xf32>
    %128 = vector.multi_reduction <add>, %127, %cst_55 [1] : vector<16x16xf32> to vector<16xf32>
    %129 = vector.shape_cast %128 : vector<16xf32> to vector<16x1xf32>
    %130 = vector.broadcast %129 : vector<16x1xf32> to vector<16x16xf32>
    %131 = arith.divf %127, %130 : vector<16x16xf32>
    %cst_56 = arith.constant dense<0.000000e+00> : vector<16x16xf32>
    %132 = tpu.matmul %131, %121, %cst_56 {dimension_numbers = #tpu.dot_dimension_numbers<[1], [0], [0], [1], [0, 0, 1, 1], [], []>} : vector<16x16xf32>, vector<16x16xf32>, vector<16x16xf32> -> vector<16x16xf32>
    %133 = vector.extract_strided_slice %20 {offsets = [80, 0], sizes = [16, 128], strides = [1, 1]} : vector<128x128xf32> to vector<16x128xf32>
    %cst_57 = arith.constant dense<0.000000e+00> : vector<16x128xf32>
    %134 = tpu.matmul %132, %133, %cst_57 {dimension_numbers = #tpu.dot_dimension_numbers<[1], [0], [0], [1], [0, 0, 1, 1], [], []>} : vector<16x16xf32>, vector<16x128xf32>, vector<16x128xf32> -> vector<16x128xf32>
    %135 = arith.addf %116, %134 : vector<16x128xf32>
    %136 = vector.extract_strided_slice %9 {offsets = [0, 96], sizes = [16, 16], strides = [1, 1]} : vector<16x128xf32> to vector<16x16xf32>
    %cst_58 = arith.constant 2.500000e-01 : f32
    %137 = vector.broadcast %cst_58 : f32 to vector<16x16xf32>
    %138 = arith.mulf %136, %137 : vector<16x16xf32>
    %139 = vector.extract_strided_slice %14 {offsets = [0, 96], sizes = [16, 16], strides = [1, 1]} : vector<16x128xf32> to vector<16x16xf32>
    %140 = vector.extract_strided_slice %19 {offsets = [0, 96], sizes = [16, 16], strides = [1, 1]} : vector<16x128xf32> to vector<16x16xf32>
    %cst_59 = arith.constant dense<0.000000e+00> : vector<16x16xf32>
    %141 = tpu.matmul %138, %139, %cst_59 {dimension_numbers = #tpu.dot_dimension_numbers<[1], [1], [0], [0], [0, 0, 1, 0], [], []>} : vector<16x16xf32>, vector<16x16xf32>, vector<16x16xf32> -> vector<16x16xf32>
    %cst_60 = arith.constant dense<0xFF800000> : vector<16xf32>
    %142 = vector.multi_reduction <maximumf>, %141, %cst_60 [1] : vector<16x16xf32> to vector<16xf32>
    %143 = vector.shape_cast %142 : vector<16xf32> to vector<16x1xf32>
    %144 = vector.broadcast %143 : vector<16x1xf32> to vector<16x16xf32>
    %145 = arith.subf %141, %144 : vector<16x16xf32>
    %146 = math.exp %145 : vector<16x16xf32>
    %cst_61 = arith.constant dense<0.000000e+00> : vector<16xf32>
    %147 = vector.multi_reduction <add>, %146, %cst_61 [1] : vector<16x16xf32> to vector<16xf32>
    %148 = vector.shape_cast %147 : vector<16xf32> to vector<16x1xf32>
    %149 = vector.broadcast %148 : vector<16x1xf32> to vector<16x16xf32>
    %150 = arith.divf %146, %149 : vector<16x16xf32>
    %cst_62 = arith.constant dense<0.000000e+00> : vector<16x16xf32>
    %151 = tpu.matmul %150, %140, %cst_62 {dimension_numbers = #tpu.dot_dimension_numbers<[1], [0], [0], [1], [0, 0, 1, 1], [], []>} : vector<16x16xf32>, vector<16x16xf32>, vector<16x16xf32> -> vector<16x16xf32>
    %152 = vector.extract_strided_slice %20 {offsets = [96, 0], sizes = [16, 128], strides = [1, 1]} : vector<128x128xf32> to vector<16x128xf32>
    %cst_63 = arith.constant dense<0.000000e+00> : vector<16x128xf32>
    %153 = tpu.matmul %151, %152, %cst_63 {dimension_numbers = #tpu.dot_dimension_numbers<[1], [0], [0], [1], [0, 0, 1, 1], [], []>} : vector<16x16xf32>, vector<16x128xf32>, vector<16x128xf32> -> vector<16x128xf32>
    %154 = arith.addf %135, %153 : vector<16x128xf32>
    %155 = vector.extract_strided_slice %9 {offsets = [0, 112], sizes = [16, 16], strides = [1, 1]} : vector<16x128xf32> to vector<16x16xf32>
    %cst_64 = arith.constant 2.500000e-01 : f32
    %156 = vector.broadcast %cst_64 : f32 to vector<16x16xf32>
    %157 = arith.mulf %155, %156 : vector<16x16xf32>
    %158 = vector.extract_strided_slice %14 {offsets = [0, 112], sizes = [16, 16], strides = [1, 1]} : vector<16x128xf32> to vector<16x16xf32>
    %159 = vector.extract_strided_slice %19 {offsets = [0, 112], sizes = [16, 16], strides = [1, 1]} : vector<16x128xf32> to vector<16x16xf32>
    %cst_65 = arith.constant dense<0.000000e+00> : vector<16x16xf32>
    %160 = tpu.matmul %157, %158, %cst_65 {dimension_numbers = #tpu.dot_dimension_numbers<[1], [1], [0], [0], [0, 0, 1, 0], [], []>} : vector<16x16xf32>, vector<16x16xf32>, vector<16x16xf32> -> vector<16x16xf32>
    %cst_66 = arith.constant dense<0xFF800000> : vector<16xf32>
    %161 = vector.multi_reduction <maximumf>, %160, %cst_66 [1] : vector<16x16xf32> to vector<16xf32>
    %162 = vector.shape_cast %161 : vector<16xf32> to vector<16x1xf32>
    %163 = vector.broadcast %162 : vector<16x1xf32> to vector<16x16xf32>
    %164 = arith.subf %160, %163 : vector<16x16xf32>
    %165 = math.exp %164 : vector<16x16xf32>
    %cst_67 = arith.constant dense<0.000000e+00> : vector<16xf32>
    %166 = vector.multi_reduction <add>, %165, %cst_67 [1] : vector<16x16xf32> to vector<16xf32>
    %167 = vector.shape_cast %166 : vector<16xf32> to vector<16x1xf32>
    %168 = vector.broadcast %167 : vector<16x1xf32> to vector<16x16xf32>
    %169 = arith.divf %165, %168 : vector<16x16xf32>
    %cst_68 = arith.constant dense<0.000000e+00> : vector<16x16xf32>
    %170 = tpu.matmul %169, %159, %cst_68 {dimension_numbers = #tpu.dot_dimension_numbers<[1], [0], [0], [1], [0, 0, 1, 1], [], []>} : vector<16x16xf32>, vector<16x16xf32>, vector<16x16xf32> -> vector<16x16xf32>
    %171 = vector.extract_strided_slice %20 {offsets = [112, 0], sizes = [16, 128], strides = [1, 1]} : vector<128x128xf32> to vector<16x128xf32>
    %cst_69 = arith.constant dense<0.000000e+00> : vector<16x128xf32>
    %172 = tpu.matmul %170, %171, %cst_69 {dimension_numbers = #tpu.dot_dimension_numbers<[1], [0], [0], [1], [0, 0, 1, 1], [], []>} : vector<16x16xf32>, vector<16x128xf32>, vector<16x128xf32> -> vector<16x128xf32>
    %173 = arith.addf %154, %172 : vector<16x128xf32>
    %c0_70 = arith.constant 0 : index
    %c0_71 = arith.constant 0 : index
    %174 = vector.load %arg10[%c0_70, %c0_71] : memref<1x128xf32, #tpu.memory_space<vmem>>, vector<1x128xf32>
    %175 = vector.broadcast %174 : vector<1x128xf32> to vector<16x128xf32>
    %176 = arith.addf %173, %175 : vector<16x128xf32>
    %177 = arith.addf %1, %176 : vector<16x128xf32>
    %cst_72 = arith.constant dense<0.000000e+00> : vector<16xf32>
    %178 = vector.multi_reduction <add>, %177, %cst_72 [1] : vector<16x128xf32> to vector<16xf32>
    %179 = vector.shape_cast %178 : vector<16xf32> to vector<16x1xf32>
    %cst_73 = arith.constant 1.280000e+02 : f32
    %180 = vector.broadcast %cst_73 : f32 to vector<16x1xf32>
    %181 = arith.divf %179, %180 : vector<16x1xf32>
    %182 = vector.broadcast %181 : vector<16x1xf32> to vector<16x128xf32>
    %183 = arith.subf %177, %182 : vector<16x128xf32>
    %184 = arith.mulf %183, %183 : vector<16x128xf32>
    %cst_74 = arith.constant dense<0.000000e+00> : vector<16xf32>
    %185 = vector.multi_reduction <add>, %184, %cst_74 [1] : vector<16x128xf32> to vector<16xf32>
    %186 = vector.shape_cast %185 : vector<16xf32> to vector<16x1xf32>
    %cst_75 = arith.constant 1.280000e+02 : f32
    %187 = vector.broadcast %cst_75 : f32 to vector<16x1xf32>
    %188 = arith.divf %186, %187 : vector<16x1xf32>
    %cst_76 = arith.constant 9.99999974E-6 : f32
    %189 = vector.broadcast %cst_76 : f32 to vector<16x1xf32>
    %190 = arith.addf %188, %189 : vector<16x1xf32>
    %191 = math.rsqrt %190 : vector<16x1xf32>
    %192 = vector.broadcast %191 : vector<16x1xf32> to vector<16x128xf32>
    %193 = arith.mulf %183, %192 : vector<16x128xf32>
    %c0_77 = arith.constant 0 : index
    %c0_78 = arith.constant 0 : index
    %194 = vector.load %arg11[%c0_77, %c0_78] : memref<1x128xf32, #tpu.memory_space<vmem>>, vector<1x128xf32>
    %195 = vector.broadcast %194 : vector<1x128xf32> to vector<16x128xf32>
    %196 = arith.mulf %193, %195 : vector<16x128xf32>
    %c0_79 = arith.constant 0 : index
    %c0_80 = arith.constant 0 : index
    %197 = vector.load %arg12[%c0_79, %c0_80] : memref<1x128xf32, #tpu.memory_space<vmem>>, vector<1x128xf32>
    %198 = vector.broadcast %197 : vector<1x128xf32> to vector<16x128xf32>
    %199 = arith.addf %196, %198 : vector<16x128xf32>
    %c0_81 = arith.constant 0 : index
    %c0_82 = arith.constant 0 : index
    %200 = vector.load %arg13[%c0_81, %c0_82] : memref<128x256xf32, #tpu.memory_space<vmem>>, vector<128x256xf32>
    %cst_83 = arith.constant dense<0.000000e+00> : vector<16x256xf32>
    %201 = tpu.matmul %199, %200, %cst_83 {dimension_numbers = #tpu.dot_dimension_numbers<[1], [0], [0], [1], [0, 0, 1, 1], [], []>} : vector<16x128xf32>, vector<128x256xf32>, vector<16x256xf32> -> vector<16x256xf32>
    %c0_84 = arith.constant 0 : index
    %c0_85 = arith.constant 0 : index
    %202 = vector.load %arg14[%c0_84, %c0_85] : memref<1x256xf32, #tpu.memory_space<vmem>>, vector<1x256xf32>
    %203 = vector.broadcast %202 : vector<1x256xf32> to vector<16x256xf32>
    %204 = arith.addf %201, %203 : vector<16x256xf32>
    %cst_86 = arith.constant 0.000000e+00 : f32
    %205 = vector.broadcast %cst_86 : f32 to vector<16x256xf32>
    %206 = arith.maximumf %204, %205 : vector<16x256xf32>
    %c0_87 = arith.constant 0 : index
    %c0_88 = arith.constant 0 : index
    %207 = vector.load %arg15[%c0_87, %c0_88] : memref<256x128xf32, #tpu.memory_space<vmem>>, vector<256x128xf32>
    %cst_89 = arith.constant dense<0.000000e+00> : vector<16x128xf32>
    %208 = tpu.matmul %206, %207, %cst_89 {dimension_numbers = #tpu.dot_dimension_numbers<[1], [0], [0], [1], [0, 0, 1, 1], [], []>} : vector<16x256xf32>, vector<256x128xf32>, vector<16x128xf32> -> vector<16x128xf32>
    %c0_90 = arith.constant 0 : index
    %c0_91 = arith.constant 0 : index
    %209 = vector.load %arg16[%c0_90, %c0_91] : memref<1x128xf32, #tpu.memory_space<vmem>>, vector<1x128xf32>
    %210 = vector.broadcast %209 : vector<1x128xf32> to vector<16x128xf32>
    %211 = arith.addf %208, %210 : vector<16x128xf32>
    %212 = arith.addf %199, %211 : vector<16x128xf32>
    %cst_92 = arith.constant dense<0.000000e+00> : vector<16xf32>
    %213 = vector.multi_reduction <add>, %212, %cst_92 [1] : vector<16x128xf32> to vector<16xf32>
    %214 = vector.shape_cast %213 : vector<16xf32> to vector<16x1xf32>
    %cst_93 = arith.constant 1.280000e+02 : f32
    %215 = vector.broadcast %cst_93 : f32 to vector<16x1xf32>
    %216 = arith.divf %214, %215 : vector<16x1xf32>
    %217 = vector.broadcast %216 : vector<16x1xf32> to vector<16x128xf32>
    %218 = arith.subf %212, %217 : vector<16x128xf32>
    %219 = arith.mulf %218, %218 : vector<16x128xf32>
    %cst_94 = arith.constant dense<0.000000e+00> : vector<16xf32>
    %220 = vector.multi_reduction <add>, %219, %cst_94 [1] : vector<16x128xf32> to vector<16xf32>
    %221 = vector.shape_cast %220 : vector<16xf32> to vector<16x1xf32>
    %cst_95 = arith.constant 1.280000e+02 : f32
    %222 = vector.broadcast %cst_95 : f32 to vector<16x1xf32>
    %223 = arith.divf %221, %222 : vector<16x1xf32>
    %cst_96 = arith.constant 9.99999974E-6 : f32
    %224 = vector.broadcast %cst_96 : f32 to vector<16x1xf32>
    %225 = arith.addf %223, %224 : vector<16x1xf32>
    %226 = math.rsqrt %225 : vector<16x1xf32>
    %227 = vector.broadcast %226 : vector<16x1xf32> to vector<16x128xf32>
    %228 = arith.mulf %218, %227 : vector<16x128xf32>
    %c0_97 = arith.constant 0 : index
    %c0_98 = arith.constant 0 : index
    %229 = vector.load %arg17[%c0_97, %c0_98] : memref<1x128xf32, #tpu.memory_space<vmem>>, vector<1x128xf32>
    %230 = vector.broadcast %229 : vector<1x128xf32> to vector<16x128xf32>
    %231 = arith.mulf %228, %230 : vector<16x128xf32>
    %c0_99 = arith.constant 0 : index
    %c0_100 = arith.constant 0 : index
    %232 = vector.load %arg18[%c0_99, %c0_100] : memref<1x128xf32, #tpu.memory_space<vmem>>, vector<1x128xf32>
    %233 = vector.broadcast %232 : vector<1x128xf32> to vector<16x128xf32>
    %234 = arith.addf %231, %233 : vector<16x128xf32>
    %c0_101 = arith.constant 0 : index
    %c0_102 = arith.constant 0 : index
    %c0_103 = arith.constant 0 : index
    %235 = vector.load %arg19[%c0_101, %c0_102, %c0_103] : memref<1x16x128xf32, #tpu.memory_space<vmem>>, vector<1x16x128xf32>
    %236 = vector.shape_cast %235 : vector<1x16x128xf32> to vector<16x128xf32>
    %237 = vector.shape_cast %234 : vector<16x128xf32> to vector<1x16x128xf32>
    tpu.vector_store %arg19[%c0_101, %c0_102, %c0_103], %237 {strides = array<i32>} : memref<1x16x128xf32, #tpu.memory_space<vmem>>, vector<1x16x128xf32>,
    return
  }
  func.func @transform_0(%arg0: i32) -> (i32, i32, i32) {
    %c0_i32 = arith.constant 0 : i32
    %c0_i32_0 = arith.constant 0 : i32
    %c0_i32_1 = arith.constant 0 : i32
    return %arg0, %c0_i32, %c0_i32_0 : i32, i32, i32
  }
  func.func @transform_1(%arg0: i32) -> (i32, i32, i32) {
    %c0_i32 = arith.constant 0 : i32
    %c0_i32_0 = arith.constant 0 : i32
    %c0_i32_1 = arith.constant 0 : i32
    return %arg0, %c0_i32, %c0_i32_0 : i32, i32, i32
  }
  func.func @transform_2(%arg0: i32) -> (i32, i32) {
    %c0_i32 = arith.constant 0 : i32
    %c0_i32_0 = arith.constant 0 : i32
    %c0_i32_1 = arith.constant 0 : i32
    return %c0_i32, %c0_i32_0 : i32, i32
  }
  func.func @transform_3(%arg0: i32) -> (i32, i32) {
    %c0_i32 = arith.constant 0 : i32
    %c0_i32_0 = arith.constant 0 : i32
    %c0_i32_1 = arith.constant 0 : i32
    return %c0_i32, %c0_i32_0 : i32, i32
  }
  func.func @transform_4(%arg0: i32) -> (i32, i32) {
    %c0_i32 = arith.constant 0 : i32
    %c0_i32_0 = arith.constant 0 : i32
    %c0_i32_1 = arith.constant 0 : i32
    return %c0_i32, %c0_i32_0 : i32, i32
  }
  func.func @transform_5(%arg0: i32) -> (i32, i32) {
    %c0_i32 = arith.constant 0 : i32
    %c0_i32_0 = arith.constant 0 : i32
    %c0_i32_1 = arith.constant 0 : i32
    return %c0_i32, %c0_i32_0 : i32, i32
  }
  func.func @transform_6(%arg0: i32) -> (i32, i32) {
    %c0_i32 = arith.constant 0 : i32
    %c0_i32_0 = arith.constant 0 : i32
    %c0_i32_1 = arith.constant 0 : i32
    return %c0_i32, %c0_i32_0 : i32, i32
  }
  func.func @transform_7(%arg0: i32) -> (i32, i32) {
    %c0_i32 = arith.constant 0 : i32
    %c0_i32_0 = arith.constant 0 : i32
    %c0_i32_1 = arith.constant 0 : i32
    return %c0_i32, %c0_i32_0 : i32, i32
  }
  func.func @transform_8(%arg0: i32) -> (i32, i32) {
    %c0_i32 = arith.constant 0 : i32
    %c0_i32_0 = arith.constant 0 : i32
    %c0_i32_1 = arith.constant 0 : i32
    return %c0_i32, %c0_i32_0 : i32, i32
  }
  func.func @transform_9(%arg0: i32) -> (i32, i32) {
    %c0_i32 = arith.constant 0 : i32
    %c0_i32_0 = arith.constant 0 : i32
    %c0_i32_1 = arith.constant 0 : i32
    return %c0_i32, %c0_i32_0 : i32, i32
  }
  func.func @transform_10(%arg0: i32) -> (i32, i32) {
    %c0_i32 = arith.constant 0 : i32
    %c0_i32_0 = arith.constant 0 : i32
    %c0_i32_1 = arith.constant 0 : i32
    return %c0_i32, %c0_i32_0 : i32, i32
  }
  func.func @transform_11(%arg0: i32) -> (i32, i32) {
    %c0_i32 = arith.constant 0 : i32
    %c0_i32_0 = arith.constant 0 : i32
    %c0_i32_1 = arith.constant 0 : i32
    return %c0_i32, %c0_i32_0 : i32, i32
  }
  func.func @transform_12(%arg0: i32) -> (i32, i32) {
    %c0_i32 = arith.constant 0 : i32
    %c0_i32_0 = arith.constant 0 : i32
    %c0_i32_1 = arith.constant 0 : i32
    return %c0_i32, %c0_i32_0 : i32, i32
  }
  func.func @transform_13(%arg0: i32) -> (i32, i32) {
    %c0_i32 = arith.constant 0 : i32
    %c0_i32_0 = arith.constant 0 : i32
    %c0_i32_1 = arith.constant 0 : i32
    return %c0_i32, %c0_i32_0 : i32, i32
  }
  func.func @transform_14(%arg0: i32) -> (i32, i32) {
    %c0_i32 = arith.constant 0 : i32
    %c0_i32_0 = arith.constant 0 : i32
    %c0_i32_1 = arith.constant 0 : i32
    return %c0_i32, %c0_i32_0 : i32, i32
  }
  func.func @transform_15(%arg0: i32) -> (i32, i32) {
    %c0_i32 = arith.constant 0 : i32
    %c0_i32_0 = arith.constant 0 : i32
    %c0_i32_1 = arith.constant 0 : i32
    return %c0_i32, %c0_i32_0 : i32, i32
  }
  func.func @transform_16(%arg0: i32) -> (i32, i32) {
    %c0_i32 = arith.constant 0 : i32
    %c0_i32_0 = arith.constant 0 : i32
    %c0_i32_1 = arith.constant 0 : i32
    return %c0_i32, %c0_i32_0 : i32, i32
  }
  func.func @transform_17(%arg0: i32) -> (i32, i32) {
    %c0_i32 = arith.constant 0 : i32
    %c0_i32_0 = arith.constant 0 : i32
    %c0_i32_1 = arith.constant 0 : i32
    return %c0_i32, %c0_i32_0 : i32, i32
  }
  func.func @transform_18(%arg0: i32) -> (i32, i32, i32) {
    %c0_i32 = arith.constant 0 : i32
    %c0_i32_0 = arith.constant 0 : i32
    %c0_i32_1 = arith.constant 0 : i32
    return %arg0, %c0_i32, %c0_i32_0 : i32, i32, i32
  }
}

</mosaic_0001>

<llo_original>
// kernel: tpu_custom_call.1
$region0: #{tpu_custom_call.1}
  #allocation0 [shape = 'u32[]', space=smem, size = 0x4, offset = 0x4, fixed_abs, tag = 'smem constant byte address 0x4 - core index']
  #allocation1 [shape = 'u32[144,128]{1,0:T(1,128)}', space=vmem, size = 0x12000, scoped, tag = 'internal scratch']
  %s0 = inlined_call_operand.hbm [shape: f32[2,16,128], index: 0, kind: input, shape index: {}]
  %s1 = inlined_call_operand.hbm [shape: f32[2,16,128], index: 1, kind: input, shape index: {}]
  %s2 = inlined_call_operand.hbm [shape: f32[128,128], index: 2, kind: input, shape index: {}]
  %s3 = inlined_call_operand.hbm [shape: f32[128,128], index: 3, kind: input, shape index: {}]
  %s4 = inlined_call_operand.hbm [shape: f32[128,128], index: 4, kind: input, shape index: {}]
  %s5 = inlined_call_operand.vmem [shape: f32[1,128], index: 5, kind: input, shape index: {}]
  %s6 = inlined_call_operand.vmem [shape: f32[1,128], index: 6, kind: input, shape index: {}]
  %s7 = inlined_call_operand.vmem [shape: f32[1,128], index: 7, kind: input, shape index: {}]
  %s8 = inlined_call_operand.hbm [shape: f32[128,128], index: 8, kind: input, shape index: {}]
  %s9 = inlined_call_operand.vmem [shape: f32[1,128], index: 9, kind: input, shape index: {}]
  %s10 = inlined_call_operand.vmem [shape: f32[1,128], index: 10, kind: input, shape index: {}]
  %s11 = inlined_call_operand.vmem [shape: f32[1,128], index: 11, kind: input, shape index: {}]
  %s12 = inlined_call_operand.hbm [shape: f32[128,256], index: 12, kind: input, shape index: {}]
  %s13 = inlined_call_operand.vmem [shape: f32[1,256], index: 13, kind: input, shape index: {}]
  %s14 = inlined_call_operand.hbm [shape: f32[256,128], index: 14, kind: input, shape index: {}]
  %s15 = inlined_call_operand.vmem [shape: f32[1,128], index: 15, kind: input, shape index: {}]
  %s16 = inlined_call_operand.vmem [shape: f32[1,128], index: 16, kind: input, shape index: {}]
  %s17 = inlined_call_operand.vmem [shape: f32[1,128], index: 17, kind: input, shape index: {}]
  %s18 = inlined_call_operand.hbm [shape: f32[2,16,128], index: 18, kind: output, shape index: {}]
  %s19 = sld [smem:[#allocation0]]
  $region137: #{tpu_custom_call.1} parent=0
    _
  %s21 = ssub.s32 1, %s19
  %s22 = scalar_select 0, %s21, %s19
  $region1: #{tpu_custom_call.1} parent=0
    #allocation2 [shape = 'u8[16384]{0}', space=vmem, size = 0x4000, scoped, tag = 'input window, operand 0']
    #allocation3 [shape = 's32[2]{0}', space=sflag, size = 0x8, scoped, tag = 'scoped memory for tpu_custom_call.1']
    #allocation4 [shape = 's32[2]{0}', space=sflag, size = 0x8, scoped, tag = 'scoped memory for tpu_custom_call.1']
    #allocation5 [shape = 'u8[16384]{0}', space=vmem, size = 0x4000, scoped, tag = 'input window, operand 1']
    #allocation6 [shape = 's32[2]{0}', space=sflag, size = 0x8, scoped, tag = 'scoped memory for tpu_custom_call.1']
    #allocation7 [shape = 'u8[65536]{0}', space=vmem, size = 0x10000, scoped, tag = 'input window, operand 2, single buffered']
    #allocation8 [shape = 'u8[65536]{0}', space=vmem, size = 0x10000, scoped, tag = 'input window, operand 3, single buffered']
    #allocation9 [shape = 's32[1]{0}', space=sflag, size = 0x4, scoped, tag = 'scoped memory for tpu_custom_call.1']
    #allocation10 [shape = 'u8[65536]{0}', space=vmem, size = 0x10000, scoped, tag = 'input window, operand 4, single buffered']
    #allocation11 [shape = 'u8[65536]{0}', space=vmem, size = 0x10000, scoped, tag = 'input window, operand 8, single buffered']
    #allocation12 [shape = 's32[1]{0}', space=sflag, size = 0x4, scoped, tag = 'scoped memory for tpu_custom_call.1']
    #allocation13 [shape = 'u8[131072]{0}', space=vmem, size = 0x20000, scoped, tag = 'input window, operand 12, single buffered']
    #allocation14 [shape = 'u8[131072]{0}', space=vmem, size = 0x20000, scoped, tag = 'input window, operand 14, single buffered']
    #allocation15 [shape = 's32[1]{0}', space=sflag, size = 0x4, scoped, tag = 'scoped memory for tpu_custom_call.1']
    #allocation16 [shape = 'u8[16384]{0}', space=vmem, size = 0x4000, scoped, tag = 'output window, operand 0']
    %23 = vsyncpa [#allocation3], 0
    %s24 = scalar_lea.sflag [#allocation3], 1
    %25 = vsyncpa %s24, 0
    %26 = vsyncpa [#allocation6], 0
    %s27 = scalar_lea.sflag [#allocation6], 1
    %28 = vsyncpa %s27, 0
    %29 = vsyncpa [#allocation9], 0
    %30 = vsyncpa [#allocation12], 0
    %31 = vsyncpa [#allocation15], 0
    %32 = vsyncpa [#allocation4], 0
    %s33 = scalar_lea.sflag [#allocation4], 1
    %34 = vsyncpa %s33, 0
    loop: start=0, step=1, limit=4
    $region2: #{tpu_custom_call.1} parent=1 // loop_pre_header
      _
    $region3: #{tpu_custom_call.1} parent=1 // loop_header
      %s36 = sphi 0, %s40
      %p37 = scmp.ge.s32.totalorder %s36, 4
      %s46 = sphi 0, %s48
      %s49 = sphi 0, %s46
      %s50 = sphi 0, %s49
      %s66 = sphi 0, %s50
      %s72 = sphi 0, %s74
      %s75 = sphi 0, %s72
      %s76 = sphi 0, %s75
      %s92 = sphi 0, %s76
      %s96 = sphi 0, %s96
      %s98 = sphi 0, %s96
      %s99 = sphi 0, %s98
      %s113 = sphi 0, %s99
      %s117 = sphi 0, %s117
      %s119 = sphi 0, %s117
      %s120 = sphi 0, %s119
      %s134 = sphi 0, %s120
      %s138 = sphi 0, %s138
      %s140 = sphi 0, %s138
      %s141 = sphi 0, %s140
      %s155 = sphi 0, %s141
      %s159 = sphi 0, %s159
      %s161 = sphi 0, %s159
      %s162 = sphi 0, %s161
      %s176 = sphi 0, %s162
      %s180 = sphi 0, %s180
      %s182 = sphi 0, %s180
      %s183 = sphi 0, %s182
      %s197 = sphi 0, %s183
      %s201 = sphi 0, %s201
      %s203 = sphi 0, %s201
      %s204 = sphi 0, %s203
      %s218 = sphi 0, %s204
      %s222 = sphi 0, %s222
      %s224 = sphi 0, %s222
      %s225 = sphi 0, %s224
      %s239 = sphi 0, %s225
      %s243 = sphi 0, %s243
      %s245 = sphi 0, %s243
      %s246 = sphi 0, %s245
      %s260 = sphi 0, %s246
      %s264 = sphi 0, %s264
      %s266 = sphi 0, %s264
      %s267 = sphi 0, %s266
      %s281 = sphi 0, %s267
      %s285 = sphi 0, %s285
      %s287 = sphi 0, %s285
      %s288 = sphi 0, %s287
      %s302 = sphi 0, %s288
      %s306 = sphi 0, %s306
      %s308 = sphi 0, %s306
      %s309 = sphi 0, %s308
      %s323 = sphi 0, %s309
      %s327 = sphi 0, %s327
      %s329 = sphi 0, %s327
      %s330 = sphi 0, %s329
      %s344 = sphi 0, %s330
      %s348 = sphi 0, %s348
      %s350 = sphi 0, %s348
      %s351 = sphi 0, %s350
      %s365 = sphi 0, %s351
      %s369 = sphi 0, %s369
      %s371 = sphi 0, %s369
      %s372 = sphi 0, %s371
      %s386 = sphi 0, %s372
      %s390 = sphi 0, %s390
      %s392 = sphi 0, %s390
      %s393 = sphi 0, %s392
      %s407 = sphi 0, %s393
      %s411 = sphi 0, %s411
      %s413 = sphi 0, %s411
      %s414 = sphi 0, %s413
      %s428 = sphi 0, %s414
      %s434 = sphi 0, %s436
      %s437 = sphi 0, %s434
      %s438 = sphi 0, %s437
      %s454 = sphi 0, %s438
    $region4: #{tpu_custom_call.1} parent=1 // loop_header_branch
      %39 = sbr.rel (%p37) target = $region8
    $region5: #{tpu_custom_call.1} parent=1 // loop_body
      %s41 = ssub.s32 %s36, 1
      %s42 = ssub.s32 %s36, 2
      %s43 = sadd.s32 %s36, 1
      %s44 = ssub.s32 %s36, %s43
      %p45 = scmp.eq.s32.totalorder %s44, 0
      %s47 = sadd.s32 %s46, 1
      %s48 = scalar_select %p45, %s46, %s47
      %p51 = pneg %p45
      %p52 = scmp.eq.s32.totalorder %s36, 1
      %p53 = por %p51, %p52
      %p54 = scmp.ne.s32.totalorder %s46, %s49
      %p55 = scmp.eq.s32.totalorder %s36, 0
      %p56 = por %p54, %p55
      %p57 = scmp.ne.s32.totalorder %s46, %s49
      %p58 = scmp.eq.s32.totalorder %s41, 1
      %p59 = por %p57, %p58
      %p60 = scmp.ne.s32.totalorder %s49, %s50
      %p61 = scmp.eq.s32.totalorder %s41, 0
      %p62 = por %p60, %p61
      %p63 = scmp.ne.s32.totalorder %s49, %s50
      %p64 = scmp.eq.s32.totalorder %s42, 1
      %p65 = por %p63, %p64
      %p67 = scmp.ne.s32.totalorder %s50, %s66
      %p68 = scmp.eq.s32.totalorder %s42, 0
      %p69 = por %p67, %p68
      %s70 = ssub.s32 %s36, %s43
      %p71 = scmp.eq.s32.totalorder %s70, 0
      %s73 = sadd.s32 %s72, 1
      %s74 = scalar_select %p71, %s72, %s73
      %p77 = pneg %p71
      %p78 = scmp.eq.s32.totalorder %s36, 1
      %p79 = por %p77, %p78
      %p80 = scmp.ne.s32.totalorder %s72, %s75
      %p81 = scmp.eq.s32.totalorder %s36, 0
      %p82 = por %p80, %p81
      %p83 = scmp.ne.s32.totalorder %s72, %s75
      %p84 = scmp.eq.s32.totalorder %s41, 1
      %p85 = por %p83, %p84
      %p86 = scmp.ne.s32.totalorder %s75, %s76
      %p87 = scmp.eq.s32.totalorder %s41, 0
      %p88 = por %p86, %p87
      %p89 = scmp.ne.s32.totalorder %s75, %s76
      %p90 = scmp.eq.s32.totalorder %s42, 1
      %p91 = por %p89, %p90
      %p93 = scmp.ne.s32.totalorder %s76, %s92
      %p94 = scmp.eq.s32.totalorder %s42, 0
      %p95 = por %p93, %p94
      %s97 = sadd.s32 %s96, 1
      %p100 = scmp.eq.s32.totalorder %s36, 1
      %p101 = scmp.ne.s32.totalorder %s96, %s98
      %p102 = scmp.eq.s32.totalorder %s36, 0
      %p103 = por %p101, %p102
      %p104 = scmp.ne.s32.totalorder %s96, %s98
      %p105 = scmp.eq.s32.totalorder %s41, 1
      %p106 = por %p104, %p105
      %p107 = scmp.ne.s32.totalorder %s98, %s99
      %p108 = scmp.eq.s32.totalorder %s41, 0
      %p109 = por %p107, %p108
      %p110 = scmp.ne.s32.totalorder %s98, %s99
      %p111 = scmp.eq.s32.totalorder %s42, 1
      %p112 = por %p110, %p111
      %p114 = scmp.ne.s32.totalorder %s99, %s113
      %p115 = scmp.eq.s32.totalorder %s42, 0
      %p116 = por %p114, %p115
      %s118 = sadd.s32 %s117, 1
      %p121 = scmp.eq.s32.totalorder %s36, 1
      %p122 = scmp.ne.s32.totalorder %s117, %s119
      %p123 = scmp.eq.s32.totalorder %s36, 0
      %p124 = por %p122, %p123
      %p125 = scmp.ne.s32.totalorder %s117, %s119
      %p126 = scmp.eq.s32.totalorder %s41, 1
      %p127 = por %p125, %p126
      %p128 = scmp.ne.s32.totalorder %s119, %s120
      %p129 = scmp.eq.s32.totalorder %s41, 0
      %p130 = por %p128, %p129
      %p131 = scmp.ne.s32.totalorder %s119, %s120
      %p132 = scmp.eq.s32.totalorder %s42, 1
      %p133 = por %p131, %p132
      %p135 = scmp.ne.s32.totalorder %s120, %s134
      %p136 = scmp.eq.s32.totalorder %s42, 0
      %p137 = por %p135, %p136
      %s139 = sadd.s32 %s138, 1
      %p142 = scmp.eq.s32.totalorder %s36, 1
      %p143 = scmp.ne.s32.totalorder %s138, %s140
      %p144 = scmp.eq.s32.totalorder %s36, 0
      %p145 = por %p143, %p144
      %p146 = scmp.ne.s32.totalorder %s138, %s140
      %p147 = scmp.eq.s32.totalorder %s41, 1
      %p148 = por %p146, %p147
      %p149 = scmp.ne.s32.totalorder %s140, %s141
      %p150 = scmp.eq.s32.totalorder %s41, 0
      %p151 = por %p149, %p150
      %p152 = scmp.ne.s32.totalorder %s140, %s141
      %p153 = scmp.eq.s32.totalorder %s42, 1
      %p154 = por %p152, %p153
      %p156 = scmp.ne.s32.totalorder %s141, %s155
      %p157 = scmp.eq.s32.totalorder %s42, 0
      %p158 = por %p156, %p157
      %s160 = sadd.s32 %s159, 1
      %p163 = scmp.eq.s32.totalorder %s36, 1
      %p164 = scmp.ne.s32.totalorder %s159, %s161
      %p165 = scmp.eq.s32.totalorder %s36, 0
      %p166 = por %p164, %p165
      %p167 = scmp.ne.s32.totalorder %s159, %s161
      %p168 = scmp.eq.s32.totalorder %s41, 1
      %p169 = por %p167, %p168
      %p170 = scmp.ne.s32.totalorder %s161, %s162
      %p171 = scmp.eq.s32.totalorder %s41, 0
      %p172 = por %p170, %p171
      %p173 = scmp.ne.s32.totalorder %s161, %s162
      %p174 = scmp.eq.s32.totalorder %s42, 1
      %p175 = por %p173, %p174
      %p177 = scmp.ne.s32.totalorder %s162, %s176
      %p178 = scmp.eq.s32.totalorder %s42, 0
      %p179 = por %p177, %p178
      %s181 = sadd.s32 %s180, 1
      %p184 = scmp.eq.s32.totalorder %s36, 1
      %p185 = scmp.ne.s32.totalorder %s180, %s182
      %p186 = scmp.eq.s32.totalorder %s36, 0
      %p187 = por %p185, %p186
      %p188 = scmp.ne.s32.totalorder %s180, %s182
      %p189 = scmp.eq.s32.totalorder %s41, 1
      %p190 = por %p188, %p189
      %p191 = scmp.ne.s32.totalorder %s182, %s183
      %p192 = scmp.eq.s32.totalorder %s41, 0
      %p193 = por %p191, %p192
      %p194 = scmp.ne.s32.totalorder %s182, %s183
      %p195 = scmp.eq.s32.totalorder %s42, 1
      %p196 = por %p194, %p195
      %p198 = scmp.ne.s32.totalorder %s183, %s197
      %p199 = scmp.eq.s32.totalorder %s42, 0
      %p200 = por %p198, %p199
      %s202 = sadd.s32 %s201, 1
      %p205 = scmp.eq.s32.totalorder %s36, 1
      %p206 = scmp.ne.s32.totalorder %s201, %s203
      %p207 = scmp.eq.s32.totalorder %s36, 0
      %p208 = por %p206, %p207
      %p209 = scmp.ne.s32.totalorder %s201, %s203
      %p210 = scmp.eq.s32.totalorder %s41, 1
      %p211 = por %p209, %p210
      %p212 = scmp.ne.s32.totalorder %s203, %s204
      %p213 = scmp.eq.s32.totalorder %s41, 0
      %p214 = por %p212, %p213
      %p215 = scmp.ne.s32.totalorder %s203, %s204
      %p216 = scmp.eq.s32.totalorder %s42, 1
      %p217 = por %p215, %p216
      %p219 = scmp.ne.s32.totalorder %s204, %s218
      %p220 = scmp.eq.s32.totalorder %s42, 0
      %p221 = por %p219, %p220
      %s223 = sadd.s32 %s222, 1
      %p226 = scmp.eq.s32.totalorder %s36, 1
      %p227 = scmp.ne.s32.totalorder %s222, %s224
      %p228 = scmp.eq.s32.totalorder %s36, 0
      %p229 = por %p227, %p228
      %p230 = scmp.ne.s32.totalorder %s222, %s224
      %p231 = scmp.eq.s32.totalorder %s41, 1
      %p232 = por %p230, %p231
      %p233 = scmp.ne.s32.totalorder %s224, %s225
      %p234 = scmp.eq.s32.totalorder %s41, 0
      %p235 = por %p233, %p234
      %p236 = scmp.ne.s32.totalorder %s224, %s225
      %p237 = scmp.eq.s32.totalorder %s42, 1
      %p238 = por %p236, %p237
      %p240 = scmp.ne.s32.totalorder %s225, %s239
      %p241 = scmp.eq.s32.totalorder %s42, 0
      %p242 = por %p240, %p241
      %s244 = sadd.s32 %s243, 1
      %p247 = scmp.eq.s32.totalorder %s36, 1
      %p248 = scmp.ne.s32.totalorder %s243, %s245
      %p249 = scmp.eq.s32.totalorder %s36, 0
      %p250 = por %p248, %p249
      %p251 = scmp.ne.s32.totalorder %s243, %s245
      %p252 = scmp.eq.s32.totalorder %s41, 1
      %p253 = por %p251, %p252
      %p254 = scmp.ne.s32.totalorder %s245, %s246
      %p255 = scmp.eq.s32.totalorder %s41, 0
      %p256 = por %p254, %p255
      %p257 = scmp.ne.s32.totalorder %s245, %s246
      %p258 = scmp.eq.s32.totalorder %s42, 1
      %p259 = por %p257, %p258
      %p261 = scmp.ne.s32.totalorder %s246, %s260
      %p262 = scmp.eq.s32.totalorder %s42, 0
      %p263 = por %p261, %p262
      %s265 = sadd.s32 %s264, 1
      %p268 = scmp.eq.s32.totalorder %s36, 1
      %p269 = scmp.ne.s32.totalorder %s264, %s266
      %p270 = scmp.eq.s32.totalorder %s36, 0
      %p271 = por %p269, %p270
      %p272 = scmp.ne.s32.totalorder %s264, %s266
      %p273 = scmp.eq.s32.totalorder %s41, 1
      %p274 = por %p272, %p273
      %p275 = scmp.ne.s32.totalorder %s266, %s267
      %p276 = scmp.eq.s32.totalorder %s41, 0
      %p277 = por %p275, %p276
      %p278 = scmp.ne.s32.totalorder %s266, %s267
      %p279 = scmp.eq.s32.totalorder %s42, 1
      %p280 = por %p278, %p279
      %p282 = scmp.ne.s32.totalorder %s267, %s281
      %p283 = scmp.eq.s32.totalorder %s42, 0
      %p284 = por %p282, %p283
      %s286 = sadd.s32 %s285, 1
      %p289 = scmp.eq.s32.totalorder %s36, 1
      %p290 = scmp.ne.s32.totalorder %s285, %s287
      %p291 = scmp.eq.s32.totalorder %s36, 0
      %p292 = por %p290, %p291
      %p293 = scmp.ne.s32.totalorder %s285, %s287
      %p294 = scmp.eq.s32.totalorder %s41, 1
      %p295 = por %p293, %p294
      %p296 = scmp.ne.s32.totalorder %s287, %s288
      %p297 = scmp.eq.s32.totalorder %s41, 0
      %p298 = por %p296, %p297
      %p299 = scmp.ne.s32.totalorder %s287, %s288
      %p300 = scmp.eq.s32.totalorder %s42, 1
      %p301 = por %p299, %p300
      %p303 = scmp.ne.s32.totalorder %s288, %s302
      %p304 = scmp.eq.s32.totalorder %s42, 0
      %p305 = por %p303, %p304
      %s307 = sadd.s32 %s306, 1
      %p310 = scmp.eq.s32.totalorder %s36, 1
      %p311 = scmp.ne.s32.totalorder %s306, %s308
      %p312 = scmp.eq.s32.totalorder %s36, 0
      %p313 = por %p311, %p312
      %p314 = scmp.ne.s32.totalorder %s306, %s308
      %p315 = scmp.eq.s32.totalorder %s41, 1
      %p316 = por %p314, %p315
      %p317 = scmp.ne.s32.totalorder %s308, %s309
      %p318 = scmp.eq.s32.totalorder %s41, 0
      %p319 = por %p317, %p318
      %p320 = scmp.ne.s32.totalorder %s308, %s309
      %p321 = scmp.eq.s32.totalorder %s42, 1
      %p322 = por %p320, %p321
      %p324 = scmp.ne.s32.totalorder %s309, %s323
      %p325 = scmp.eq.s32.totalorder %s42, 0
      %p326 = por %p324, %p325
      %s328 = sadd.s32 %s327, 1
      %p331 = scmp.eq.s32.totalorder %s36, 1
      %p332 = scmp.ne.s32.totalorder %s327, %s329
      %p333 = scmp.eq.s32.totalorder %s36, 0
      %p334 = por %p332, %p333
      %p335 = scmp.ne.s32.totalorder %s327, %s329
      %p336 = scmp.eq.s32.totalorder %s41, 1
      %p337 = por %p335, %p336
      %p338 = scmp.ne.s32.totalorder %s329, %s330
      %p339 = scmp.eq.s32.totalorder %s41, 0
      %p340 = por %p338, %p339
      %p341 = scmp.ne.s32.totalorder %s329, %s330
      %p342 = scmp.eq.s32.totalorder %s42, 1
      %p343 = por %p341, %p342
      %p345 = scmp.ne.s32.totalorder %s330, %s344
      %p346 = scmp.eq.s32.totalorder %s42, 0
      %p347 = por %p345, %p346
      %s349 = sadd.s32 %s348, 1
      %p352 = scmp.eq.s32.totalorder %s36, 1
      %p353 = scmp.ne.s32.totalorder %s348, %s350
      %p354 = scmp.eq.s32.totalorder %s36, 0
      %p355 = por %p353, %p354
      %p356 = scmp.ne.s32.totalorder %s348, %s350
      %p357 = scmp.eq.s32.totalorder %s41, 1
      %p358 = por %p356, %p357
      %p359 = scmp.ne.s32.totalorder %s350, %s351
      %p360 = scmp.eq.s32.totalorder %s41, 0
      %p361 = por %p359, %p360
      %p362 = scmp.ne.s32.totalorder %s350, %s351
      %p363 = scmp.eq.s32.totalorder %s42, 1
      %p364 = por %p362, %p363
      %p366 = scmp.ne.s32.totalorder %s351, %s365
      %p367 = scmp.eq.s32.totalorder %s42, 0
      %p368 = por %p366, %p367
      %s370 = sadd.s32 %s369, 1
      %p373 = scmp.eq.s32.totalorder %s36, 1
      %p374 = scmp.ne.s32.totalorder %s369, %s371
      %p375 = scmp.eq.s32.totalorder %s36, 0
      %p376 = por %p374, %p375
      %p377 = scmp.ne.s32.totalorder %s369, %s371
      %p378 = scmp.eq.s32.totalorder %s41, 1
      %p379 = por %p377, %p378
      %p380 = scmp.ne.s32.totalorder %s371, %s372
      %p381 = scmp.eq.s32.totalorder %s41, 0
      %p382 = por %p380, %p381
      %p383 = scmp.ne.s32.totalorder %s371, %s372
      %p384 = scmp.eq.s32.totalorder %s42, 1
      %p385 = por %p383, %p384
      %p387 = scmp.ne.s32.totalorder %s372, %s386
      %p388 = scmp.eq.s32.totalorder %s42, 0
      %p389 = por %p387, %p388
      %s391 = sadd.s32 %s390, 1
      %p394 = scmp.eq.s32.totalorder %s36, 1
      %p395 = scmp.ne.s32.totalorder %s390, %s392
      %p396 = scmp.eq.s32.totalorder %s36, 0
      %p397 = por %p395, %p396
      %p398 = scmp.ne.s32.totalorder %s390, %s392
      %p399 = scmp.eq.s32.totalorder %s41, 1
      %p400 = por %p398, %p399
      %p401 = scmp.ne.s32.totalorder %s392, %s393
      %p402 = scmp.eq.s32.totalorder %s41, 0
      %p403 = por %p401, %p402
      %p404 = scmp.ne.s32.totalorder %s392, %s393
      %p405 = scmp.eq.s32.totalorder %s42, 1
      %p406 = por %p404, %p405
      %p408 = scmp.ne.s32.totalorder %s393, %s407
      %p409 = scmp.eq.s32.totalorder %s42, 0
      %p410 = por %p408, %p409
      %s412 = sadd.s32 %s411, 1
      %p415 = scmp.eq.s32.totalorder %s36, 1
      %p416 = scmp.ne.s32.totalorder %s411, %s413
      %p417 = scmp.eq.s32.totalorder %s36, 0
      %p418 = por %p416, %p417
      %p419 = scmp.ne.s32.totalorder %s411, %s413
      %p420 = scmp.eq.s32.totalorder %s41, 1
      %p421 = por %p419, %p420
      %p422 = scmp.ne.s32.totalorder %s413, %s414
      %p423 = scmp.eq.s32.totalorder %s41, 0
      %p424 = por %p422, %p423
      %p425 = scmp.ne.s32.totalorder %s413, %s414
      %p426 = scmp.eq.s32.totalorder %s42, 1
      %p427 = por %p425, %p426
      %p429 = scmp.ne.s32.totalorder %s414, %s428
      %p430 = scmp.eq.s32.totalorder %s42, 0
      %p431 = por %p429, %p430
      %s432 = ssub.s32 %s36, %s43
      %p433 = scmp.eq.s32.totalorder %s432, 0
      %s435 = sadd.s32 %s434, 1
      %s436 = scalar_select %p433, %s434, %s435
      %p439 = pneg %p433
      %p440 = scmp.eq.s32.totalorder %s36, 1
      %p441 = por %p439, %p440
      %p442 = scmp.ne.s32.totalorder %s434, %s437
      %p443 = scmp.eq.s32.totalorder %s36, 0
      %p444 = por %p442, %p443
      %p445 = scmp.ne.s32.totalorder %s434, %s437
      %p446 = scmp.eq.s32.totalorder %s41, 1
      %p447 = por %p445, %p446
      %p448 = scmp.ne.s32.totalorder %s437, %s438
      %p449 = scmp.eq.s32.totalorder %s41, 0
      %p450 = por %p448, %p449
      %p451 = scmp.ne.s32.totalorder %s437, %s438
      %p452 = scmp.eq.s32.totalorder %s42, 1
      %p453 = por %p451, %p452
      %p455 = scmp.ne.s32.totalorder %s438, %s454
      %p456 = scmp.eq.s32.totalorder %s42, 0
      %p457 = por %p455, %p456
      %p458 = scmp.le.s32.totalorder 1, %s36
      %p459 = scmp.lt.s32.totalorder %s36, 3
      %p460 = pnand %p458, %p459
      %p461 = pneg %p460
      // Predicated region
      $region9: #{tpu_custom_call.1} parent=5 // pred_check
        _
      $region10: #{tpu_custom_call.1} parent=5 // pred_check_branch
        %463 = sbr.rel (%p460) target = $region12
      $region11: #{tpu_custom_call.1} parent=5 // pred_region
        %s464 = ssub.s32 %s36, 1
        // Predicated region
        $region13: #{tpu_custom_call.1} parent=11 // pred_check
          %p465 = pneg %p109
        $region14: #{tpu_custom_call.1} parent=11 // pred_check_branch
          %467 = sbr.rel (%p465) target = $region16
        $region15: #{tpu_custom_call.1} parent=11 // pred_region
          %s469 = ssub.s32 2048, 2048
          %470 = vsyncadd [#allocation6], %s469
          %s471 = sshll.u32 [#allocation7], 4
          %s472 = int_to_ptr.vmem [resolvable:$true] %s471
          %477 = dma.hbm_to_vmem [thread:$0]  %s2, 2048, %s472, [#allocation6], 128, 128, 8
        $region16: #{tpu_custom_call.1} parent=11 // pred_fallthru
          _
        // Predicated region
        $region17: #{tpu_custom_call.1} parent=11 // pred_check
          %p478 = pneg %p130
        $region18: #{tpu_custom_call.1} parent=11 // pred_check_branch
          %480 = sbr.rel (%p478) target = $region20
        $region19: #{tpu_custom_call.1} parent=11 // pred_region
          %s482 = ssub.s32 2048, 2048
          %483 = vsyncadd [#allocation9], %s482
          %s484 = sshll.u32 [#allocation8], 4
          %s485 = int_to_ptr.vmem [resolvable:$true] %s484
          %490 = dma.hbm_to_vmem [thread:$0]  %s3, 2048, %s485, [#allocation9], 128, 128, 8
        $region20: #{tpu_custom_call.1} parent=11 // pred_fallthru
          _
        // Predicated region
        $region21: #{tpu_custom_call.1} parent=11 // pred_check
          %p491 = pneg %p151
        $region22: #{tpu_custom_call.1} parent=11 // pred_check_branch
          %493 = sbr.rel (%p491) target = $region24
        $region23: #{tpu_custom_call.1} parent=11 // pred_region
          %s495 = ssub.s32 2048, 2048
          %496 = vsyncadd [#allocation9], %s495
          %s497 = sshll.u32 [#allocation10], 4
          %s498 = int_to_ptr.vmem [resolvable:$true] %s497
          %503 = dma.hbm_to_vmem [thread:$0]  %s4, 2048, %s498, [#allocation9], 128, 128, 8
        $region24: #{tpu_custom_call.1} parent=11 // pred_fallthru
          _
        // Predicated region
        $region25: #{tpu_custom_call.1} parent=11 // pred_check
          %p504 = pneg %p172
        $region26: #{tpu_custom_call.1} parent=11 // pred_check_branch
          %506 = sbr.rel (%p504) target = $region28
        $region27: #{tpu_custom_call.1} parent=11 // pred_region
          _
        $region28: #{tpu_custom_call.1} parent=11 // pred_fallthru
          _
        // Predicated region
        $region29: #{tpu_custom_call.1} parent=11 // pred_check
          %p507 = pneg %p193
        $region30: #{tpu_custom_call.1} parent=11 // pred_check_branch
          %509 = sbr.rel (%p507) target = $region32
        $region31: #{tpu_custom_call.1} parent=11 // pred_region
          _
        $region32: #{tpu_custom_call.1} parent=11 // pred_fallthru
          _
        // Predicated region
        $region33: #{tpu_custom_call.1} parent=11 // pred_check
          %p510 = pneg %p214
        $region34: #{tpu_custom_call.1} parent=11 // pred_check_branch
          %512 = sbr.rel (%p510) target = $region36
        $region35: #{tpu_custom_call.1} parent=11 // pred_region
          _
        $region36: #{tpu_custom_call.1} parent=11 // pred_fallthru
          _
        // Predicated region
        $region37: #{tpu_custom_call.1} parent=11 // pred_check
          %p513 = pneg %p235
        $region38: #{tpu_custom_call.1} parent=11 // pred_check_branch
          %515 = sbr.rel (%p513) target = $region40
        $region39: #{tpu_custom_call.1} parent=11 // pred_region
          %s517 = ssub.s32 2048, 2048
          %518 = vsyncadd [#allocation12], %s517
          %s519 = sshll.u32 [#allocation11], 4
          %s520 = int_to_ptr.vmem [resolvable:$true] %s519
          %525 = dma.hbm_to_vmem [thread:$0]  %s8, 2048, %s520, [#allocation12], 128, 128, 8
        $region40: #{tpu_custom_call.1} parent=11 // pred_fallthru
          _
        // Predicated region
        $region41: #{tpu_custom_call.1} parent=11 // pred_check
          %p526 = pneg %p256
        $region42: #{tpu_custom_call.1} parent=11 // pred_check_branch
          %528 = sbr.rel (%p526) target = $region44
        $region43: #{tpu_custom_call.1} parent=11 // pred_region
          _
        $region44: #{tpu_custom_call.1} parent=11 // pred_fallthru
          _
        // Predicated region
        $region45: #{tpu_custom_call.1} parent=11 // pred_check
          %p529 = pneg %p277
        $region46: #{tpu_custom_call.1} parent=11 // pred_check_branch
          %531 = sbr.rel (%p529) target = $region48
        $region47: #{tpu_custom_call.1} parent=11 // pred_region
          _
        $region48: #{tpu_custom_call.1} parent=11 // pred_fallthru
          _
        // Predicated region
        $region49: #{tpu_custom_call.1} parent=11 // pred_check
          %p532 = pneg %p298
        $region50: #{tpu_custom_call.1} parent=11 // pred_check_branch
          %534 = sbr.rel (%p532) target = $region52
        $region51: #{tpu_custom_call.1} parent=11 // pred_region
          _
        $region52: #{tpu_custom_call.1} parent=11 // pred_fallthru
          _
        // Predicated region
        $region53: #{tpu_custom_call.1} parent=11 // pred_check
          %p535 = pneg %p319
        $region54: #{tpu_custom_call.1} parent=11 // pred_check_branch
          %537 = sbr.rel (%p535) target = $region56
        $region55: #{tpu_custom_call.1} parent=11 // pred_region
          %s539 = ssub.s32 4096, 4096
          %540 = vsyncadd [#allocation12], %s539
          %s541 = sshll.u32 [#allocation13], 4
          %s542 = int_to_ptr.vmem [resolvable:$true] %s541
          %547 = dma.hbm_to_vmem [thread:$0]  %s12, 4096, %s542, [#allocation12], 256, 256, 16
        $region56: #{tpu_custom_call.1} parent=11 // pred_fallthru
          _
        // Predicated region
        $region57: #{tpu_custom_call.1} parent=11 // pred_check
          %p548 = pneg %p340
        $region58: #{tpu_custom_call.1} parent=11 // pred_check_branch
          %550 = sbr.rel (%p548) target = $region60
        $region59: #{tpu_custom_call.1} parent=11 // pred_region
          _
        $region60: #{tpu_custom_call.1} parent=11 // pred_fallthru
          _
        // Predicated region
        $region61: #{tpu_custom_call.1} parent=11 // pred_check
          %p551 = pneg %p361
        $region62: #{tpu_custom_call.1} parent=11 // pred_check_branch
          %553 = sbr.rel (%p551) target = $region64
        $region63: #{tpu_custom_call.1} parent=11 // pred_region
          %s555 = ssub.s32 4096, 4096
          %556 = vsyncadd [#allocation15], %s555
          %s557 = sshll.u32 [#allocation14], 4
          %s558 = int_to_ptr.vmem [resolvable:$true] %s557
          %563 = dma.hbm_to_vmem [thread:$0]  %s14, 4096, %s558, [#allocation15], 128, 128, 8
        $region64: #{tpu_custom_call.1} parent=11 // pred_fallthru
          _
        // Predicated region
        $region65: #{tpu_custom_call.1} parent=11 // pred_check
          %p564 = pneg %p382
        $region66: #{tpu_custom_call.1} parent=11 // pred_check_branch
          %566 = sbr.rel (%p564) target = $region68
        $region67: #{tpu_custom_call.1} parent=11 // pred_region
          _
        $region68: #{tpu_custom_call.1} parent=11 // pred_fallthru
          _
        // Predicated region
        $region69: #{tpu_custom_call.1} parent=11 // pred_check
          %p567 = pneg %p403
        $region70: #{tpu_custom_call.1} parent=11 // pred_check_branch
          %569 = sbr.rel (%p567) target = $region72
        $region71: #{tpu_custom_call.1} parent=11 // pred_region
          _
        $region72: #{tpu_custom_call.1} parent=11 // pred_fallthru
          _
        // Predicated region
        $region73: #{tpu_custom_call.1} parent=11 // pred_check
          %p570 = pneg %p424
        $region74: #{tpu_custom_call.1} parent=11 // pred_check_branch
          %572 = sbr.rel (%p570) target = $region76
        $region75: #{tpu_custom_call.1} parent=11 // pred_region
          _
        $region76: #{tpu_custom_call.1} parent=11 // pred_fallthru
          _
      $region12: #{tpu_custom_call.1} parent=5 // pred_fallthru
        _
      %p573 = scmp.lt.s32.totalorder %s36, 2
      // Predicated region
      $region77: #{tpu_custom_call.1} parent=5 // pred_check
        %p574 = pneg %p573
      $region78: #{tpu_custom_call.1} parent=5 // pred_check_branch
        %576 = sbr.rel (%p574) target = $region80
      $region79: #{tpu_custom_call.1} parent=5 // pred_region
        // Predicated region
        $region81: #{tpu_custom_call.1} parent=79 // pred_check
          %p577 = pneg %p56
        $region82: #{tpu_custom_call.1} parent=79 // pred_check_branch
          %579 = sbr.rel (%p577) target = $region84
        $region83: #{tpu_custom_call.1} parent=79 // pred_region
          %s580 = sand.u32 %s46, 1
          %s581 = scalar_lea.sflag [#allocation3], %s580
          %s582 = sand.u32 %s46, 1
          %s583 = smul.addr %s582, 16
          %s584 = scalar_lea.vmem [#allocation2], %s583
          %s586 = ssub.s32 256, 256
          %587 = vsyncadd %s581, %s586
          %s588 = smul.addr %s36, 2
          %s589 = smul.addr %s588, 128
          %s590 = scalar_lea.hbm %s0, %s589
          %s591 = sshll.u32 %s584, 4
          %s592 = int_to_ptr.vmem [resolvable:$true] %s591
          %597 = dma.hbm_to_vmem [thread:$0]  %s590, 256, %s592, %s581, 128, 128, 8
        $region84: #{tpu_custom_call.1} parent=79 // pred_fallthru
          _
        // Predicated region
        $region85: #{tpu_custom_call.1} parent=79 // pred_check
          %p598 = pneg %p82
        $region86: #{tpu_custom_call.1} parent=79 // pred_check_branch
          %600 = sbr.rel (%p598) target = $region88
        $region87: #{tpu_custom_call.1} parent=79 // pred_region
          %s601 = sand.u32 %s36, 1
          %s602 = scalar_lea.sflag [#allocation6], %s601
          %s603 = sand.u32 %s72, 1
          %s604 = smul.addr %s603, 16
          %s605 = scalar_lea.vmem [#allocation5], %s604
          %s607 = ssub.s32 256, 256
          %608 = vsyncadd %s602, %s607
          %s609 = smul.addr %s36, 2
          %s610 = smul.addr %s609, 128
          %s611 = scalar_lea.hbm %s1, %s610
          %s612 = sshll.u32 %s605, 4
          %s613 = int_to_ptr.vmem [resolvable:$true] %s612
          %618 = dma.hbm_to_vmem [thread:$0]  %s611, 256, %s613, %s602, 128, 128, 8
        $region88: #{tpu_custom_call.1} parent=79 // pred_fallthru
          _
      $region80: #{tpu_custom_call.1} parent=5 // pred_fallthru
        _
      %p619 = scmp.le.s32.totalorder 1, %s36
      %p620 = scmp.lt.s32.totalorder %s36, 3
      %p621 = pnand %p619, %p620
      %p622 = pneg %p621
      // Predicated region
      $region89: #{tpu_custom_call.1} parent=5 // pred_check
        _
      $region90: #{tpu_custom_call.1} parent=5 // pred_check_branch
        %624 = sbr.rel (%p621) target = $region92
      $region91: #{tpu_custom_call.1} parent=5 // pred_region
        %s625 = ssub.s32 %s36, 1
        %s626 = sand.u32 %s49, 1
        %s627 = scalar_lea.sflag [#allocation3], %s626
        %s628 = sand.u32 %s49, 1
        %s629 = smul.addr %s628, 16
        %s630 = scalar_lea.vmem [#allocation2], %s629
        // Predicated region
        $region93: #{tpu_custom_call.1} parent=91 // pred_check
          %p631 = pneg %p62
        $region94: #{tpu_custom_call.1} parent=91 // pred_check_branch
          %633 = sbr.rel (%p631) target = $region96
        $region95: #{tpu_custom_call.1} parent=91 // pred_region
          %634 = dma.done %s627, 256
        $region96: #{tpu_custom_call.1} parent=91 // pred_fallthru
          _
        %s635 = sand.u32 %s41, 1
        %s636 = scalar_lea.sflag [#allocation6], %s635
        %s637 = sand.u32 %s75, 1
        %s638 = smul.addr %s637, 16
        %s639 = scalar_lea.vmem [#allocation5], %s638
        // Predicated region
        $region97: #{tpu_custom_call.1} parent=91 // pred_check
          %p640 = pneg %p88
        $region98: #{tpu_custom_call.1} parent=91 // pred_check_branch
          %642 = sbr.rel (%p640) target = $region100
        $region99: #{tpu_custom_call.1} parent=91 // pred_region
          %643 = dma.done %s636, 256
        $region100: #{tpu_custom_call.1} parent=91 // pred_fallthru
          _
        // Predicated region
        $region101: #{tpu_custom_call.1} parent=91 // pred_check
          %p644 = pneg %p109
        $region102: #{tpu_custom_call.1} parent=91 // pred_check_branch
          %646 = sbr.rel (%p644) target = $region104
        $region103: #{tpu_custom_call.1} parent=91 // pred_region
          %647 = dma.done [#allocation6], 2048
        $region104: #{tpu_custom_call.1} parent=91 // pred_fallthru
          _
        // Predicated region
        $region105: #{tpu_custom_call.1} parent=91 // pred_check
          %p648 = pneg %p130
        $region106: #{tpu_custom_call.1} parent=91 // pred_check_branch
          %650 = sbr.rel (%p648) target = $region108
        $region107: #{tpu_custom_call.1} parent=91 // pred_region
          %651 = dma.done [#allocation9], 2048
        $region108: #{tpu_custom_call.1} parent=91 // pred_fallthru
          _
        // Predicated region
        $region109: #{tpu_custom_call.1} parent=91 // pred_check
          %p652 = pneg %p151
        $region110: #{tpu_custom_call.1} parent=91 // pred_check_branch
          %654 = sbr.rel (%p652) target = $region112
        $region111: #{tpu_custom_call.1} parent=91 // pred_region
          %655 = dma.done [#allocation9], 2048
        $region112: #{tpu_custom_call.1} parent=91 // pred_fallthru
          _
        // Predicated region
        $region113: #{tpu_custom_call.1} parent=91 // pred_check
          %p656 = pneg %p235
        $region114: #{tpu_custom_call.1} parent=91 // pred_check_branch
          %658 = sbr.rel (%p656) target = $region116
        $region115: #{tpu_custom_call.1} parent=91 // pred_region
          %659 = dma.done [#allocation12], 2048
        $region116: #{tpu_custom_call.1} parent=91 // pred_fallthru
          _
        // Predicated region
        $region117: #{tpu_custom_call.1} parent=91 // pred_check
          %p660 = pneg %p319
        $region118: #{tpu_custom_call.1} parent=91 // pred_check_branch
          %662 = sbr.rel (%p660) target = $region120
        $region119: #{tpu_custom_call.1} parent=91 // pred_region
          %663 = dma.done [#allocation12], 4096
        $region120: #{tpu_custom_call.1} parent=91 // pred_fallthru
          _
        // Predicated region
        $region121: #{tpu_custom_call.1} parent=91 // pred_check
          %p664 = pneg %p361
        $region122: #{tpu_custom_call.1} parent=91 // pred_check_branch
          %666 = sbr.rel (%p664) target = $region124
        $region123: #{tpu_custom_call.1} parent=91 // pred_region
          %667 = dma.done [#allocation15], 4096
        $region124: #{tpu_custom_call.1} parent=91 // pred_fallthru
          _
        %s668 = sand.u32 %s49, 1
        %s669 = scalar_lea.sflag [#allocation3], %s668
        %s670 = sand.u32 %s49, 1
        %s671 = smul.addr %s670, 16
        %s672 = scalar_lea.vmem [#allocation2], %s671
        %p673 = pneg %p62
        %p674 = pneg %p59
        %s675 = sand.u32 %s41, 1
        %s676 = scalar_lea.sflag [#allocation6], %s675
        %s677 = sand.u32 %s75, 1
        %s678 = smul.addr %s677, 16
        %s679 = scalar_lea.vmem [#allocation5], %s678
        %p680 = pneg %p88
        %p681 = pneg %p85
        %p682 = pneg %p109
        %p683 = pneg %p106
        %p684 = pneg %p130
        %p685 = pneg %p127
        %p686 = pneg %p151
        %p687 = pneg %p148
        %p688 = pneg %p172
        %p689 = pneg %p169
        %p690 = pneg %p193
        %p691 = pneg %p190
        %p692 = pneg %p214
        %p693 = pneg %p211
        %p694 = pneg %p235
        %p695 = pneg %p232
        %p696 = pneg %p256
        %p697 = pneg %p253
        %p698 = pneg %p277
        %p699 = pneg %p274
        %p700 = pneg %p298
        %p701 = pneg %p295
        %p702 = pneg %p319
        %p703 = pneg %p316
        %p704 = pneg %p340
        %p705 = pneg %p337
        %p706 = pneg %p361
        %p707 = pneg %p358
        %p708 = pneg %p382
        %p709 = pneg %p379
        %p710 = pneg %p403
        %p711 = pneg %p400
        %p712 = pneg %p424
        %p713 = pneg %p421
        %p714 = pneg %p450
        %p715 = pneg %p447
        %s716 = sand.u32 %s437, 1
        %s717 = scalar_lea.sflag [#allocation4], %s716
        %s718 = sand.u32 %s437, 1
        %s719 = smul.addr %s718, 16
        %s720 = scalar_lea.vmem [#allocation16], %s719
        %v721 = vld [vmem:[%s630] sm:$0xff]
        %v722 = vld [vmem:[%s630 + $0x8] sm:$0xff]
        %v723 = vld [vmem:[%s639] sm:$0xff]
        %v724 = vld [vmem:[%s639 + $0x8] sm:$0xff]
        %v725 = vadd.f32 %v721, %v723
        %v726 = vadd.f32 %v722, %v724
        %v727 = vld [vmem:[#allocation7] sm:$0xff]
        %v728 = vld [vmem:[#allocation7 + $0x8] sm:$0xff]
        %v729 = vld [vmem:[#allocation7 + $0x10] sm:$0xff]
        %v730 = vld [vmem:[#allocation7 + $0x18] sm:$0xff]
        %v731 = vld [vmem:[#allocation7 + $0x20] sm:$0xff]
        %v732 = vld [vmem:[#allocation7 + $0x28] sm:$0xff]
        %v733 = vld [vmem:[#allocation7 + $0x30] sm:$0xff]
        %v734 = vld [vmem:[#allocation7 + $0x38] sm:$0xff]
        %v735 = vld [vmem:[#allocation7 + $0x40] sm:$0xff]
        %v736 = vld [vmem:[#allocation7 + $0x48] sm:$0xff]
        %v737 = vld [vmem:[#allocation7 + $0x50] sm:$0xff]
        %v738 = vld [vmem:[#allocation7 + $0x58] sm:$0xff]
        %v739 = vld [vmem:[#allocation7 + $0x60] sm:$0xff]
        %v740 = vld [vmem:[#allocation7 + $0x68] sm:$0xff]
        %v741 = vld [vmem:[#allocation7 + $0x70] sm:$0xff]
        %v742 = vld [vmem:[#allocation7 + $0x78] sm:$0xff]
        %v743 = vld [vmem:[%s5] sm:$0x1]
        %v745 = vlaneseq
        %v746 = vshrl.u32 %v745, 7
        %v747 = vsub.s32 0, %v746
        %v748 = vrot.slane %v743, %v747
        %750 = vmatprep.subr.mxu0 0.0
        %751 = vmatpush1.msra.mxu0 %v742
        %752 = vmatprep.subr.mxu0 0.0
        %753 = vmatpush1.msra.mxu0 %v741
        %754 = vmatprep.subr.mxu0 0.0
        %755 = vmatpush1.msra.mxu0 %v740
        %756 = vmatprep.subr.mxu0 0.0
        %757 = vmatpush1.msra.mxu0 %v739
        %758 = vmatprep.subr.mxu0 0.0
        %759 = vmatpush1.msra.mxu0 %v738
        %760 = vmatprep.subr.mxu0 0.0
        %761 = vmatpush1.msra.mxu0 %v737
        %762 = vmatprep.subr.mxu0 0.0
        %763 = vmatpush1.msra.mxu0 %v736
        %764 = vmatprep.subr.mxu0 0.0
        %765 = vmatpush1.msra.mxu0 %v735
        %766 = vmatprep.subr.mxu0 0.0
        %767 = vmatpush1.msra.mxu0 %v734
        %768 = vmatprep.subr.mxu0 0.0
        %769 = vmatpush1.msra.mxu0 %v733
        %770 = vmatprep.subr.mxu0 0.0
        %771 = vmatpush1.msra.mxu0 %v732
        %772 = vmatprep.subr.mxu0 0.0
        %773 = vmatpush1.msra.mxu0 %v731
        %774 = vmatprep.subr.mxu0 0.0
        %775 = vmatpush1.msra.mxu0 %v730
        %776 = vmatprep.subr.mxu0 0.0
        %777 = vmatpush1.msra.mxu0 %v729
        %778 = vmatprep.subr.mxu0 0.0
        %779 = vmatpush1.msra.mxu0 %v728
        %780 = vmatprep.subr.mxu0 0.0
        %781 = vmatpush1.msra.mxu0 %v727
        %782 = vmatprep.subr.mxu0 0.0
        %783 = vmatpush2.msra.mxu0 0.0
        %784 = vmatprep.subr.mxu0 0.0
        %785 = vmatpush2.msra.mxu0 0.0
        %786 = vmatprep.subr.mxu0 0.0
        %787 = vmatpush2.msra.mxu0 0.0
        %788 = vmatprep.subr.mxu0 0.0
        %789 = vmatpush2.msra.mxu0 0.0
        %790 = vmatprep.subr.mxu0 0.0
        %791 = vmatpush2.msra.mxu0 0.0
        %792 = vmatprep.subr.mxu0 0.0
        %793 = vmatpush2.msra.mxu0 0.0
        %794 = vmatprep.subr.mxu0 0.0
        %795 = vmatpush2.msra.mxu0 0.0
        %796 = vmatprep.subr.mxu0 0.0
        %797 = vmatpush2.msra.mxu0 0.0
        %798 = vmatprep.subr.mxu0 0.0
        %799 = vmatpush2.msra.mxu0 0.0
        %800 = vmatprep.subr.mxu0 0.0
        %801 = vmatpush2.msra.mxu0 0.0
        %802 = vmatprep.subr.mxu0 0.0
        %803 = vmatpush2.msra.mxu0 0.0
        %804 = vmatprep.subr.mxu0 0.0
        %805 = vmatpush2.msra.mxu0 0.0
        %806 = vmatprep.subr.mxu0 0.0
        %807 = vmatpush2.msra.mxu0 0.0
        %808 = vmatprep.subr.mxu0 0.0
        %809 = vmatpush2.msra.mxu0 0.0
        %810 = vmatprep.subr.mxu0 0.0
        %811 = vmatpush2.msra.mxu0 0.0
        %812 = vmatprep.subr.mxu0 0.0
        %813 = vmatpush2.msra.mxu0 0.0
        %814 = vmatprep.mubr.f32.mxu0 0.0
        %815 = vmatmul.mubr.f32.gmra.mxu0 %v725
        %v816 = vpop.f32.mrf.mxu0
        %v817 = vadd.f32 %v748, %v816
        %v818 = vpop.f32.mrf.mxu0
        %819 = vmatprep.mubr.f32.mxu0 0.0
        %820 = vmatmul.mubr.f32.gmra.mxu0 %v726
        %v821 = vpop.f32.mrf.mxu0
        %v822 = vadd.f32 %v748, %v821
        %v823 = vpop.f32.mrf.mxu0
        %824 = vdwg.mxu0
        %v825 = vld [vmem:[#allocation8] sm:$0xff]
        %v826 = vld [vmem:[#allocation8 + $0x8] sm:$0xff]
        %v827 = vld [vmem:[#allocation8 + $0x10] sm:$0xff]
        %v828 = vld [vmem:[#allocation8 + $0x18] sm:$0xff]
        %v829 = vld [vmem:[#allocation8 + $0x20] sm:$0xff]
        %v830 = vld [vmem:[#allocation8 + $0x28] sm:$0xff]
        %v831 = vld [vmem:[#allocation8 + $0x30] sm:$0xff]
        %v832 = vld [vmem:[#allocation8 + $0x38] sm:$0xff]
        %v833 = vld [vmem:[#allocation8 + $0x40] sm:$0xff]
        %v834 = vld [vmem:[#allocation8 + $0x48] sm:$0xff]
        %v835 = vld [vmem:[#allocation8 + $0x50] sm:$0xff]
        %v836 = vld [vmem:[#allocation8 + $0x58] sm:$0xff]
        %v837 = vld [vmem:[#allocation8 + $0x60] sm:$0xff]
        %v838 = vld [vmem:[#allocation8 + $0x68] sm:$0xff]
        %v839 = vld [vmem:[#allocation8 + $0x70] sm:$0xff]
        %v840 = vld [vmem:[#allocation8 + $0x78] sm:$0xff]
        %v841 = vld [vmem:[%s6] sm:$0x1]
        %v843 = vlaneseq
        %v844 = vshrl.u32 %v843, 7
        %v845 = vsub.s32 0, %v844
        %v846 = vrot.slane %v841, %v845
        %848 = vmatprep.subr.mxu0 0.0
        %849 = vmatpush1.msra.mxu0 %v840
        %850 = vmatprep.subr.mxu0 0.0
        %851 = vmatpush1.msra.mxu0 %v839
        %852 = vmatprep.subr.mxu0 0.0
        %853 = vmatpush1.msra.mxu0 %v838
        %854 = vmatprep.subr.mxu0 0.0
        %855 = vmatpush1.msra.mxu0 %v837
        %856 = vmatprep.subr.mxu0 0.0
        %857 = vmatpush1.msra.mxu0 %v836
        %858 = vmatprep.subr.mxu0 0.0
        %859 = vmatpush1.msra.mxu0 %v835
        %860 = vmatprep.subr.mxu0 0.0
        %861 = vmatpush1.msra.mxu0 %v834
        %862 = vmatprep.subr.mxu0 0.0
        %863 = vmatpush1.msra.mxu0 %v833
        %864 = vmatprep.subr.mxu0 0.0
        %865 = vmatpush1.msra.mxu0 %v832
        %866 = vmatprep.subr.mxu0 0.0
        %867 = vmatpush1.msra.mxu0 %v831
        %868 = vmatprep.subr.mxu0 0.0
        %869 = vmatpush1.msra.mxu0 %v830
        %870 = vmatprep.subr.mxu0 0.0
        %871 = vmatpush1.msra.mxu0 %v829
        %872 = vmatprep.subr.mxu0 0.0
        %873 = vmatpush1.msra.mxu0 %v828
        %874 = vmatprep.subr.mxu0 0.0
        %875 = vmatpush1.msra.mxu0 %v827
        %876 = vmatprep.subr.mxu0 0.0
        %877 = vmatpush1.msra.mxu0 %v826
        %878 = vmatprep.subr.mxu0 0.0
        %879 = vmatpush1.msra.mxu0 %v825
        %880 = vmatprep.subr.mxu0 0.0
        %881 = vmatpush2.msra.mxu0 0.0
        %882 = vmatprep.subr.mxu0 0.0
        %883 = vmatpush2.msra.mxu0 0.0
        %884 = vmatprep.subr.mxu0 0.0
        %885 = vmatpush2.msra.mxu0 0.0
        %886 = vmatprep.subr.mxu0 0.0
        %887 = vmatpush2.msra.mxu0 0.0
        %888 = vmatprep.subr.mxu0 0.0
        %889 = vmatpush2.msra.mxu0 0.0
        %890 = vmatprep.subr.mxu0 0.0
        %891 = vmatpush2.msra.mxu0 0.0
        %892 = vmatprep.subr.mxu0 0.0
        %893 = vmatpush2.msra.mxu0 0.0
        %894 = vmatprep.subr.mxu0 0.0
        %895 = vmatpush2.msra.mxu0 0.0
        %896 = vmatprep.subr.mxu0 0.0
        %897 = vmatpush2.msra.mxu0 0.0
        %898 = vmatprep.subr.mxu0 0.0
        %899 = vmatpush2.msra.mxu0 0.0
        %900 = vmatprep.subr.mxu0 0.0
        %901 = vmatpush2.msra.mxu0 0.0
        %902 = vmatprep.subr.mxu0 0.0
        %903 = vmatpush2.msra.mxu0 0.0
        %904 = vmatprep.subr.mxu0 0.0
        %905 = vmatpush2.msra.mxu0 0.0
        %906 = vmatprep.subr.mxu0 0.0
        %907 = vmatpush2.msra.mxu0 0.0
        %908 = vmatprep.subr.mxu0 0.0
        %909 = vmatpush2.msra.mxu0 0.0
        %910 = vmatprep.subr.mxu0 0.0
        %911 = vmatpush2.msra.mxu0 0.0
        %912 = vmatprep.mubr.f32.mxu0 0.0
        %913 = vmatmul.mubr.f32.gmra.mxu0 %v725
        %v914 = vpop.f32.mrf.mxu0
        %v915 = vadd.f32 %v846, %v914
        %v916 = vpop.f32.mrf.mxu0
        %917 = vmatprep.mubr.f32.mxu0 0.0
        %918 = vmatmul.mubr.f32.gmra.mxu0 %v726
        %v919 = vpop.f32.mrf.mxu0
        %v920 = vadd.f32 %v846, %v919
        %v921 = vpop.f32.mrf.mxu0
        %922 = vdwg.mxu0
        %v923 = vld [vmem:[#allocation10] sm:$0xff]
        %v924 = vld [vmem:[#allocation10 + $0x8] sm:$0xff]
        %v925 = vld [vmem:[#allocation10 + $0x10] sm:$0xff]
        %v926 = vld [vmem:[#allocation10 + $0x18] sm:$0xff]
        %v927 = vld [vmem:[#allocation10 + $0x20] sm:$0xff]
        %v928 = vld [vmem:[#allocation10 + $0x28] sm:$0xff]
        %v929 = vld [vmem:[#allocation10 + $0x30] sm:$0xff]
        %v930 = vld [vmem:[#allocation10 + $0x38] sm:$0xff]
        %v931 = vld [vmem:[#allocation10 + $0x40] sm:$0xff]
        %v932 = vld [vmem:[#allocation10 + $0x48] sm:$0xff]
        %v933 = vld [vmem:[#allocation10 + $0x50] sm:$0xff]
        %v934 = vld [vmem:[#allocation10 + $0x58] sm:$0xff]
        %v935 = vld [vmem:[#allocation10 + $0x60] sm:$0xff]
        %v936 = vld [vmem:[#allocation10 + $0x68] sm:$0xff]
        %v937 = vld [vmem:[#allocation10 + $0x70] sm:$0xff]
        %v938 = vld [vmem:[#allocation10 + $0x78] sm:$0xff]
        %v939 = vld [vmem:[%s7] sm:$0x1]
        %v941 = vlaneseq
        %v942 = vshrl.u32 %v941, 7
        %v943 = vsub.s32 0, %v942
        %v944 = vrot.slane %v939, %v943
        %946 = vmatprep.subr.mxu0 0.0
        %947 = vmatpush1.msra.mxu0 %v938
        %948 = vmatprep.subr.mxu0 0.0
        %949 = vmatpush1.msra.mxu0 %v937
        %950 = vmatprep.subr.mxu0 0.0
        %951 = vmatpush1.msra.mxu0 %v936
        %952 = vmatprep.subr.mxu0 0.0
        %953 = vmatpush1.msra.mxu0 %v935
        %954 = vmatprep.subr.mxu0 0.0
        %955 = vmatpush1.msra.mxu0 %v934
        %956 = vmatprep.subr.mxu0 0.0
        %957 = vmatpush1.msra.mxu0 %v933
        %958 = vmatprep.subr.mxu0 0.0
        %959 = vmatpush1.msra.mxu0 %v932
        %960 = vmatprep.subr.mxu0 0.0
        %961 = vmatpush1.msra.mxu0 %v931
        %962 = vmatprep.subr.mxu0 0.0
        %963 = vmatpush1.msra.mxu0 %v930
        %964 = vmatprep.subr.mxu0 0.0
        %965 = vmatpush1.msra.mxu0 %v929
        %966 = vmatprep.subr.mxu0 0.0
        %967 = vmatpush1.msra.mxu0 %v928
        %968 = vmatprep.subr.mxu0 0.0
        %969 = vmatpush1.msra.mxu0 %v927
        %970 = vmatprep.subr.mxu0 0.0
        %971 = vmatpush1.msra.mxu0 %v926
        %972 = vmatprep.subr.mxu0 0.0
        %973 = vmatpush1.msra.mxu0 %v925
        %974 = vmatprep.subr.mxu0 0.0
        %975 = vmatpush1.msra.mxu0 %v924
        %976 = vmatprep.subr.mxu0 0.0
        %977 = vmatpush1.msra.mxu0 %v923
        %978 = vmatprep.subr.mxu0 0.0
        %979 = vmatpush2.msra.mxu0 0.0
        %980 = vmatprep.subr.mxu0 0.0
        %981 = vmatpush2.msra.mxu0 0.0
        %982 = vmatprep.subr.mxu0 0.0
        %983 = vmatpush2.msra.mxu0 0.0
        %984 = vmatprep.subr.mxu0 0.0
        %985 = vmatpush2.msra.mxu0 0.0
        %986 = vmatprep.subr.mxu0 0.0
        %987 = vmatpush2.msra.mxu0 0.0
        %988 = vmatprep.subr.mxu0 0.0
        %989 = vmatpush2.msra.mxu0 0.0
        %990 = vmatprep.subr.mxu0 0.0
        %991 = vmatpush2.msra.mxu0 0.0
        %992 = vmatprep.subr.mxu0 0.0
        %993 = vmatpush2.msra.mxu0 0.0
        %994 = vmatprep.subr.mxu0 0.0
        %995 = vmatpush2.msra.mxu0 0.0
        %996 = vmatprep.subr.mxu0 0.0
        %997 = vmatpush2.msra.mxu0 0.0
        %998 = vmatprep.subr.mxu0 0.0
        %999 = vmatpush2.msra.mxu0 0.0
        %1000 = vmatprep.subr.mxu0 0.0
        %1001 = vmatpush2.msra.mxu0 0.0
        %1002 = vmatprep.subr.mxu0 0.0
        %1003 = vmatpush2.msra.mxu0 0.0
        %1004 = vmatprep.subr.mxu0 0.0
        %1005 = vmatpush2.msra.mxu0 0.0
        %1006 = vmatprep.subr.mxu0 0.0
        %1007 = vmatpush2.msra.mxu0 0.0
        %1008 = vmatprep.subr.mxu0 0.0
        %1009 = vmatpush2.msra.mxu0 0.0
        %1010 = vmatprep.mubr.f32.mxu0 0.0
        %1011 = vmatmul.mubr.f32.gmra.mxu0 %v721
        %v1012 = vpop.f32.mrf.mxu0
        %v1013 = vadd.f32 %v944, %v1012
        %v1014 = vpop.f32.mrf.mxu0
        %1015 = vmatprep.mubr.f32.mxu0 0.0
        %1016 = vmatmul.mubr.f32.gmra.mxu0 %v722
        %v1017 = vpop.f32.mrf.mxu0
        %v1018 = vadd.f32 %v944, %v1017
        %v1019 = vpop.f32.mrf.mxu0
        %1020 = vdwg.mxu0
        %v1021 = vld [vmem:[#allocation11] sm:$0xff]
        %v1022 = vld [vmem:[#allocation11 + $0x8] sm:$0xff]
        %v1023 = vld [vmem:[#allocation11 + $0x10] sm:$0xff]
        %v1024 = vld [vmem:[#allocation11 + $0x18] sm:$0xff]
        %v1025 = vld [vmem:[#allocation11 + $0x20] sm:$0xff]
        %v1026 = vld [vmem:[#allocation11 + $0x28] sm:$0xff]
        %v1027 = vld [vmem:[#allocation11 + $0x30] sm:$0xff]
        %v1028 = vld [vmem:[#allocation11 + $0x38] sm:$0xff]
        %v1029 = vld [vmem:[#allocation11 + $0x40] sm:$0xff]
        %v1030 = vld [vmem:[#allocation11 + $0x48] sm:$0xff]
        %v1031 = vld [vmem:[#allocation11 + $0x50] sm:$0xff]
        %v1032 = vld [vmem:[#allocation11 + $0x58] sm:$0xff]
        %v1033 = vld [vmem:[#allocation11 + $0x60] sm:$0xff]
        %v1034 = vld [vmem:[#allocation11 + $0x68] sm:$0xff]
        %v1035 = vld [vmem:[#allocation11 + $0x70] sm:$0xff]
        %v1036 = vld [vmem:[#allocation11 + $0x78] sm:$0xff]
        %v1037 = vmul.f32 %v817, 0.25
        %v1038 = vmul.f32 %v822, 0.25
        %vm1039 = vcmask 130048
        %v1041 = vsel %vm1039, %v1037, 0
        %v1044 = vsel %vm1039, %v1038, 0
        %v1047 = vsel %vm1039, %v915, 0
        %v1050 = vsel %vm1039, %v920, 0
        %1052 = vmatprep.subr.mxu0 0.0
        %1053 = vmatpush1.xpose.msra.mxu0 0.0
        %1054 = vmatprep.subr.mxu0 0.0
        %1055 = vmatpush1.xpose.msra.mxu0 0.0
        %1056 = vmatprep.subr.mxu0 0.0
        %1057 = vmatpush1.xpose.msra.mxu0 0.0
        %1058 = vmatprep.subr.mxu0 0.0
        %1059 = vmatpush1.xpose.msra.mxu0 0.0
        %1060 = vmatprep.subr.mxu0 0.0
        %1061 = vmatpush1.xpose.msra.mxu0 0.0
        %1062 = vmatprep.subr.mxu0 0.0
        %1063 = vmatpush1.xpose.msra.mxu0 0.0
        %1064 = vmatprep.subr.mxu0 0.0
        %1065 = vmatpush1.xpose.msra.mxu0 0.0
        %1066 = vmatprep.subr.mxu0 0.0
        %1067 = vmatpush1.xpose.msra.mxu0 0.0
        %1068 = vmatprep.subr.mxu0 0.0
        %1069 = vmatpush1.xpose.msra.mxu0 0.0
        %1070 = vmatprep.subr.mxu0 0.0
        %1071 = vmatpush1.xpose.msra.mxu0 0.0
        %1072 = vmatprep.subr.mxu0 0.0
        %1073 = vmatpush1.xpose.msra.mxu0 0.0
        %1074 = vmatprep.subr.mxu0 0.0
        %1075 = vmatpush1.xpose.msra.mxu0 0.0
        %1076 = vmatprep.subr.mxu0 0.0
        %1077 = vmatpush1.xpose.msra.mxu0 0.0
        %1078 = vmatprep.subr.mxu0 0.0
        %1079 = vmatpush1.xpose.msra.mxu0 0.0
        %1080 = vmatprep.subr.mxu0 0.0
        %1081 = vmatpush1.xpose.msra.mxu0 %v1050
        %1082 = vmatprep.subr.mxu0 0.0
        %1083 = vmatpush1.xpose.msra.mxu0 %v1047
        %1084 = vmatprep.subr.mxu0 0.0
        %1085 = vmatpush2.xpose.msra.mxu0 0.0
        %1086 = vmatprep.subr.mxu0 0.0
        %1087 = vmatpush2.xpose.msra.mxu0 0.0
        %1088 = vmatprep.subr.mxu0 0.0
        %1089 = vmatpush2.xpose.msra.mxu0 0.0
        %1090 = vmatprep.subr.mxu0 0.0
        %1091 = vmatpush2.xpose.msra.mxu0 0.0
        %1092 = vmatprep.subr.mxu0 0.0
        %1093 = vmatpush2.xpose.msra.mxu0 0.0
        %1094 = vmatprep.subr.mxu0 0.0
        %1095 = vmatpush2.xpose.msra.mxu0 0.0
        %1096 = vmatprep.subr.mxu0 0.0
        %1097 = vmatpush2.xpose.msra.mxu0 0.0
        %1098 = vmatprep.subr.mxu0 0.0
        %1099 = vmatpush2.xpose.msra.mxu0 0.0
        %1100 = vmatprep.subr.mxu0 0.0
        %1101 = vmatpush2.xpose.msra.mxu0 0.0
        %1102 = vmatprep.subr.mxu0 0.0
        %1103 = vmatpush2.xpose.msra.mxu0 0.0
        %1104 = vmatprep.subr.mxu0 0.0
        %1105 = vmatpush2.xpose.msra.mxu0 0.0
        %1106 = vmatprep.subr.mxu0 0.0
        %1107 = vmatpush2.xpose.msra.mxu0 0.0
        %1108 = vmatprep.subr.mxu0 0.0
        %1109 = vmatpush2.xpose.msra.mxu0 0.0
        %1110 = vmatprep.subr.mxu0 0.0
        %1111 = vmatpush2.xpose.msra.mxu0 0.0
        %1112 = vmatprep.subr.mxu0 0.0
        %1113 = vmatpush2.xpose.msra.mxu0 0.0
        %1114 = vmatprep.subr.mxu0 0.0
        %1115 = vmatpush2.xpose.msra.mxu0 0.0
        %1116 = vmatprep.mubr.f32.mxu0 0.0
        %1117 = vmatmul.mubr.f32.gmra.mxu0 %v1041
        %v1118 = vpop.f32.mrf.mxu0
        %v1119 = vadd.f32 0.0, %v1118
        %v1120 = vpop.f32.mrf.mxu0
        %1121 = vmatprep.mubr.f32.mxu0 0.0
        %1122 = vmatmul.mubr.f32.gmra.mxu0 %v1044
        %v1123 = vpop.f32.mrf.mxu0
        %v1124 = vadd.f32 0.0, %v1123
        %v1125 = vpop.f32.mrf.mxu0
        %1126 = vdwg.mxu0
        %v1127 = vsel %vm1039, %v1119, -inf
        %1128 = vmax.xlane.f32.xlu0 %v1127
        %v1129 = vpop.xlane.xlu0 %1128
        %v1130 = vsel %vm1039, %v1124, -inf
        %1131 = vmax.xlane.f32.xlu0 %v1130
        %v1132 = vpop.xlane.xlu0 %1131
        %v1133 = vsub.f32 %v1119, %v1129
        %v1134 = vsub.f32 %v1124, %v1132
        %v1135 = vmul.f32 %v1133, 1.442695
        %v1136 = vpow.pop %v1135
        %v1137 = vmul.f32 %v1134, 1.442695
        %v1138 = vpow.pop %v1137
        %v1139 = vsel %vm1039, %v1136, 0.0
        %1140 = vadd.xlane.f32.xlu0 %v1139
        %v1141 = vpop.xlane.xlu0 %1140
        %v1142 = vsel %vm1039, %v1138, 0.0
        %1143 = vadd.xlane.f32.xlu0 %v1142
        %v1144 = vpop.xlane.xlu0 %1143
        %v1145 = vrcp.pop %v1141
        %v1146 = vmul.f32 %v1136, %v1145
        %v1147 = vrcp.pop %v1144
        %v1148 = vmul.f32 %v1138, %v1147
        %v1150 = vsel %vm1039, %v1146, 0
        %v1153 = vsel %vm1039, %v1148, 0
        %1155 = vmatprep.subr.mxu0 0.0
        %1156 = vmatpush1.msra.mxu0 0.0
        %1157 = vmatprep.subr.mxu0 0.0
        %1158 = vmatpush1.msra.mxu0 0.0
        %1159 = vmatprep.subr.mxu0 0.0
        %1160 = vmatpush1.msra.mxu0 0.0
        %1161 = vmatprep.subr.mxu0 0.0
        %1162 = vmatpush1.msra.mxu0 0.0
        %1163 = vmatprep.subr.mxu0 0.0
        %1164 = vmatpush1.msra.mxu0 0.0
        %1165 = vmatprep.subr.mxu0 0.0
        %1166 = vmatpush1.msra.mxu0 0.0
        %1167 = vmatprep.subr.mxu0 0.0
        %1168 = vmatpush1.msra.mxu0 0.0
        %1169 = vmatprep.subr.mxu0 0.0
        %1170 = vmatpush1.msra.mxu0 0.0
        %1171 = vmatprep.subr.mxu0 0.0
        %1172 = vmatpush1.msra.mxu0 0.0
        %1173 = vmatprep.subr.mxu0 0.0
        %1174 = vmatpush1.msra.mxu0 0.0
        %1175 = vmatprep.subr.mxu0 0.0
        %1176 = vmatpush1.msra.mxu0 0.0
        %1177 = vmatprep.subr.mxu0 0.0
        %1178 = vmatpush1.msra.mxu0 0.0
        %1179 = vmatprep.subr.mxu0 0.0
        %1180 = vmatpush1.msra.mxu0 0.0
        %1181 = vmatprep.subr.mxu0 0.0
        %1182 = vmatpush1.msra.mxu0 0.0
        %1183 = vmatprep.subr.mxu0 0.0
        %1184 = vmatpush1.msra.mxu0 %v1018
        %1185 = vmatprep.subr.mxu0 0.0
        %1186 = vmatpush1.msra.mxu0 %v1013
        %1187 = vmatprep.subr.mxu0 0.0
        %1188 = vmatpush2.msra.mxu0 0.0
        %1189 = vmatprep.subr.mxu0 0.0
        %1190 = vmatpush2.msra.mxu0 0.0
        %1191 = vmatprep.subr.mxu0 0.0
        %1192 = vmatpush2.msra.mxu0 0.0
        %1193 = vmatprep.subr.mxu0 0.0
        %1194 = vmatpush2.msra.mxu0 0.0
        %1195 = vmatprep.subr.mxu0 0.0
        %1196 = vmatpush2.msra.mxu0 0.0
        %1197 = vmatprep.subr.mxu0 0.0
        %1198 = vmatpush2.msra.mxu0 0.0
        %1199 = vmatprep.subr.mxu0 0.0
        %1200 = vmatpush2.msra.mxu0 0.0
        %1201 = vmatprep.subr.mxu0 0.0
        %1202 = vmatpush2.msra.mxu0 0.0
        %1203 = vmatprep.subr.mxu0 0.0
        %1204 = vmatpush2.msra.mxu0 0.0
        %1205 = vmatprep.subr.mxu0 0.0
        %1206 = vmatpush2.msra.mxu0 0.0
        %1207 = vmatprep.subr.mxu0 0.0
        %1208 = vmatpush2.msra.mxu0 0.0
        %1209 = vmatprep.subr.mxu0 0.0
        %1210 = vmatpush2.msra.mxu0 0.0
        %1211 = vmatprep.subr.mxu0 0.0
        %1212 = vmatpush2.msra.mxu0 0.0
        %1213 = vmatprep.subr.mxu0 0.0
        %1214 = vmatpush2.msra.mxu0 0.0
        %1215 = vmatprep.subr.mxu0 0.0
        %1216 = vmatpush2.msra.mxu0 0.0
        %1217 = vmatprep.subr.mxu0 0.0
        %1218 = vmatpush2.msra.mxu0 0.0
        %1219 = vmatprep.mubr.f32.mxu0 0.0
        %1220 = vmatmul.mubr.f32.gmra.mxu0 %v1150
        %v1221 = vpop.f32.mrf.mxu0
        %v1222 = vadd.f32 0.0, %v1221
        %v1223 = vpop.f32.mrf.mxu0
        %1224 = vmatprep.mubr.f32.mxu0 0.0
        %1225 = vmatmul.mubr.f32.gmra.mxu0 %v1153
        %v1226 = vpop.f32.mrf.mxu0
        %v1227 = vadd.f32 0.0, %v1226
        %v1228 = vpop.f32.mrf.mxu0
        %1229 = vdwg.mxu0
        %1230 = vrot.lane.b32.xlu0 %v1037, 112
        %v1231 = vpop.permute.xlu0 %1230
        %1232 = vrot.lane.b32.xlu0 %v1038, 112
        %v1233 = vpop.permute.xlu0 %1232
        %1234 = vrot.lane.b32.xlu0 %v915, 112
        %v1235 = vpop.permute.xlu0 %1234
        %1236 = vrot.lane.b32.xlu0 %v920, 112
        %v1237 = vpop.permute.xlu0 %1236
        %v1238 = vsel %vm1039, %v1231, 0
        %v1240 = vsel %vm1039, %v1233, 0
        %v1242 = vsel %vm1039, %v1235, 0
        %v1244 = vsel %vm1039, %v1237, 0
        %1246 = vmatprep.subr.mxu0 0.0
        %1247 = vmatpush1.xpose.msra.mxu0 0.0
        %1248 = vmatprep.subr.mxu0 0.0
        %1249 = vmatpush1.xpose.msra.mxu0 0.0
        %1250 = vmatprep.subr.mxu0 0.0
        %1251 = vmatpush1.xpose.msra.mxu0 0.0
        %1252 = vmatprep.subr.mxu0 0.0
        %1253 = vmatpush1.xpose.msra.mxu0 0.0
        %1254 = vmatprep.subr.mxu0 0.0
        %1255 = vmatpush1.xpose.msra.mxu0 0.0
        %1256 = vmatprep.subr.mxu0 0.0
        %1257 = vmatpush1.xpose.msra.mxu0 0.0
        %1258 = vmatprep.subr.mxu0 0.0
        %1259 = vmatpush1.xpose.msra.mxu0 0.0
        %1260 = vmatprep.subr.mxu0 0.0
        %1261 = vmatpush1.xpose.msra.mxu0 0.0
        %1262 = vmatprep.subr.mxu0 0.0
        %1263 = vmatpush1.xpose.msra.mxu0 0.0
        %1264 = vmatprep.subr.mxu0 0.0
        %1265 = vmatpush1.xpose.msra.mxu0 0.0
        %1266 = vmatprep.subr.mxu0 0.0
        %1267 = vmatpush1.xpose.msra.mxu0 0.0
        %1268 = vmatprep.subr.mxu0 0.0
        %1269 = vmatpush1.xpose.msra.mxu0 0.0
        %1270 = vmatprep.subr.mxu0 0.0
        %1271 = vmatpush1.xpose.msra.mxu0 0.0
        %1272 = vmatprep.subr.mxu0 0.0
        %1273 = vmatpush1.xpose.msra.mxu0 0.0
        %1274 = vmatprep.subr.mxu0 0.0
        %1275 = vmatpush1.xpose.msra.mxu0 %v1244
        %1276 = vmatprep.subr.mxu0 0.0
        %1277 = vmatpush1.xpose.msra.mxu0 %v1242
        %1278 = vmatprep.subr.mxu0 0.0
        %1279 = vmatpush2.xpose.msra.mxu0 0.0
        %1280 = vmatprep.subr.mxu0 0.0
        %1281 = vmatpush2.xpose.msra.mxu0 0.0
        %1282 = vmatprep.subr.mxu0 0.0
        %1283 = vmatpush2.xpose.msra.mxu0 0.0
        %1284 = vmatprep.subr.mxu0 0.0
        %1285 = vmatpush2.xpose.msra.mxu0 0.0
        %1286 = vmatprep.subr.mxu0 0.0
        %1287 = vmatpush2.xpose.msra.mxu0 0.0
        %1288 = vmatprep.subr.mxu0 0.0
        %1289 = vmatpush2.xpose.msra.mxu0 0.0
        %1290 = vmatprep.subr.mxu0 0.0
        %1291 = vmatpush2.xpose.msra.mxu0 0.0
        %1292 = vmatprep.subr.mxu0 0.0
        %1293 = vmatpush2.xpose.msra.mxu0 0.0
        %1294 = vmatprep.subr.mxu0 0.0
        %1295 = vmatpush2.xpose.msra.mxu0 0.0
        %1296 = vmatprep.subr.mxu0 0.0
        %1297 = vmatpush2.xpose.msra.mxu0 0.0
        %1298 = vmatprep.subr.mxu0 0.0
        %1299 = vmatpush2.xpose.msra.mxu0 0.0
        %1300 = vmatprep.subr.mxu0 0.0
        %1301 = vmatpush2.xpose.msra.mxu0 0.0
        %1302 = vmatprep.subr.mxu0 0.0
        %1303 = vmatpush2.xpose.msra.mxu0 0.0
        %1304 = vmatprep.subr.mxu0 0.0
        %1305 = vmatpush2.xpose.msra.mxu0 0.0
        %1306 = vmatprep.subr.mxu0 0.0
        %1307 = vmatpush2.xpose.msra.mxu0 0.0
        %1308 = vmatprep.subr.mxu0 0.0
        %1309 = vmatpush2.xpose.msra.mxu0 0.0
        %1310 = vmatprep.mubr.f32.mxu0 0.0
        %1311 = vmatmul.mubr.f32.gmra.mxu0 %v1238
        %v1312 = vpop.f32.mrf.mxu0
        %v1313 = vadd.f32 0.0, %v1312
        %v1314 = vpop.f32.mrf.mxu0
        %1315 = vmatprep.mubr.f32.mxu0 0.0
        %1316 = vmatmul.mubr.f32.gmra.mxu0 %v1240
        %v1317 = vpop.f32.mrf.mxu0
        %v1318 = vadd.f32 0.0, %v1317
        %v1319 = vpop.f32.mrf.mxu0
        %1320 = vdwg.mxu0
        %v1321 = vsel %vm1039, %v1313, -inf
        %1322 = vmax.xlane.f32.xlu0 %v1321
        %v1323 = vpop.xlane.xlu0 %1322
        %v1324 = vsel %vm1039, %v1318, -inf
        %1325 = vmax.xlane.f32.xlu0 %v1324
        %v1326 = vpop.xlane.xlu0 %1325
        %v1327 = vsub.f32 %v1313, %v1323
        %v1328 = vsub.f32 %v1318, %v1326
        %v1329 = vmul.f32 %v1327, 1.442695
        %v1330 = vpow.pop %v1329
        %v1331 = vmul.f32 %v1328, 1.442695
        %v1332 = vpow.pop %v1331
        %v1333 = vsel %vm1039, %v1330, 0.0
        %1334 = vadd.xlane.f32.xlu0 %v1333
        %v1335 = vpop.xlane.xlu0 %1334
        %v1336 = vsel %vm1039, %v1332, 0.0
        %1337 = vadd.xlane.f32.xlu0 %v1336
        %v1338 = vpop.xlane.xlu0 %1337
        %v1339 = vrcp.pop %v1335
        %v1340 = vmul.f32 %v1330, %v1339
        %v1341 = vrcp.pop %v1338
        %v1342 = vmul.f32 %v1332, %v1341
        %1345 = vrot.lane.b32.xlu0 %v1013, 112
        %v1346 = vpop.permute.xlu0 %1345
        %1347 = vrot.lane.b32.xlu0 %v1018, 112
        %v1348 = vpop.permute.xlu0 %1347
        %v1352 = vsel %vm1039, %v1340, 0
        %v1355 = vsel %vm1039, %v1342, 0
        %1357 = vmatprep.subr.mxu0 0.0
        %1358 = vmatpush1.msra.mxu0 0.0
        %1359 = vmatprep.subr.mxu0 0.0
        %1360 = vmatpush1.msra.mxu0 0.0
        %1361 = vmatprep.subr.mxu0 0.0
        %1362 = vmatpush1.msra.mxu0 0.0
        %1363 = vmatprep.subr.mxu0 0.0
        %1364 = vmatpush1.msra.mxu0 0.0
        %1365 = vmatprep.subr.mxu0 0.0
        %1366 = vmatpush1.msra.mxu0 0.0
        %1367 = vmatprep.subr.mxu0 0.0
        %1368 = vmatpush1.msra.mxu0 0.0
        %1369 = vmatprep.subr.mxu0 0.0
        %1370 = vmatpush1.msra.mxu0 0.0
        %1371 = vmatprep.subr.mxu0 0.0
        %1372 = vmatpush1.msra.mxu0 0.0
        %1373 = vmatprep.subr.mxu0 0.0
        %1374 = vmatpush1.msra.mxu0 0.0
        %1375 = vmatprep.subr.mxu0 0.0
        %1376 = vmatpush1.msra.mxu0 0.0
        %1377 = vmatprep.subr.mxu0 0.0
        %1378 = vmatpush1.msra.mxu0 0.0
        %1379 = vmatprep.subr.mxu0 0.0
        %1380 = vmatpush1.msra.mxu0 0.0
        %1381 = vmatprep.subr.mxu0 0.0
        %1382 = vmatpush1.msra.mxu0 0.0
        %1383 = vmatprep.subr.mxu0 0.0
        %1384 = vmatpush1.msra.mxu0 0.0
        %1385 = vmatprep.subr.mxu0 0.0
        %1386 = vmatpush1.msra.mxu0 %v1348
        %1387 = vmatprep.subr.mxu0 0.0
        %1388 = vmatpush1.msra.mxu0 %v1346
        %1389 = vmatprep.subr.mxu0 0.0
        %1390 = vmatpush2.msra.mxu0 0.0
        %1391 = vmatprep.subr.mxu0 0.0
        %1392 = vmatpush2.msra.mxu0 0.0
        %1393 = vmatprep.subr.mxu0 0.0
        %1394 = vmatpush2.msra.mxu0 0.0
        %1395 = vmatprep.subr.mxu0 0.0
        %1396 = vmatpush2.msra.mxu0 0.0
        %1397 = vmatprep.subr.mxu0 0.0
        %1398 = vmatpush2.msra.mxu0 0.0
        %1399 = vmatprep.subr.mxu0 0.0
        %1400 = vmatpush2.msra.mxu0 0.0
        %1401 = vmatprep.subr.mxu0 0.0
        %1402 = vmatpush2.msra.mxu0 0.0
        %1403 = vmatprep.subr.mxu0 0.0
        %1404 = vmatpush2.msra.mxu0 0.0
        %1405 = vmatprep.subr.mxu0 0.0
        %1406 = vmatpush2.msra.mxu0 0.0
        %1407 = vmatprep.subr.mxu0 0.0
        %1408 = vmatpush2.msra.mxu0 0.0
        %1409 = vmatprep.subr.mxu0 0.0
        %1410 = vmatpush2.msra.mxu0 0.0
        %1411 = vmatprep.subr.mxu0 0.0
        %1412 = vmatpush2.msra.mxu0 0.0
        %1413 = vmatprep.subr.mxu0 0.0
        %1414 = vmatpush2.msra.mxu0 0.0
        %1415 = vmatprep.subr.mxu0 0.0
        %1416 = vmatpush2.msra.mxu0 0.0
        %1417 = vmatprep.subr.mxu0 0.0
        %1418 = vmatpush2.msra.mxu0 0.0
        %1419 = vmatprep.subr.mxu0 0.0
        %1420 = vmatpush2.msra.mxu0 0.0
        %1421 = vmatprep.mubr.f32.mxu0 0.0
        %1422 = vmatmul.mubr.f32.gmra.mxu0 %v1352
        %v1423 = vpop.f32.mrf.mxu0
        %v1424 = vadd.f32 0.0, %v1423
        %v1425 = vpop.f32.mrf.mxu0
        %1426 = vmatprep.mubr.f32.mxu0 0.0
        %1427 = vmatmul.mubr.f32.gmra.mxu0 %v1355
        %v1428 = vpop.f32.mrf.mxu0
        %v1429 = vadd.f32 0.0, %v1428
        %v1430 = vpop.f32.mrf.mxu0
        %1431 = vdwg.mxu0
        %v1433 = vsel %vm1039, %v1424, 0
        %v1436 = vsel %vm1039, %v1429, 0
        %1438 = vmatprep.subr.mxu0 0.0
        %1439 = vmatpush1.msra.mxu0 0.0
        %1440 = vmatprep.subr.mxu0 0.0
        %1441 = vmatpush1.msra.mxu0 0.0
        %1442 = vmatprep.subr.mxu0 0.0
        %1443 = vmatpush1.msra.mxu0 0.0
        %1444 = vmatprep.subr.mxu0 0.0
        %1445 = vmatpush1.msra.mxu0 0.0
        %1446 = vmatprep.subr.mxu0 0.0
        %1447 = vmatpush1.msra.mxu0 0.0
        %1448 = vmatprep.subr.mxu0 0.0
        %1449 = vmatpush1.msra.mxu0 0.0
        %1450 = vmatprep.subr.mxu0 0.0
        %1451 = vmatpush1.msra.mxu0 0.0
        %1452 = vmatprep.subr.mxu0 0.0
        %1453 = vmatpush1.msra.mxu0 0.0
        %1454 = vmatprep.subr.mxu0 0.0
        %1455 = vmatpush1.msra.mxu0 0.0
        %1456 = vmatprep.subr.mxu0 0.0
        %1457 = vmatpush1.msra.mxu0 0.0
        %1458 = vmatprep.subr.mxu0 0.0
        %1459 = vmatpush1.msra.mxu0 0.0
        %1460 = vmatprep.subr.mxu0 0.0
        %1461 = vmatpush1.msra.mxu0 0.0
        %1462 = vmatprep.subr.mxu0 0.0
        %1463 = vmatpush1.msra.mxu0 0.0
        %1464 = vmatprep.subr.mxu0 0.0
        %1465 = vmatpush1.msra.mxu0 0.0
        %1466 = vmatprep.subr.mxu0 0.0
        %1467 = vmatpush1.msra.mxu0 %v1024
        %1468 = vmatprep.subr.mxu0 0.0
        %1469 = vmatpush1.msra.mxu0 %v1023
        %1470 = vmatprep.subr.mxu0 0.0
        %1471 = vmatpush2.msra.mxu0 0.0
        %1472 = vmatprep.subr.mxu0 0.0
        %1473 = vmatpush2.msra.mxu0 0.0
        %1474 = vmatprep.subr.mxu0 0.0
        %1475 = vmatpush2.msra.mxu0 0.0
        %1476 = vmatprep.subr.mxu0 0.0
        %1477 = vmatpush2.msra.mxu0 0.0
        %1478 = vmatprep.subr.mxu0 0.0
        %1479 = vmatpush2.msra.mxu0 0.0
        %1480 = vmatprep.subr.mxu0 0.0
        %1481 = vmatpush2.msra.mxu0 0.0
        %1482 = vmatprep.subr.mxu0 0.0
        %1483 = vmatpush2.msra.mxu0 0.0
        %1484 = vmatprep.subr.mxu0 0.0
        %1485 = vmatpush2.msra.mxu0 0.0
        %1486 = vmatprep.subr.mxu0 0.0
        %1487 = vmatpush2.msra.mxu0 0.0
        %1488 = vmatprep.subr.mxu0 0.0
        %1489 = vmatpush2.msra.mxu0 0.0
        %1490 = vmatprep.subr.mxu0 0.0
        %1491 = vmatpush2.msra.mxu0 0.0
        %1492 = vmatprep.subr.mxu0 0.0
        %1493 = vmatpush2.msra.mxu0 0.0
        %1494 = vmatprep.subr.mxu0 0.0
        %1495 = vmatpush2.msra.mxu0 0.0
        %1496 = vmatprep.subr.mxu0 0.0
        %1497 = vmatpush2.msra.mxu0 0.0
        %1498 = vmatprep.subr.mxu0 0.0
        %1499 = vmatpush2.msra.mxu0 0.0
        %1500 = vmatprep.subr.mxu0 0.0
        %1501 = vmatpush2.msra.mxu0 0.0
        %1502 = vmatprep.mubr.f32.mxu0 0.0
        %1503 = vmatmul.mubr.f32.gmra.mxu0 %v1433
        %v1504 = vpop.f32.mrf.mxu0
        %v1505 = vadd.f32 0.0, %v1504
        %v1506 = vpop.f32.mrf.mxu0
        %1507 = vmatprep.mubr.f32.mxu0 0.0
        %1508 = vmatmul.mubr.f32.gmra.mxu0 %v1436
        %v1509 = vpop.f32.mrf.mxu0
        %v1510 = vadd.f32 0.0, %v1509
        %v1511 = vpop.f32.mrf.mxu0
        %1512 = vdwg.mxu0
        %v1514 = vsel %vm1039, %v1222, 0
        %v1517 = vsel %vm1039, %v1227, 0
        %1519 = vmatprep.subr.mxu0 0.0
        %1520 = vmatpush1.msra.mxu0 0.0
        %1521 = vmatprep.subr.mxu0 0.0
        %1522 = vmatpush1.msra.mxu0 0.0
        %1523 = vmatprep.subr.mxu0 0.0
        %1524 = vmatpush1.msra.mxu0 0.0
        %1525 = vmatprep.subr.mxu0 0.0
        %1526 = vmatpush1.msra.mxu0 0.0
        %1527 = vmatprep.subr.mxu0 0.0
        %1528 = vmatpush1.msra.mxu0 0.0
        %1529 = vmatprep.subr.mxu0 0.0
        %1530 = vmatpush1.msra.mxu0 0.0
        %1531 = vmatprep.subr.mxu0 0.0
        %1532 = vmatpush1.msra.mxu0 0.0
        %1533 = vmatprep.subr.mxu0 0.0
        %1534 = vmatpush1.msra.mxu0 0.0
        %1535 = vmatprep.subr.mxu0 0.0
        %1536 = vmatpush1.msra.mxu0 0.0
        %1537 = vmatprep.subr.mxu0 0.0
        %1538 = vmatpush1.msra.mxu0 0.0
        %1539 = vmatprep.subr.mxu0 0.0
        %1540 = vmatpush1.msra.mxu0 0.0
        %1541 = vmatprep.subr.mxu0 0.0
        %1542 = vmatpush1.msra.mxu0 0.0
        %1543 = vmatprep.subr.mxu0 0.0
        %1544 = vmatpush1.msra.mxu0 0.0
        %1545 = vmatprep.subr.mxu0 0.0
        %1546 = vmatpush1.msra.mxu0 0.0
        %1547 = vmatprep.subr.mxu0 0.0
        %1548 = vmatpush1.msra.mxu0 %v1022
        %1549 = vmatprep.subr.mxu0 0.0
        %1550 = vmatpush1.msra.mxu0 %v1021
        %1551 = vmatprep.subr.mxu0 0.0
        %1552 = vmatpush2.msra.mxu0 0.0
        %1553 = vmatprep.subr.mxu0 0.0
        %1554 = vmatpush2.msra.mxu0 0.0
        %1555 = vmatprep.subr.mxu0 0.0
        %1556 = vmatpush2.msra.mxu0 0.0
        %1557 = vmatprep.subr.mxu0 0.0
        %1558 = vmatpush2.msra.mxu0 0.0
        %1559 = vmatprep.subr.mxu0 0.0
        %1560 = vmatpush2.msra.mxu0 0.0
        %1561 = vmatprep.subr.mxu0 0.0
        %1562 = vmatpush2.msra.mxu0 0.0
        %1563 = vmatprep.subr.mxu0 0.0
        %1564 = vmatpush2.msra.mxu0 0.0
        %1565 = vmatprep.subr.mxu0 0.0
        %1566 = vmatpush2.msra.mxu0 0.0
        %1567 = vmatprep.subr.mxu0 0.0
        %1568 = vmatpush2.msra.mxu0 0.0
        %1569 = vmatprep.subr.mxu0 0.0
        %1570 = vmatpush2.msra.mxu0 0.0
        %1571 = vmatprep.subr.mxu0 0.0
        %1572 = vmatpush2.msra.mxu0 0.0
        %1573 = vmatprep.subr.mxu0 0.0
        %1574 = vmatpush2.msra.mxu0 0.0
        %1575 = vmatprep.subr.mxu0 0.0
        %1576 = vmatpush2.msra.mxu0 0.0
        %1577 = vmatprep.subr.mxu0 0.0
        %1578 = vmatpush2.msra.mxu0 0.0
        %1579 = vmatprep.subr.mxu0 0.0
        %1580 = vmatpush2.msra.mxu0 0.0
        %1581 = vmatprep.subr.mxu0 0.0
        %1582 = vmatpush2.msra.mxu0 0.0
        %1583 = vmatprep.mubr.f32.mxu0 0.0
        %1584 = vmatmul.mubr.f32.gmra.mxu0 %v1514
        %v1585 = vpop.f32.mrf.mxu0
        %v1586 = vadd.f32 %v1505, %v1585
        %v1587 = vpop.f32.mrf.mxu0
        %1588 = vmatprep.mubr.f32.mxu0 0.0
        %1589 = vmatmul.mubr.f32.gmra.mxu0 %v1517
        %v1590 = vpop.f32.mrf.mxu0
        %v1591 = vadd.f32 %v1510, %v1590
        %v1592 = vpop.f32.mrf.mxu0
        %1593 = vdwg.mxu0
        %1594 = vrot.lane.b32.xlu0 %v1037, 96
        %v1595 = vpop.permute.xlu0 %1594
        %1596 = vrot.lane.b32.xlu0 %v1038, 96
        %v1597 = vpop.permute.xlu0 %1596
        %1598 = vrot.lane.b32.xlu0 %v915, 96
        %v1599 = vpop.permute.xlu0 %1598
        %1600 = vrot.lane.b32.xlu0 %v920, 96
        %v1601 = vpop.permute.xlu0 %1600
        %v1602 = vsel %vm1039, %v1595, 0
        %v1604 = vsel %vm1039, %v1597, 0
        %v1606 = vsel %vm1039, %v1599, 0
        %v1608 = vsel %vm1039, %v1601, 0
        %1610 = vmatprep.subr.mxu0 0.0
        %1611 = vmatpush1.xpose.msra.mxu0 0.0
        %1612 = vmatprep.subr.mxu0 0.0
        %1613 = vmatpush1.xpose.msra.mxu0 0.0
        %1614 = vmatprep.subr.mxu0 0.0
        %1615 = vmatpush1.xpose.msra.mxu0 0.0
        %1616 = vmatprep.subr.mxu0 0.0
        %1617 = vmatpush1.xpose.msra.mxu0 0.0
        %1618 = vmatprep.subr.mxu0 0.0
        %1619 = vmatpush1.xpose.msra.mxu0 0.0
        %1620 = vmatprep.subr.mxu0 0.0
        %1621 = vmatpush1.xpose.msra.mxu0 0.0
        %1622 = vmatprep.subr.mxu0 0.0
        %1623 = vmatpush1.xpose.msra.mxu0 0.0
        %1624 = vmatprep.subr.mxu0 0.0
        %1625 = vmatpush1.xpose.msra.mxu0 0.0
        %1626 = vmatprep.subr.mxu0 0.0
        %1627 = vmatpush1.xpose.msra.mxu0 0.0
        %1628 = vmatprep.subr.mxu0 0.0
        %1629 = vmatpush1.xpose.msra.mxu0 0.0
        %1630 = vmatprep.subr.mxu0 0.0
        %1631 = vmatpush1.xpose.msra.mxu0 0.0
        %1632 = vmatprep.subr.mxu0 0.0
        %1633 = vmatpush1.xpose.msra.mxu0 0.0
        %1634 = vmatprep.subr.mxu0 0.0
        %1635 = vmatpush1.xpose.msra.mxu0 0.0
        %1636 = vmatprep.subr.mxu0 0.0
        %1637 = vmatpush1.xpose.msra.mxu0 0.0
        %1638 = vmatprep.subr.mxu0 0.0
        %1639 = vmatpush1.xpose.msra.mxu0 %v1608
        %1640 = vmatprep.subr.mxu0 0.0
        %1641 = vmatpush1.xpose.msra.mxu0 %v1606
        %1642 = vmatprep.subr.mxu0 0.0
        %1643 = vmatpush2.xpose.msra.mxu0 0.0
        %1644 = vmatprep.subr.mxu0 0.0
        %1645 = vmatpush2.xpose.msra.mxu0 0.0
        %1646 = vmatprep.subr.mxu0 0.0
        %1647 = vmatpush2.xpose.msra.mxu0 0.0
        %1648 = vmatprep.subr.mxu0 0.0
        %1649 = vmatpush2.xpose.msra.mxu0 0.0
        %1650 = vmatprep.subr.mxu0 0.0
        %1651 = vmatpush2.xpose.msra.mxu0 0.0
        %1652 = vmatprep.subr.mxu0 0.0
        %1653 = vmatpush2.xpose.msra.mxu0 0.0
        %1654 = vmatprep.subr.mxu0 0.0
        %1655 = vmatpush2.xpose.msra.mxu0 0.0
        %1656 = vmatprep.subr.mxu0 0.0
        %1657 = vmatpush2.xpose.msra.mxu0 0.0
        %1658 = vmatprep.subr.mxu0 0.0
        %1659 = vmatpush2.xpose.msra.mxu0 0.0
        %1660 = vmatprep.subr.mxu0 0.0
        %1661 = vmatpush2.xpose.msra.mxu0 0.0
        %1662 = vmatprep.subr.mxu0 0.0
        %1663 = vmatpush2.xpose.msra.mxu0 0.0
        %1664 = vmatprep.subr.mxu0 0.0
        %1665 = vmatpush2.xpose.msra.mxu0 0.0
        %1666 = vmatprep.subr.mxu0 0.0
        %1667 = vmatpush2.xpose.msra.mxu0 0.0
        %1668 = vmatprep.subr.mxu0 0.0
        %1669 = vmatpush2.xpose.msra.mxu0 0.0
        %1670 = vmatprep.subr.mxu0 0.0
        %1671 = vmatpush2.xpose.msra.mxu0 0.0
        %1672 = vmatprep.subr.mxu0 0.0
        %1673 = vmatpush2.xpose.msra.mxu0 0.0
        %1674 = vmatprep.mubr.f32.mxu0 0.0
        %1675 = vmatmul.mubr.f32.gmra.mxu0 %v1602
        %v1676 = vpop.f32.mrf.mxu0
        %v1677 = vadd.f32 0.0, %v1676
        %v1678 = vpop.f32.mrf.mxu0
        %1679 = vmatprep.mubr.f32.mxu0 0.0
        %1680 = vmatmul.mubr.f32.gmra.mxu0 %v1604
        %v1681 = vpop.f32.mrf.mxu0
        %v1682 = vadd.f32 0.0, %v1681
        %v1683 = vpop.f32.mrf.mxu0
        %1684 = vdwg.mxu0
        %v1685 = vsel %vm1039, %v1677, -inf
        %1686 = vmax.xlane.f32.xlu0 %v1685
        %v1687 = vpop.xlane.xlu0 %1686
        %v1688 = vsel %vm1039, %v1682, -inf
        %1689 = vmax.xlane.f32.xlu0 %v1688
        %v1690 = vpop.xlane.xlu0 %1689
        %v1691 = vsub.f32 %v1677, %v1687
        %v1692 = vsub.f32 %v1682, %v1690
        %v1693 = vmul.f32 %v1691, 1.442695
        %v1694 = vpow.pop %v1693
        %v1695 = vmul.f32 %v1692, 1.442695
        %v1696 = vpow.pop %v1695
        %v1697 = vsel %vm1039, %v1694, 0.0
        %1698 = vadd.xlane.f32.xlu0 %v1697
        %v1699 = vpop.xlane.xlu0 %1698
        %v1700 = vsel %vm1039, %v1696, 0.0
        %1701 = vadd.xlane.f32.xlu0 %v1700
        %v1702 = vpop.xlane.xlu0 %1701
        %v1703 = vrcp.pop %v1699
        %v1704 = vmul.f32 %v1694, %v1703
        %v1705 = vrcp.pop %v1702
        %v1706 = vmul.f32 %v1696, %v1705
        %1707 = vrot.lane.b32.xlu0 %v1013, 96
        %v1708 = vpop.permute.xlu0 %1707
        %1709 = vrot.lane.b32.xlu0 %v1018, 96
        %v1710 = vpop.permute.xlu0 %1709
        %v1714 = vsel %vm1039, %v1704, 0
        %v1717 = vsel %vm1039, %v1706, 0
        %1719 = vmatprep.subr.mxu0 0.0
        %1720 = vmatpush1.msra.mxu0 0.0
        %1721 = vmatprep.subr.mxu0 0.0
        %1722 = vmatpush1.msra.mxu0 0.0
        %1723 = vmatprep.subr.mxu0 0.0
        %1724 = vmatpush1.msra.mxu0 0.0
        %1725 = vmatprep.subr.mxu0 0.0
        %1726 = vmatpush1.msra.mxu0 0.0
        %1727 = vmatprep.subr.mxu0 0.0
        %1728 = vmatpush1.msra.mxu0 0.0
        %1729 = vmatprep.subr.mxu0 0.0
        %1730 = vmatpush1.msra.mxu0 0.0
        %1731 = vmatprep.subr.mxu0 0.0
        %1732 = vmatpush1.msra.mxu0 0.0
        %1733 = vmatprep.subr.mxu0 0.0
        %1734 = vmatpush1.msra.mxu0 0.0
        %1735 = vmatprep.subr.mxu0 0.0
        %1736 = vmatpush1.msra.mxu0 0.0
        %1737 = vmatprep.subr.mxu0 0.0
        %1738 = vmatpush1.msra.mxu0 0.0
        %1739 = vmatprep.subr.mxu0 0.0
        %1740 = vmatpush1.msra.mxu0 0.0
        %1741 = vmatprep.subr.mxu0 0.0
        %1742 = vmatpush1.msra.mxu0 0.0
        %1743 = vmatprep.subr.mxu0 0.0
        %1744 = vmatpush1.msra.mxu0 0.0
        %1745 = vmatprep.subr.mxu0 0.0
        %1746 = vmatpush1.msra.mxu0 0.0
        %1747 = vmatprep.subr.mxu0 0.0
        %1748 = vmatpush1.msra.mxu0 %v1710
        %1749 = vmatprep.subr.mxu0 0.0
        %1750 = vmatpush1.msra.mxu0 %v1708
        %1751 = vmatprep.subr.mxu0 0.0
        %1752 = vmatpush2.msra.mxu0 0.0
        %1753 = vmatprep.subr.mxu0 0.0
        %1754 = vmatpush2.msra.mxu0 0.0
        %1755 = vmatprep.subr.mxu0 0.0
        %1756 = vmatpush2.msra.mxu0 0.0
        %1757 = vmatprep.subr.mxu0 0.0
        %1758 = vmatpush2.msra.mxu0 0.0
        %1759 = vmatprep.subr.mxu0 0.0
        %1760 = vmatpush2.msra.mxu0 0.0
        %1761 = vmatprep.subr.mxu0 0.0
        %1762 = vmatpush2.msra.mxu0 0.0
        %1763 = vmatprep.subr.mxu0 0.0
        %1764 = vmatpush2.msra.mxu0 0.0
        %1765 = vmatprep.subr.mxu0 0.0
        %1766 = vmatpush2.msra.mxu0 0.0
        %1767 = vmatprep.subr.mxu0 0.0
        %1768 = vmatpush2.msra.mxu0 0.0
        %1769 = vmatprep.subr.mxu0 0.0
        %1770 = vmatpush2.msra.mxu0 0.0
        %1771 = vmatprep.subr.mxu0 0.0
        %1772 = vmatpush2.msra.mxu0 0.0
        %1773 = vmatprep.subr.mxu0 0.0
        %1774 = vmatpush2.msra.mxu0 0.0
        %1775 = vmatprep.subr.mxu0 0.0
        %1776 = vmatpush2.msra.mxu0 0.0
        %1777 = vmatprep.subr.mxu0 0.0
        %1778 = vmatpush2.msra.mxu0 0.0
        %1779 = vmatprep.subr.mxu0 0.0
        %1780 = vmatpush2.msra.mxu0 0.0
        %1781 = vmatprep.subr.mxu0 0.0
        %1782 = vmatpush2.msra.mxu0 0.0
        %1783 = vmatprep.mubr.f32.mxu0 0.0
        %1784 = vmatmul.mubr.f32.gmra.mxu0 %v1714
        %v1785 = vpop.f32.mrf.mxu0
        %v1786 = vadd.f32 0.0, %v1785
        %v1787 = vpop.f32.mrf.mxu0
        %1788 = vmatprep.mubr.f32.mxu0 0.0
        %1789 = vmatmul.mubr.f32.gmra.mxu0 %v1717
        %v1790 = vpop.f32.mrf.mxu0
        %v1791 = vadd.f32 0.0, %v1790
        %v1792 = vpop.f32.mrf.mxu0
        %1793 = vdwg.mxu0
        %v1795 = vsel %vm1039, %v1786, 0
        %v1798 = vsel %vm1039, %v1791, 0
        %1800 = vmatprep.subr.mxu0 0.0
        %1801 = vmatpush1.msra.mxu0 0.0
        %1802 = vmatprep.subr.mxu0 0.0
        %1803 = vmatpush1.msra.mxu0 0.0
        %1804 = vmatprep.subr.mxu0 0.0
        %1805 = vmatpush1.msra.mxu0 0.0
        %1806 = vmatprep.subr.mxu0 0.0
        %1807 = vmatpush1.msra.mxu0 0.0
        %1808 = vmatprep.subr.mxu0 0.0
        %1809 = vmatpush1.msra.mxu0 0.0
        %1810 = vmatprep.subr.mxu0 0.0
        %1811 = vmatpush1.msra.mxu0 0.0
        %1812 = vmatprep.subr.mxu0 0.0
        %1813 = vmatpush1.msra.mxu0 0.0
        %1814 = vmatprep.subr.mxu0 0.0
        %1815 = vmatpush1.msra.mxu0 0.0
        %1816 = vmatprep.subr.mxu0 0.0
        %1817 = vmatpush1.msra.mxu0 0.0
        %1818 = vmatprep.subr.mxu0 0.0
        %1819 = vmatpush1.msra.mxu0 0.0
        %1820 = vmatprep.subr.mxu0 0.0
        %1821 = vmatpush1.msra.mxu0 0.0
        %1822 = vmatprep.subr.mxu0 0.0
        %1823 = vmatpush1.msra.mxu0 0.0
        %1824 = vmatprep.subr.mxu0 0.0
        %1825 = vmatpush1.msra.mxu0 0.0
        %1826 = vmatprep.subr.mxu0 0.0
        %1827 = vmatpush1.msra.mxu0 0.0
        %1828 = vmatprep.subr.mxu0 0.0
        %1829 = vmatpush1.msra.mxu0 %v1026
        %1830 = vmatprep.subr.mxu0 0.0
        %1831 = vmatpush1.msra.mxu0 %v1025
        %1832 = vmatprep.subr.mxu0 0.0
        %1833 = vmatpush2.msra.mxu0 0.0
        %1834 = vmatprep.subr.mxu0 0.0
        %1835 = vmatpush2.msra.mxu0 0.0
        %1836 = vmatprep.subr.mxu0 0.0
        %1837 = vmatpush2.msra.mxu0 0.0
        %1838 = vmatprep.subr.mxu0 0.0
        %1839 = vmatpush2.msra.mxu0 0.0
        %1840 = vmatprep.subr.mxu0 0.0
        %1841 = vmatpush2.msra.mxu0 0.0
        %1842 = vmatprep.subr.mxu0 0.0
        %1843 = vmatpush2.msra.mxu0 0.0
        %1844 = vmatprep.subr.mxu0 0.0
        %1845 = vmatpush2.msra.mxu0 0.0
        %1846 = vmatprep.subr.mxu0 0.0
        %1847 = vmatpush2.msra.mxu0 0.0
        %1848 = vmatprep.subr.mxu0 0.0
        %1849 = vmatpush2.msra.mxu0 0.0
        %1850 = vmatprep.subr.mxu0 0.0
        %1851 = vmatpush2.msra.mxu0 0.0
        %1852 = vmatprep.subr.mxu0 0.0
        %1853 = vmatpush2.msra.mxu0 0.0
        %1854 = vmatprep.subr.mxu0 0.0
        %1855 = vmatpush2.msra.mxu0 0.0
        %1856 = vmatprep.subr.mxu0 0.0
        %1857 = vmatpush2.msra.mxu0 0.0
        %1858 = vmatprep.subr.mxu0 0.0
        %1859 = vmatpush2.msra.mxu0 0.0
        %1860 = vmatprep.subr.mxu0 0.0
        %1861 = vmatpush2.msra.mxu0 0.0
        %1862 = vmatprep.subr.mxu0 0.0
        %1863 = vmatpush2.msra.mxu0 0.0
        %1864 = vmatprep.mubr.f32.mxu0 0.0
        %1865 = vmatmul.mubr.f32.gmra.mxu0 %v1795
        %v1866 = vpop.f32.mrf.mxu0
        %v1867 = vadd.f32 0.0, %v1866
        %v1868 = vpop.f32.mrf.mxu0
        %1869 = vmatprep.mubr.f32.mxu0 0.0
        %1870 = vmatmul.mubr.f32.gmra.mxu0 %v1798
        %v1871 = vpop.f32.mrf.mxu0
        %v1872 = vadd.f32 0.0, %v1871
        %v1873 = vpop.f32.mrf.mxu0
        %1874 = vdwg.mxu0
        %v1875 = vadd.f32 %v1586, %v1867
        %v1876 = vadd.f32 %v1591, %v1872
        %1877 = vrot.lane.b32.xlu0 %v1037, 80
        %v1878 = vpop.permute.xlu0 %1877
        %1879 = vrot.lane.b32.xlu0 %v1038, 80
        %v1880 = vpop.permute.xlu0 %1879
        %1881 = vrot.lane.b32.xlu0 %v915, 80
        %v1882 = vpop.permute.xlu0 %1881
        %1883 = vrot.lane.b32.xlu0 %v920, 80
        %v1884 = vpop.permute.xlu0 %1883
        %v1885 = vsel %vm1039, %v1878, 0
        %v1887 = vsel %vm1039, %v1880, 0
        %v1889 = vsel %vm1039, %v1882, 0
        %v1891 = vsel %vm1039, %v1884, 0
        %1893 = vmatprep.subr.mxu0 0.0
        %1894 = vmatpush1.xpose.msra.mxu0 0.0
        %1895 = vmatprep.subr.mxu0 0.0
        %1896 = vmatpush1.xpose.msra.mxu0 0.0
        %1897 = vmatprep.subr.mxu0 0.0
        %1898 = vmatpush1.xpose.msra.mxu0 0.0
        %1899 = vmatprep.subr.mxu0 0.0
        %1900 = vmatpush1.xpose.msra.mxu0 0.0
        %1901 = vmatprep.subr.mxu0 0.0
        %1902 = vmatpush1.xpose.msra.mxu0 0.0
        %1903 = vmatprep.subr.mxu0 0.0
        %1904 = vmatpush1.xpose.msra.mxu0 0.0
        %1905 = vmatprep.subr.mxu0 0.0
        %1906 = vmatpush1.xpose.msra.mxu0 0.0
        %1907 = vmatprep.subr.mxu0 0.0
        %1908 = vmatpush1.xpose.msra.mxu0 0.0
        %1909 = vmatprep.subr.mxu0 0.0
        %1910 = vmatpush1.xpose.msra.mxu0 0.0
        %1911 = vmatprep.subr.mxu0 0.0
        %1912 = vmatpush1.xpose.msra.mxu0 0.0
        %1913 = vmatprep.subr.mxu0 0.0
        %1914 = vmatpush1.xpose.msra.mxu0 0.0
        %1915 = vmatprep.subr.mxu0 0.0
        %1916 = vmatpush1.xpose.msra.mxu0 0.0
        %1917 = vmatprep.subr.mxu0 0.0
        %1918 = vmatpush1.xpose.msra.mxu0 0.0
        %1919 = vmatprep.subr.mxu0 0.0
        %1920 = vmatpush1.xpose.msra.mxu0 0.0
        %1921 = vmatprep.subr.mxu0 0.0
        %1922 = vmatpush1.xpose.msra.mxu0 %v1891
        %1923 = vmatprep.subr.mxu0 0.0
        %1924 = vmatpush1.xpose.msra.mxu0 %v1889
        %1925 = vmatprep.subr.mxu0 0.0
        %1926 = vmatpush2.xpose.msra.mxu0 0.0
        %1927 = vmatprep.subr.mxu0 0.0
        %1928 = vmatpush2.xpose.msra.mxu0 0.0
        %1929 = vmatprep.subr.mxu0 0.0
        %1930 = vmatpush2.xpose.msra.mxu0 0.0
        %1931 = vmatprep.subr.mxu0 0.0
        %1932 = vmatpush2.xpose.msra.mxu0 0.0
        %1933 = vmatprep.subr.mxu0 0.0
        %1934 = vmatpush2.xpose.msra.mxu0 0.0
        %1935 = vmatprep.subr.mxu0 0.0
        %1936 = vmatpush2.xpose.msra.mxu0 0.0
        %1937 = vmatprep.subr.mxu0 0.0
        %1938 = vmatpush2.xpose.msra.mxu0 0.0
        %1939 = vmatprep.subr.mxu0 0.0
        %1940 = vmatpush2.xpose.msra.mxu0 0.0
        %1941 = vmatprep.subr.mxu0 0.0
        %1942 = vmatpush2.xpose.msra.mxu0 0.0
        %1943 = vmatprep.subr.mxu0 0.0
        %1944 = vmatpush2.xpose.msra.mxu0 0.0
        %1945 = vmatprep.subr.mxu0 0.0
        %1946 = vmatpush2.xpose.msra.mxu0 0.0
        %1947 = vmatprep.subr.mxu0 0.0
        %1948 = vmatpush2.xpose.msra.mxu0 0.0
        %1949 = vmatprep.subr.mxu0 0.0
        %1950 = vmatpush2.xpose.msra.mxu0 0.0
        %1951 = vmatprep.subr.mxu0 0.0
        %1952 = vmatpush2.xpose.msra.mxu0 0.0
        %1953 = vmatprep.subr.mxu0 0.0
        %1954 = vmatpush2.xpose.msra.mxu0 0.0
        %1955 = vmatprep.subr.mxu0 0.0
        %1956 = vmatpush2.xpose.msra.mxu0 0.0
        %1957 = vmatprep.mubr.f32.mxu0 0.0
        %1958 = vmatmul.mubr.f32.gmra.mxu0 %v1885
        %v1959 = vpop.f32.mrf.mxu0
        %v1960 = vadd.f32 0.0, %v1959
        %v1961 = vpop.f32.mrf.mxu0
        %1962 = vmatprep.mubr.f32.mxu0 0.0
        %1963 = vmatmul.mubr.f32.gmra.mxu0 %v1887
        %v1964 = vpop.f32.mrf.mxu0
        %v1965 = vadd.f32 0.0, %v1964
        %v1966 = vpop.f32.mrf.mxu0
        %1967 = vdwg.mxu0
        %v1968 = vsel %vm1039, %v1960, -inf
        %1969 = vmax.xlane.f32.xlu0 %v1968
        %v1970 = vpop.xlane.xlu0 %1969
        %v1971 = vsel %vm1039, %v1965, -inf
        %1972 = vmax.xlane.f32.xlu0 %v1971
        %v1973 = vpop.xlane.xlu0 %1972
        %v1974 = vsub.f32 %v1960, %v1970
        %v1975 = vsub.f32 %v1965, %v1973
        %v1976 = vmul.f32 %v1974, 1.442695
        %v1977 = vpow.pop %v1976
        %v1978 = vmul.f32 %v1975, 1.442695
        %v1979 = vpow.pop %v1978
        %v1980 = vsel %vm1039, %v1977, 0.0
        %1981 = vadd.xlane.f32.xlu0 %v1980
        %v1982 = vpop.xlane.xlu0 %1981
        %v1983 = vsel %vm1039, %v1979, 0.0
        %1984 = vadd.xlane.f32.xlu0 %v1983
        %v1985 = vpop.xlane.xlu0 %1984
        %v1986 = vrcp.pop %v1982
        %v1987 = vmul.f32 %v1977, %v1986
        %v1988 = vrcp.pop %v1985
        %v1989 = vmul.f32 %v1979, %v1988
        %1990 = vrot.lane.b32.xlu0 %v1013, 80
        %v1991 = vpop.permute.xlu0 %1990
        %1992 = vrot.lane.b32.xlu0 %v1018, 80
        %v1993 = vpop.permute.xlu0 %1992
        %v1997 = vsel %vm1039, %v1987, 0
        %v2000 = vsel %vm1039, %v1989, 0
        %2002 = vmatprep.subr.mxu0 0.0
        %2003 = vmatpush1.msra.mxu0 0.0
        %2004 = vmatprep.subr.mxu0 0.0
        %2005 = vmatpush1.msra.mxu0 0.0
        %2006 = vmatprep.subr.mxu0 0.0
        %2007 = vmatpush1.msra.mxu0 0.0
        %2008 = vmatprep.subr.mxu0 0.0
        %2009 = vmatpush1.msra.mxu0 0.0
        %2010 = vmatprep.subr.mxu0 0.0
        %2011 = vmatpush1.msra.mxu0 0.0
        %2012 = vmatprep.subr.mxu0 0.0
        %2013 = vmatpush1.msra.mxu0 0.0
        %2014 = vmatprep.subr.mxu0 0.0
        %2015 = vmatpush1.msra.mxu0 0.0
        %2016 = vmatprep.subr.mxu0 0.0
        %2017 = vmatpush1.msra.mxu0 0.0
        %2018 = vmatprep.subr.mxu0 0.0
        %2019 = vmatpush1.msra.mxu0 0.0
        %2020 = vmatprep.subr.mxu0 0.0
        %2021 = vmatpush1.msra.mxu0 0.0
        %2022 = vmatprep.subr.mxu0 0.0
        %2023 = vmatpush1.msra.mxu0 0.0
        %2024 = vmatprep.subr.mxu0 0.0
        %2025 = vmatpush1.msra.mxu0 0.0
        %2026 = vmatprep.subr.mxu0 0.0
        %2027 = vmatpush1.msra.mxu0 0.0
        %2028 = vmatprep.subr.mxu0 0.0
        %2029 = vmatpush1.msra.mxu0 0.0
        %2030 = vmatprep.subr.mxu0 0.0
        %2031 = vmatpush1.msra.mxu0 %v1993
        %2032 = vmatprep.subr.mxu0 0.0
        %2033 = vmatpush1.msra.mxu0 %v1991
        %2034 = vmatprep.subr.mxu0 0.0
        %2035 = vmatpush2.msra.mxu0 0.0
        %2036 = vmatprep.subr.mxu0 0.0
        %2037 = vmatpush2.msra.mxu0 0.0
        %2038 = vmatprep.subr.mxu0 0.0
        %2039 = vmatpush2.msra.mxu0 0.0
        %2040 = vmatprep.subr.mxu0 0.0
        %2041 = vmatpush2.msra.mxu0 0.0
        %2042 = vmatprep.subr.mxu0 0.0
        %2043 = vmatpush2.msra.mxu0 0.0
        %2044 = vmatprep.subr.mxu0 0.0
        %2045 = vmatpush2.msra.mxu0 0.0
        %2046 = vmatprep.subr.mxu0 0.0
        %2047 = vmatpush2.msra.mxu0 0.0
        %2048 = vmatprep.subr.mxu0 0.0
        %2049 = vmatpush2.msra.mxu0 0.0
        %2050 = vmatprep.subr.mxu0 0.0
        %2051 = vmatpush2.msra.mxu0 0.0
        %2052 = vmatprep.subr.mxu0 0.0
        %2053 = vmatpush2.msra.mxu0 0.0
        %2054 = vmatprep.subr.mxu0 0.0
        %2055 = vmatpush2.msra.mxu0 0.0
        %2056 = vmatprep.subr.mxu0 0.0
        %2057 = vmatpush2.msra.mxu0 0.0
        %2058 = vmatprep.subr.mxu0 0.0
        %2059 = vmatpush2.msra.mxu0 0.0
        %2060 = vmatprep.subr.mxu0 0.0
        %2061 = vmatpush2.msra.mxu0 0.0
        %2062 = vmatprep.subr.mxu0 0.0
        %2063 = vmatpush2.msra.mxu0 0.0
        %2064 = vmatprep.subr.mxu0 0.0
        %2065 = vmatpush2.msra.mxu0 0.0
        %2066 = vmatprep.mubr.f32.mxu0 0.0
        %2067 = vmatmul.mubr.f32.gmra.mxu0 %v1997
        %v2068 = vpop.f32.mrf.mxu0
        %v2069 = vadd.f32 0.0, %v2068
        %v2070 = vpop.f32.mrf.mxu0
        %2071 = vmatprep.mubr.f32.mxu0 0.0
        %2072 = vmatmul.mubr.f32.gmra.mxu0 %v2000
        %v2073 = vpop.f32.mrf.mxu0
        %v2074 = vadd.f32 0.0, %v2073
        %v2075 = vpop.f32.mrf.mxu0
        %2076 = vdwg.mxu0
        %v2078 = vsel %vm1039, %v2069, 0
        %v2081 = vsel %vm1039, %v2074, 0
        %2083 = vmatprep.subr.mxu0 0.0
        %2084 = vmatpush1.msra.mxu0 0.0
        %2085 = vmatprep.subr.mxu0 0.0
        %2086 = vmatpush1.msra.mxu0 0.0
        %2087 = vmatprep.subr.mxu0 0.0
        %2088 = vmatpush1.msra.mxu0 0.0
        %2089 = vmatprep.subr.mxu0 0.0
        %2090 = vmatpush1.msra.mxu0 0.0
        %2091 = vmatprep.subr.mxu0 0.0
        %2092 = vmatpush1.msra.mxu0 0.0
        %2093 = vmatprep.subr.mxu0 0.0
        %2094 = vmatpush1.msra.mxu0 0.0
        %2095 = vmatprep.subr.mxu0 0.0
        %2096 = vmatpush1.msra.mxu0 0.0
        %2097 = vmatprep.subr.mxu0 0.0
        %2098 = vmatpush1.msra.mxu0 0.0
        %2099 = vmatprep.subr.mxu0 0.0
        %2100 = vmatpush1.msra.mxu0 0.0
        %2101 = vmatprep.subr.mxu0 0.0
        %2102 = vmatpush1.msra.mxu0 0.0
        %2103 = vmatprep.subr.mxu0 0.0
        %2104 = vmatpush1.msra.mxu0 0.0
        %2105 = vmatprep.subr.mxu0 0.0
        %2106 = vmatpush1.msra.mxu0 0.0
        %2107 = vmatprep.subr.mxu0 0.0
        %2108 = vmatpush1.msra.mxu0 0.0
        %2109 = vmatprep.subr.mxu0 0.0
        %2110 = vmatpush1.msra.mxu0 0.0
        %2111 = vmatprep.subr.mxu0 0.0
        %2112 = vmatpush1.msra.mxu0 %v1028
        %2113 = vmatprep.subr.mxu0 0.0
        %2114 = vmatpush1.msra.mxu0 %v1027
        %2115 = vmatprep.subr.mxu0 0.0
        %2116 = vmatpush2.msra.mxu0 0.0
        %2117 = vmatprep.subr.mxu0 0.0
        %2118 = vmatpush2.msra.mxu0 0.0
        %2119 = vmatprep.subr.mxu0 0.0
        %2120 = vmatpush2.msra.mxu0 0.0
        %2121 = vmatprep.subr.mxu0 0.0
        %2122 = vmatpush2.msra.mxu0 0.0
        %2123 = vmatprep.subr.mxu0 0.0
        %2124 = vmatpush2.msra.mxu0 0.0
        %2125 = vmatprep.subr.mxu0 0.0
        %2126 = vmatpush2.msra.mxu0 0.0
        %2127 = vmatprep.subr.mxu0 0.0
        %2128 = vmatpush2.msra.mxu0 0.0
        %2129 = vmatprep.subr.mxu0 0.0
        %2130 = vmatpush2.msra.mxu0 0.0
        %2131 = vmatprep.subr.mxu0 0.0
        %2132 = vmatpush2.msra.mxu0 0.0
        %2133 = vmatprep.subr.mxu0 0.0
        %2134 = vmatpush2.msra.mxu0 0.0
        %2135 = vmatprep.subr.mxu0 0.0
        %2136 = vmatpush2.msra.mxu0 0.0
        %2137 = vmatprep.subr.mxu0 0.0
        %2138 = vmatpush2.msra.mxu0 0.0
        %2139 = vmatprep.subr.mxu0 0.0
        %2140 = vmatpush2.msra.mxu0 0.0
        %2141 = vmatprep.subr.mxu0 0.0
        %2142 = vmatpush2.msra.mxu0 0.0
        %2143 = vmatprep.subr.mxu0 0.0
        %2144 = vmatpush2.msra.mxu0 0.0
        %2145 = vmatprep.subr.mxu0 0.0
        %2146 = vmatpush2.msra.mxu0 0.0
        %2147 = vmatprep.mubr.f32.mxu0 0.0
        %2148 = vmatmul.mubr.f32.gmra.mxu0 %v2078
        %v2149 = vpop.f32.mrf.mxu0
        %v2150 = vadd.f32 0.0, %v2149
        %v2151 = vpop.f32.mrf.mxu0
        %2152 = vmatprep.mubr.f32.mxu0 0.0
        %2153 = vmatmul.mubr.f32.gmra.mxu0 %v2081
        %v2154 = vpop.f32.mrf.mxu0
        %v2155 = vadd.f32 0.0, %v2154
        %v2156 = vpop.f32.mrf.mxu0
        %2157 = vdwg.mxu0
        %v2158 = vadd.f32 %v1875, %v2150
        %v2159 = vadd.f32 %v1876, %v2155
        %2160 = vrot.lane.b32.xlu0 %v1037, 64
        %v2161 = vpop.permute.xlu0 %2160
        %2162 = vrot.lane.b32.xlu0 %v1038, 64
        %v2163 = vpop.permute.xlu0 %2162
        %2164 = vrot.lane.b32.xlu0 %v915, 64
        %v2165 = vpop.permute.xlu0 %2164
        %2166 = vrot.lane.b32.xlu0 %v920, 64
        %v2167 = vpop.permute.xlu0 %2166
        %v2168 = vsel %vm1039, %v2161, 0
        %v2170 = vsel %vm1039, %v2163, 0
        %v2172 = vsel %vm1039, %v2165, 0
        %v2174 = vsel %vm1039, %v2167, 0
        %2176 = vmatprep.subr.mxu0 0.0
        %2177 = vmatpush1.xpose.msra.mxu0 0.0
        %2178 = vmatprep.subr.mxu0 0.0
        %2179 = vmatpush1.xpose.msra.mxu0 0.0
        %2180 = vmatprep.subr.mxu0 0.0
        %2181 = vmatpush1.xpose.msra.mxu0 0.0
        %2182 = vmatprep.subr.mxu0 0.0
        %2183 = vmatpush1.xpose.msra.mxu0 0.0
        %2184 = vmatprep.subr.mxu0 0.0
        %2185 = vmatpush1.xpose.msra.mxu0 0.0
        %2186 = vmatprep.subr.mxu0 0.0
        %2187 = vmatpush1.xpose.msra.mxu0 0.0
        %2188 = vmatprep.subr.mxu0 0.0
        %2189 = vmatpush1.xpose.msra.mxu0 0.0
        %2190 = vmatprep.subr.mxu0 0.0
        %2191 = vmatpush1.xpose.msra.mxu0 0.0
        %2192 = vmatprep.subr.mxu0 0.0
        %2193 = vmatpush1.xpose.msra.mxu0 0.0
        %2194 = vmatprep.subr.mxu0 0.0
        %2195 = vmatpush1.xpose.msra.mxu0 0.0
        %2196 = vmatprep.subr.mxu0 0.0
        %2197 = vmatpush1.xpose.msra.mxu0 0.0
        %2198 = vmatprep.subr.mxu0 0.0
        %2199 = vmatpush1.xpose.msra.mxu0 0.0
        %2200 = vmatprep.subr.mxu0 0.0
        %2201 = vmatpush1.xpose.msra.mxu0 0.0
        %2202 = vmatprep.subr.mxu0 0.0
        %2203 = vmatpush1.xpose.msra.mxu0 0.0
        %2204 = vmatprep.subr.mxu0 0.0
        %2205 = vmatpush1.xpose.msra.mxu0 %v2174
        %2206 = vmatprep.subr.mxu0 0.0
        %2207 = vmatpush1.xpose.msra.mxu0 %v2172
        %2208 = vmatprep.subr.mxu0 0.0
        %2209 = vmatpush2.xpose.msra.mxu0 0.0
        %2210 = vmatprep.subr.mxu0 0.0
        %2211 = vmatpush2.xpose.msra.mxu0 0.0
        %2212 = vmatprep.subr.mxu0 0.0
        %2213 = vmatpush2.xpose.msra.mxu0 0.0
        %2214 = vmatprep.subr.mxu0 0.0
        %2215 = vmatpush2.xpose.msra.mxu0 0.0
        %2216 = vmatprep.subr.mxu0 0.0
        %2217 = vmatpush2.xpose.msra.mxu0 0.0
        %2218 = vmatprep.subr.mxu0 0.0
        %2219 = vmatpush2.xpose.msra.mxu0 0.0
        %2220 = vmatprep.subr.mxu0 0.0
        %2221 = vmatpush2.xpose.msra.mxu0 0.0
        %2222 = vmatprep.subr.mxu0 0.0
        %2223 = vmatpush2.xpose.msra.mxu0 0.0
        %2224 = vmatprep.subr.mxu0 0.0
        %2225 = vmatpush2.xpose.msra.mxu0 0.0
        %2226 = vmatprep.subr.mxu0 0.0
        %2227 = vmatpush2.xpose.msra.mxu0 0.0
        %2228 = vmatprep.subr.mxu0 0.0
        %2229 = vmatpush2.xpose.msra.mxu0 0.0
        %2230 = vmatprep.subr.mxu0 0.0
        %2231 = vmatpush2.xpose.msra.mxu0 0.0
        %2232 = vmatprep.subr.mxu0 0.0
        %2233 = vmatpush2.xpose.msra.mxu0 0.0
        %2234 = vmatprep.subr.mxu0 0.0
        %2235 = vmatpush2.xpose.msra.mxu0 0.0
        %2236 = vmatprep.subr.mxu0 0.0
        %2237 = vmatpush2.xpose.msra.mxu0 0.0
        %2238 = vmatprep.subr.mxu0 0.0
        %2239 = vmatpush2.xpose.msra.mxu0 0.0
        %2240 = vmatprep.mubr.f32.mxu0 0.0
        %2241 = vmatmul.mubr.f32.gmra.mxu0 %v2168
        %v2242 = vpop.f32.mrf.mxu0
        %v2243 = vadd.f32 0.0, %v2242
        %v2244 = vpop.f32.mrf.mxu0
        %2245 = vmatprep.mubr.f32.mxu0 0.0
        %2246 = vmatmul.mubr.f32.gmra.mxu0 %v2170
        %v2247 = vpop.f32.mrf.mxu0
        %v2248 = vadd.f32 0.0, %v2247
        %v2249 = vpop.f32.mrf.mxu0
        %2250 = vdwg.mxu0
        %v2251 = vsel %vm1039, %v2243, -inf
        %2252 = vmax.xlane.f32.xlu0 %v2251
        %v2253 = vpop.xlane.xlu0 %2252
        %v2254 = vsel %vm1039, %v2248, -inf
        %2255 = vmax.xlane.f32.xlu0 %v2254
        %v2256 = vpop.xlane.xlu0 %2255
        %v2257 = vsub.f32 %v2243, %v2253
        %v2258 = vsub.f32 %v2248, %v2256
        %v2259 = vmul.f32 %v2257, 1.442695
        %v2260 = vpow.pop %v2259
        %v2261 = vmul.f32 %v2258, 1.442695
        %v2262 = vpow.pop %v2261
        %v2263 = vsel %vm1039, %v2260, 0.0
        %2264 = vadd.xlane.f32.xlu0 %v2263
        %v2265 = vpop.xlane.xlu0 %2264
        %v2266 = vsel %vm1039, %v2262, 0.0
        %2267 = vadd.xlane.f32.xlu0 %v2266
        %v2268 = vpop.xlane.xlu0 %2267
        %v2269 = vrcp.pop %v2265
        %v2270 = vmul.f32 %v2260, %v2269
        %v2271 = vrcp.pop %v2268
        %v2272 = vmul.f32 %v2262, %v2271
        %2273 = vrot.lane.b32.xlu0 %v1013, 64
        %v2274 = vpop.permute.xlu0 %2273
        %2275 = vrot.lane.b32.xlu0 %v1018, 64
        %v2276 = vpop.permute.xlu0 %2275
        %v2280 = vsel %vm1039, %v2270, 0
        %v2283 = vsel %vm1039, %v2272, 0
        %2285 = vmatprep.subr.mxu0 0.0
        %2286 = vmatpush1.msra.mxu0 0.0
        %2287 = vmatprep.subr.mxu0 0.0
        %2288 = vmatpush1.msra.mxu0 0.0
        %2289 = vmatprep.subr.mxu0 0.0
        %2290 = vmatpush1.msra.mxu0 0.0
        %2291 = vmatprep.subr.mxu0 0.0
        %2292 = vmatpush1.msra.mxu0 0.0
        %2293 = vmatprep.subr.mxu0 0.0
        %2294 = vmatpush1.msra.mxu0 0.0
        %2295 = vmatprep.subr.mxu0 0.0
        %2296 = vmatpush1.msra.mxu0 0.0
        %2297 = vmatprep.subr.mxu0 0.0
        %2298 = vmatpush1.msra.mxu0 0.0
        %2299 = vmatprep.subr.mxu0 0.0
        %2300 = vmatpush1.msra.mxu0 0.0
        %2301 = vmatprep.subr.mxu0 0.0
        %2302 = vmatpush1.msra.mxu0 0.0
        %2303 = vmatprep.subr.mxu0 0.0
        %2304 = vmatpush1.msra.mxu0 0.0
        %2305 = vmatprep.subr.mxu0 0.0
        %2306 = vmatpush1.msra.mxu0 0.0
        %2307 = vmatprep.subr.mxu0 0.0
        %2308 = vmatpush1.msra.mxu0 0.0
        %2309 = vmatprep.subr.mxu0 0.0
        %2310 = vmatpush1.msra.mxu0 0.0
        %2311 = vmatprep.subr.mxu0 0.0
        %2312 = vmatpush1.msra.mxu0 0.0
        %2313 = vmatprep.subr.mxu0 0.0
        %2314 = vmatpush1.msra.mxu0 %v2276
        %2315 = vmatprep.subr.mxu0 0.0
        %2316 = vmatpush1.msra.mxu0 %v2274
        %2317 = vmatprep.subr.mxu0 0.0
        %2318 = vmatpush2.msra.mxu0 0.0
        %2319 = vmatprep.subr.mxu0 0.0
        %2320 = vmatpush2.msra.mxu0 0.0
        %2321 = vmatprep.subr.mxu0 0.0
        %2322 = vmatpush2.msra.mxu0 0.0
        %2323 = vmatprep.subr.mxu0 0.0
        %2324 = vmatpush2.msra.mxu0 0.0
        %2325 = vmatprep.subr.mxu0 0.0
        %2326 = vmatpush2.msra.mxu0 0.0
        %2327 = vmatprep.subr.mxu0 0.0
        %2328 = vmatpush2.msra.mxu0 0.0
        %2329 = vmatprep.subr.mxu0 0.0
        %2330 = vmatpush2.msra.mxu0 0.0
        %2331 = vmatprep.subr.mxu0 0.0
        %2332 = vmatpush2.msra.mxu0 0.0
        %2333 = vmatprep.subr.mxu0 0.0
        %2334 = vmatpush2.msra.mxu0 0.0
        %2335 = vmatprep.subr.mxu0 0.0
        %2336 = vmatpush2.msra.mxu0 0.0
        %2337 = vmatprep.subr.mxu0 0.0
        %2338 = vmatpush2.msra.mxu0 0.0
        %2339 = vmatprep.subr.mxu0 0.0
        %2340 = vmatpush2.msra.mxu0 0.0
        %2341 = vmatprep.subr.mxu0 0.0
        %2342 = vmatpush2.msra.mxu0 0.0
        %2343 = vmatprep.subr.mxu0 0.0
        %2344 = vmatpush2.msra.mxu0 0.0
        %2345 = vmatprep.subr.mxu0 0.0
        %2346 = vmatpush2.msra.mxu0 0.0
        %2347 = vmatprep.subr.mxu0 0.0
        %2348 = vmatpush2.msra.mxu0 0.0
        %2349 = vmatprep.mubr.f32.mxu0 0.0
        %2350 = vmatmul.mubr.f32.gmra.mxu0 %v2280
        %v2351 = vpop.f32.mrf.mxu0
        %v2352 = vadd.f32 0.0, %v2351
        %v2353 = vpop.f32.mrf.mxu0
        %2354 = vmatprep.mubr.f32.mxu0 0.0
        %2355 = vmatmul.mubr.f32.gmra.mxu0 %v2283
        %v2356 = vpop.f32.mrf.mxu0
        %v2357 = vadd.f32 0.0, %v2356
        %v2358 = vpop.f32.mrf.mxu0
        %2359 = vdwg.mxu0
        %v2361 = vsel %vm1039, %v2352, 0
        %v2364 = vsel %vm1039, %v2357, 0
        %2366 = vmatprep.subr.mxu0 0.0
        %2367 = vmatpush1.msra.mxu0 0.0
        %2368 = vmatprep.subr.mxu0 0.0
        %2369 = vmatpush1.msra.mxu0 0.0
        %2370 = vmatprep.subr.mxu0 0.0
        %2371 = vmatpush1.msra.mxu0 0.0
        %2372 = vmatprep.subr.mxu0 0.0
        %2373 = vmatpush1.msra.mxu0 0.0
        %2374 = vmatprep.subr.mxu0 0.0
        %2375 = vmatpush1.msra.mxu0 0.0
        %2376 = vmatprep.subr.mxu0 0.0
        %2377 = vmatpush1.msra.mxu0 0.0
        %2378 = vmatprep.subr.mxu0 0.0
        %2379 = vmatpush1.msra.mxu0 0.0
        %2380 = vmatprep.subr.mxu0 0.0
        %2381 = vmatpush1.msra.mxu0 0.0
        %2382 = vmatprep.subr.mxu0 0.0
        %2383 = vmatpush1.msra.mxu0 0.0
        %2384 = vmatprep.subr.mxu0 0.0
        %2385 = vmatpush1.msra.mxu0 0.0
        %2386 = vmatprep.subr.mxu0 0.0
        %2387 = vmatpush1.msra.mxu0 0.0
        %2388 = vmatprep.subr.mxu0 0.0
        %2389 = vmatpush1.msra.mxu0 0.0
        %2390 = vmatprep.subr.mxu0 0.0
        %2391 = vmatpush1.msra.mxu0 0.0
        %2392 = vmatprep.subr.mxu0 0.0
        %2393 = vmatpush1.msra.mxu0 0.0
        %2394 = vmatprep.subr.mxu0 0.0
        %2395 = vmatpush1.msra.mxu0 %v1030
        %2396 = vmatprep.subr.mxu0 0.0
        %2397 = vmatpush1.msra.mxu0 %v1029
        %2398 = vmatprep.subr.mxu0 0.0
        %2399 = vmatpush2.msra.mxu0 0.0
        %2400 = vmatprep.subr.mxu0 0.0
        %2401 = vmatpush2.msra.mxu0 0.0
        %2402 = vmatprep.subr.mxu0 0.0
        %2403 = vmatpush2.msra.mxu0 0.0
        %2404 = vmatprep.subr.mxu0 0.0
        %2405 = vmatpush2.msra.mxu0 0.0
        %2406 = vmatprep.subr.mxu0 0.0
        %2407 = vmatpush2.msra.mxu0 0.0
        %2408 = vmatprep.subr.mxu0 0.0
        %2409 = vmatpush2.msra.mxu0 0.0
        %2410 = vmatprep.subr.mxu0 0.0
        %2411 = vmatpush2.msra.mxu0 0.0
        %2412 = vmatprep.subr.mxu0 0.0
        %2413 = vmatpush2.msra.mxu0 0.0
        %2414 = vmatprep.subr.mxu0 0.0
        %2415 = vmatpush2.msra.mxu0 0.0
        %2416 = vmatprep.subr.mxu0 0.0
        %2417 = vmatpush2.msra.mxu0 0.0
        %2418 = vmatprep.subr.mxu0 0.0
        %2419 = vmatpush2.msra.mxu0 0.0
        %2420 = vmatprep.subr.mxu0 0.0
        %2421 = vmatpush2.msra.mxu0 0.0
        %2422 = vmatprep.subr.mxu0 0.0
        %2423 = vmatpush2.msra.mxu0 0.0
        %2424 = vmatprep.subr.mxu0 0.0
        %2425 = vmatpush2.msra.mxu0 0.0
        %2426 = vmatprep.subr.mxu0 0.0
        %2427 = vmatpush2.msra.mxu0 0.0
        %2428 = vmatprep.subr.mxu0 0.0
        %2429 = vmatpush2.msra.mxu0 0.0
        %2430 = vmatprep.mubr.f32.mxu0 0.0
        %2431 = vmatmul.mubr.f32.gmra.mxu0 %v2361
        %v2432 = vpop.f32.mrf.mxu0
        %v2433 = vadd.f32 0.0, %v2432
        %v2434 = vpop.f32.mrf.mxu0
        %2435 = vmatprep.mubr.f32.mxu0 0.0
        %2436 = vmatmul.mubr.f32.gmra.mxu0 %v2364
        %v2437 = vpop.f32.mrf.mxu0
        %v2438 = vadd.f32 0.0, %v2437
        %v2439 = vpop.f32.mrf.mxu0
        %2440 = vdwg.mxu0
        %v2441 = vadd.f32 %v2158, %v2433
        %v2442 = vadd.f32 %v2159, %v2438
        %2443 = vrot.lane.b32.xlu0 %v1037, 48
        %v2444 = vpop.permute.xlu0 %2443
        %2445 = vrot.lane.b32.xlu0 %v1038, 48
        %v2446 = vpop.permute.xlu0 %2445
        %2447 = vrot.lane.b32.xlu0 %v915, 48
        %v2448 = vpop.permute.xlu0 %2447
        %2449 = vrot.lane.b32.xlu0 %v920, 48
        %v2450 = vpop.permute.xlu0 %2449
        %v2451 = vsel %vm1039, %v2444, 0
        %v2453 = vsel %vm1039, %v2446, 0
        %v2455 = vsel %vm1039, %v2448, 0
        %v2457 = vsel %vm1039, %v2450, 0
        %2459 = vmatprep.subr.mxu0 0.0
        %2460 = vmatpush1.xpose.msra.mxu0 0.0
        %2461 = vmatprep.subr.mxu0 0.0
        %2462 = vmatpush1.xpose.msra.mxu0 0.0
        %2463 = vmatprep.subr.mxu0 0.0
        %2464 = vmatpush1.xpose.msra.mxu0 0.0
        %2465 = vmatprep.subr.mxu0 0.0
        %2466 = vmatpush1.xpose.msra.mxu0 0.0
        %2467 = vmatprep.subr.mxu0 0.0
        %2468 = vmatpush1.xpose.msra.mxu0 0.0
        %2469 = vmatprep.subr.mxu0 0.0
        %2470 = vmatpush1.xpose.msra.mxu0 0.0
        %2471 = vmatprep.subr.mxu0 0.0
        %2472 = vmatpush1.xpose.msra.mxu0 0.0
        %2473 = vmatprep.subr.mxu0 0.0
        %2474 = vmatpush1.xpose.msra.mxu0 0.0
        %2475 = vmatprep.subr.mxu0 0.0
        %2476 = vmatpush1.xpose.msra.mxu0 0.0
        %2477 = vmatprep.subr.mxu0 0.0
        %2478 = vmatpush1.xpose.msra.mxu0 0.0
        %2479 = vmatprep.subr.mxu0 0.0
        %2480 = vmatpush1.xpose.msra.mxu0 0.0
        %2481 = vmatprep.subr.mxu0 0.0
        %2482 = vmatpush1.xpose.msra.mxu0 0.0
        %2483 = vmatprep.subr.mxu0 0.0
        %2484 = vmatpush1.xpose.msra.mxu0 0.0
        %2485 = vmatprep.subr.mxu0 0.0
        %2486 = vmatpush1.xpose.msra.mxu0 0.0
        %2487 = vmatprep.subr.mxu0 0.0
        %2488 = vmatpush1.xpose.msra.mxu0 %v2457
        %2489 = vmatprep.subr.mxu0 0.0
        %2490 = vmatpush1.xpose.msra.mxu0 %v2455
        %2491 = vmatprep.subr.mxu0 0.0
        %2492 = vmatpush2.xpose.msra.mxu0 0.0
        %2493 = vmatprep.subr.mxu0 0.0
        %2494 = vmatpush2.xpose.msra.mxu0 0.0
        %2495 = vmatprep.subr.mxu0 0.0
        %2496 = vmatpush2.xpose.msra.mxu0 0.0
        %2497 = vmatprep.subr.mxu0 0.0
        %2498 = vmatpush2.xpose.msra.mxu0 0.0
        %2499 = vmatprep.subr.mxu0 0.0
        %2500 = vmatpush2.xpose.msra.mxu0 0.0
        %2501 = vmatprep.subr.mxu0 0.0
        %2502 = vmatpush2.xpose.msra.mxu0 0.0
        %2503 = vmatprep.subr.mxu0 0.0
        %2504 = vmatpush2.xpose.msra.mxu0 0.0
        %2505 = vmatprep.subr.mxu0 0.0
        %2506 = vmatpush2.xpose.msra.mxu0 0.0
        %2507 = vmatprep.subr.mxu0 0.0
        %2508 = vmatpush2.xpose.msra.mxu0 0.0
        %2509 = vmatprep.subr.mxu0 0.0
        %2510 = vmatpush2.xpose.msra.mxu0 0.0
        %2511 = vmatprep.subr.mxu0 0.0
        %2512 = vmatpush2.xpose.msra.mxu0 0.0
        %2513 = vmatprep.subr.mxu0 0.0
        %2514 = vmatpush2.xpose.msra.mxu0 0.0
        %2515 = vmatprep.subr.mxu0 0.0
        %2516 = vmatpush2.xpose.msra.mxu0 0.0
        %2517 = vmatprep.subr.mxu0 0.0
        %2518 = vmatpush2.xpose.msra.mxu0 0.0
        %2519 = vmatprep.subr.mxu0 0.0
        %2520 = vmatpush2.xpose.msra.mxu0 0.0
        %2521 = vmatprep.subr.mxu0 0.0
        %2522 = vmatpush2.xpose.msra.mxu0 0.0
        %2523 = vmatprep.mubr.f32.mxu0 0.0
        %2524 = vmatmul.mubr.f32.gmra.mxu0 %v2451
        %v2525 = vpop.f32.mrf.mxu0
        %v2526 = vadd.f32 0.0, %v2525
        %v2527 = vpop.f32.mrf.mxu0
        %2528 = vmatprep.mubr.f32.mxu0 0.0
        %2529 = vmatmul.mubr.f32.gmra.mxu0 %v2453
        %v2530 = vpop.f32.mrf.mxu0
        %v2531 = vadd.f32 0.0, %v2530
        %v2532 = vpop.f32.mrf.mxu0
        %2533 = vdwg.mxu0
        %v2534 = vsel %vm1039, %v2526, -inf
        %2535 = vmax.xlane.f32.xlu0 %v2534
        %v2536 = vpop.xlane.xlu0 %2535
        %v2537 = vsel %vm1039, %v2531, -inf
        %2538 = vmax.xlane.f32.xlu0 %v2537
        %v2539 = vpop.xlane.xlu0 %2538
        %v2540 = vsub.f32 %v2526, %v2536
        %v2541 = vsub.f32 %v2531, %v2539
        %v2542 = vmul.f32 %v2540, 1.442695
        %v2543 = vpow.pop %v2542
        %v2544 = vmul.f32 %v2541, 1.442695
        %v2545 = vpow.pop %v2544
        %v2546 = vsel %vm1039, %v2543, 0.0
        %2547 = vadd.xlane.f32.xlu0 %v2546
        %v2548 = vpop.xlane.xlu0 %2547
        %v2549 = vsel %vm1039, %v2545, 0.0
        %2550 = vadd.xlane.f32.xlu0 %v2549
        %v2551 = vpop.xlane.xlu0 %2550
        %v2552 = vrcp.pop %v2548
        %v2553 = vmul.f32 %v2543, %v2552
        %v2554 = vrcp.pop %v2551
        %v2555 = vmul.f32 %v2545, %v2554
        %2556 = vrot.lane.b32.xlu0 %v1013, 48
        %v2557 = vpop.permute.xlu0 %2556
        %2558 = vrot.lane.b32.xlu0 %v1018, 48
        %v2559 = vpop.permute.xlu0 %2558
        %v2563 = vsel %vm1039, %v2553, 0
        %v2566 = vsel %vm1039, %v2555, 0
        %2568 = vmatprep.subr.mxu0 0.0
        %2569 = vmatpush1.msra.mxu0 0.0
        %2570 = vmatprep.subr.mxu0 0.0
        %2571 = vmatpush1.msra.mxu0 0.0
        %2572 = vmatprep.subr.mxu0 0.0
        %2573 = vmatpush1.msra.mxu0 0.0
        %2574 = vmatprep.subr.mxu0 0.0
        %2575 = vmatpush1.msra.mxu0 0.0
        %2576 = vmatprep.subr.mxu0 0.0
        %2577 = vmatpush1.msra.mxu0 0.0
        %2578 = vmatprep.subr.mxu0 0.0
        %2579 = vmatpush1.msra.mxu0 0.0
        %2580 = vmatprep.subr.mxu0 0.0
        %2581 = vmatpush1.msra.mxu0 0.0
        %2582 = vmatprep.subr.mxu0 0.0
        %2583 = vmatpush1.msra.mxu0 0.0
        %2584 = vmatprep.subr.mxu0 0.0
        %2585 = vmatpush1.msra.mxu0 0.0
        %2586 = vmatprep.subr.mxu0 0.0
        %2587 = vmatpush1.msra.mxu0 0.0
        %2588 = vmatprep.subr.mxu0 0.0
        %2589 = vmatpush1.msra.mxu0 0.0
        %2590 = vmatprep.subr.mxu0 0.0
        %2591 = vmatpush1.msra.mxu0 0.0
        %2592 = vmatprep.subr.mxu0 0.0
        %2593 = vmatpush1.msra.mxu0 0.0
        %2594 = vmatprep.subr.mxu0 0.0
        %2595 = vmatpush1.msra.mxu0 0.0
        %2596 = vmatprep.subr.mxu0 0.0
        %2597 = vmatpush1.msra.mxu0 %v2559
        %2598 = vmatprep.subr.mxu0 0.0
        %2599 = vmatpush1.msra.mxu0 %v2557
        %2600 = vmatprep.subr.mxu0 0.0
        %2601 = vmatpush2.msra.mxu0 0.0
        %2602 = vmatprep.subr.mxu0 0.0
        %2603 = vmatpush2.msra.mxu0 0.0
        %2604 = vmatprep.subr.mxu0 0.0
        %2605 = vmatpush2.msra.mxu0 0.0
        %2606 = vmatprep.subr.mxu0 0.0
        %2607 = vmatpush2.msra.mxu0 0.0
        %2608 = vmatprep.subr.mxu0 0.0
        %2609 = vmatpush2.msra.mxu0 0.0
        %2610 = vmatprep.subr.mxu0 0.0
        %2611 = vmatpush2.msra.mxu0 0.0
        %2612 = vmatprep.subr.mxu0 0.0
        %2613 = vmatpush2.msra.mxu0 0.0
        %2614 = vmatprep.subr.mxu0 0.0
        %2615 = vmatpush2.msra.mxu0 0.0
        %2616 = vmatprep.subr.mxu0 0.0
        %2617 = vmatpush2.msra.mxu0 0.0
        %2618 = vmatprep.subr.mxu0 0.0
        %2619 = vmatpush2.msra.mxu0 0.0
        %2620 = vmatprep.subr.mxu0 0.0
        %2621 = vmatpush2.msra.mxu0 0.0
        %2622 = vmatprep.subr.mxu0 0.0
        %2623 = vmatpush2.msra.mxu0 0.0
        %2624 = vmatprep.subr.mxu0 0.0
        %2625 = vmatpush2.msra.mxu0 0.0
        %2626 = vmatprep.subr.mxu0 0.0
        %2627 = vmatpush2.msra.mxu0 0.0
        %2628 = vmatprep.subr.mxu0 0.0
        %2629 = vmatpush2.msra.mxu0 0.0
        %2630 = vmatprep.subr.mxu0 0.0
        %2631 = vmatpush2.msra.mxu0 0.0
        %2632 = vmatprep.mubr.f32.mxu0 0.0
        %2633 = vmatmul.mubr.f32.gmra.mxu0 %v2563
        %v2634 = vpop.f32.mrf.mxu0
        %v2635 = vadd.f32 0.0, %v2634
        %v2636 = vpop.f32.mrf.mxu0
        %2637 = vmatprep.mubr.f32.mxu0 0.0
        %2638 = vmatmul.mubr.f32.gmra.mxu0 %v2566
        %v2639 = vpop.f32.mrf.mxu0
        %v2640 = vadd.f32 0.0, %v2639
        %v2641 = vpop.f32.mrf.mxu0
        %2642 = vdwg.mxu0
        %v2644 = vsel %vm1039, %v2635, 0
        %v2647 = vsel %vm1039, %v2640, 0
        %2649 = vmatprep.subr.mxu0 0.0
        %2650 = vmatpush1.msra.mxu0 0.0
        %2651 = vmatprep.subr.mxu0 0.0
        %2652 = vmatpush1.msra.mxu0 0.0
        %2653 = vmatprep.subr.mxu0 0.0
        %2654 = vmatpush1.msra.mxu0 0.0
        %2655 = vmatprep.subr.mxu0 0.0
        %2656 = vmatpush1.msra.mxu0 0.0
        %2657 = vmatprep.subr.mxu0 0.0
        %2658 = vmatpush1.msra.mxu0 0.0
        %2659 = vmatprep.subr.mxu0 0.0
        %2660 = vmatpush1.msra.mxu0 0.0
        %2661 = vmatprep.subr.mxu0 0.0
        %2662 = vmatpush1.msra.mxu0 0.0
        %2663 = vmatprep.subr.mxu0 0.0
        %2664 = vmatpush1.msra.mxu0 0.0
        %2665 = vmatprep.subr.mxu0 0.0
        %2666 = vmatpush1.msra.mxu0 0.0
        %2667 = vmatprep.subr.mxu0 0.0
        %2668 = vmatpush1.msra.mxu0 0.0
        %2669 = vmatprep.subr.mxu0 0.0
        %2670 = vmatpush1.msra.mxu0 0.0
        %2671 = vmatprep.subr.mxu0 0.0
        %2672 = vmatpush1.msra.mxu0 0.0
        %2673 = vmatprep.subr.mxu0 0.0
        %2674 = vmatpush1.msra.mxu0 0.0
        %2675 = vmatprep.subr.mxu0 0.0
        %2676 = vmatpush1.msra.mxu0 0.0
        %2677 = vmatprep.subr.mxu0 0.0
        %2678 = vmatpush1.msra.mxu0 %v1032
        %2679 = vmatprep.subr.mxu0 0.0
        %2680 = vmatpush1.msra.mxu0 %v1031
        %2681 = vmatprep.subr.mxu0 0.0
        %2682 = vmatpush2.msra.mxu0 0.0
        %2683 = vmatprep.subr.mxu0 0.0
        %2684 = vmatpush2.msra.mxu0 0.0
        %2685 = vmatprep.subr.mxu0 0.0
        %2686 = vmatpush2.msra.mxu0 0.0
        %2687 = vmatprep.subr.mxu0 0.0
        %2688 = vmatpush2.msra.mxu0 0.0
        %2689 = vmatprep.subr.mxu0 0.0
        %2690 = vmatpush2.msra.mxu0 0.0
        %2691 = vmatprep.subr.mxu0 0.0
        %2692 = vmatpush2.msra.mxu0 0.0
        %2693 = vmatprep.subr.mxu0 0.0
        %2694 = vmatpush2.msra.mxu0 0.0
        %2695 = vmatprep.subr.mxu0 0.0
        %2696 = vmatpush2.msra.mxu0 0.0
        %2697 = vmatprep.subr.mxu0 0.0
        %2698 = vmatpush2.msra.mxu0 0.0
        %2699 = vmatprep.subr.mxu0 0.0
        %2700 = vmatpush2.msra.mxu0 0.0
        %2701 = vmatprep.subr.mxu0 0.0
        %2702 = vmatpush2.msra.mxu0 0.0
        %2703 = vmatprep.subr.mxu0 0.0
        %2704 = vmatpush2.msra.mxu0 0.0
        %2705 = vmatprep.subr.mxu0 0.0
        %2706 = vmatpush2.msra.mxu0 0.0
        %2707 = vmatprep.subr.mxu0 0.0
        %2708 = vmatpush2.msra.mxu0 0.0
        %2709 = vmatprep.subr.mxu0 0.0
        %2710 = vmatpush2.msra.mxu0 0.0
        %2711 = vmatprep.subr.mxu0 0.0
        %2712 = vmatpush2.msra.mxu0 0.0
        %2713 = vmatprep.mubr.f32.mxu0 0.0
        %2714 = vmatmul.mubr.f32.gmra.mxu0 %v2644
        %v2715 = vpop.f32.mrf.mxu0
        %v2716 = vadd.f32 0.0, %v2715
        %v2717 = vpop.f32.mrf.mxu0
        %2718 = vmatprep.mubr.f32.mxu0 0.0
        %2719 = vmatmul.mubr.f32.gmra.mxu0 %v2647
        %v2720 = vpop.f32.mrf.mxu0
        %v2721 = vadd.f32 0.0, %v2720
        %v2722 = vpop.f32.mrf.mxu0
        %2723 = vdwg.mxu0
        %v2724 = vadd.f32 %v2441, %v2716
        %v2725 = vadd.f32 %v2442, %v2721
        %2726 = vrot.lane.b32.xlu0 %v1037, 32
        %v2727 = vpop.permute.xlu0 %2726
        %2728 = vrot.lane.b32.xlu0 %v1038, 32
        %v2729 = vpop.permute.xlu0 %2728
        %2730 = vrot.lane.b32.xlu0 %v915, 32
        %v2731 = vpop.permute.xlu0 %2730
        %2732 = vrot.lane.b32.xlu0 %v920, 32
        %v2733 = vpop.permute.xlu0 %2732
        %v2734 = vsel %vm1039, %v2727, 0
        %v2736 = vsel %vm1039, %v2729, 0
        %v2738 = vsel %vm1039, %v2731, 0
        %v2740 = vsel %vm1039, %v2733, 0
        %2742 = vmatprep.subr.mxu0 0.0
        %2743 = vmatpush1.xpose.msra.mxu0 0.0
        %2744 = vmatprep.subr.mxu0 0.0
        %2745 = vmatpush1.xpose.msra.mxu0 0.0
        %2746 = vmatprep.subr.mxu0 0.0
        %2747 = vmatpush1.xpose.msra.mxu0 0.0
        %2748 = vmatprep.subr.mxu0 0.0
        %2749 = vmatpush1.xpose.msra.mxu0 0.0
        %2750 = vmatprep.subr.mxu0 0.0
        %2751 = vmatpush1.xpose.msra.mxu0 0.0
        %2752 = vmatprep.subr.mxu0 0.0
        %2753 = vmatpush1.xpose.msra.mxu0 0.0
        %2754 = vmatprep.subr.mxu0 0.0
        %2755 = vmatpush1.xpose.msra.mxu0 0.0
        %2756 = vmatprep.subr.mxu0 0.0
        %2757 = vmatpush1.xpose.msra.mxu0 0.0
        %2758 = vmatprep.subr.mxu0 0.0
        %2759 = vmatpush1.xpose.msra.mxu0 0.0
        %2760 = vmatprep.subr.mxu0 0.0
        %2761 = vmatpush1.xpose.msra.mxu0 0.0
        %2762 = vmatprep.subr.mxu0 0.0
        %2763 = vmatpush1.xpose.msra.mxu0 0.0
        %2764 = vmatprep.subr.mxu0 0.0
        %2765 = vmatpush1.xpose.msra.mxu0 0.0
        %2766 = vmatprep.subr.mxu0 0.0
        %2767 = vmatpush1.xpose.msra.mxu0 0.0
        %2768 = vmatprep.subr.mxu0 0.0
        %2769 = vmatpush1.xpose.msra.mxu0 0.0
        %2770 = vmatprep.subr.mxu0 0.0
        %2771 = vmatpush1.xpose.msra.mxu0 %v2740
        %2772 = vmatprep.subr.mxu0 0.0
        %2773 = vmatpush1.xpose.msra.mxu0 %v2738
        %2774 = vmatprep.subr.mxu0 0.0
        %2775 = vmatpush2.xpose.msra.mxu0 0.0
        %2776 = vmatprep.subr.mxu0 0.0
        %2777 = vmatpush2.xpose.msra.mxu0 0.0
        %2778 = vmatprep.subr.mxu0 0.0
        %2779 = vmatpush2.xpose.msra.mxu0 0.0
        %2780 = vmatprep.subr.mxu0 0.0
        %2781 = vmatpush2.xpose.msra.mxu0 0.0
        %2782 = vmatprep.subr.mxu0 0.0
        %2783 = vmatpush2.xpose.msra.mxu0 0.0
        %2784 = vmatprep.subr.mxu0 0.0
        %2785 = vmatpush2.xpose.msra.mxu0 0.0
        %2786 = vmatprep.subr.mxu0 0.0
        %2787 = vmatpush2.xpose.msra.mxu0 0.0
        %2788 = vmatprep.subr.mxu0 0.0
        %2789 = vmatpush2.xpose.msra.mxu0 0.0
        %2790 = vmatprep.subr.mxu0 0.0
        %2791 = vmatpush2.xpose.msra.mxu0 0.0
        %2792 = vmatprep.subr.mxu0 0.0
        %2793 = vmatpush2.xpose.msra.mxu0 0.0
        %2794 = vmatprep.subr.mxu0 0.0
        %2795 = vmatpush2.xpose.msra.mxu0 0.0
        %2796 = vmatprep.subr.mxu0 0.0
        %2797 = vmatpush2.xpose.msra.mxu0 0.0
        %2798 = vmatprep.subr.mxu0 0.0
        %2799 = vmatpush2.xpose.msra.mxu0 0.0
        %2800 = vmatprep.subr.mxu0 0.0
        %2801 = vmatpush2.xpose.msra.mxu0 0.0
        %2802 = vmatprep.subr.mxu0 0.0
        %2803 = vmatpush2.xpose.msra.mxu0 0.0
        %2804 = vmatprep.subr.mxu0 0.0
        %2805 = vmatpush2.xpose.msra.mxu0 0.0
        %2806 = vmatprep.mubr.f32.mxu0 0.0
        %2807 = vmatmul.mubr.f32.gmra.mxu0 %v2734
        %v2808 = vpop.f32.mrf.mxu0
        %v2809 = vadd.f32 0.0, %v2808
        %v2810 = vpop.f32.mrf.mxu0
        %2811 = vmatprep.mubr.f32.mxu0 0.0
        %2812 = vmatmul.mubr.f32.gmra.mxu0 %v2736
        %v2813 = vpop.f32.mrf.mxu0
        %v2814 = vadd.f32 0.0, %v2813
        %v2815 = vpop.f32.mrf.mxu0
        %2816 = vdwg.mxu0
        %v2817 = vsel %vm1039, %v2809, -inf
        %2818 = vmax.xlane.f32.xlu0 %v2817
        %v2819 = vpop.xlane.xlu0 %2818
        %v2820 = vsel %vm1039, %v2814, -inf
        %2821 = vmax.xlane.f32.xlu0 %v2820
        %v2822 = vpop.xlane.xlu0 %2821
        %v2823 = vsub.f32 %v2809, %v2819
        %v2824 = vsub.f32 %v2814, %v2822
        %v2825 = vmul.f32 %v2823, 1.442695
        %v2826 = vpow.pop %v2825
        %v2827 = vmul.f32 %v2824, 1.442695
        %v2828 = vpow.pop %v2827
        %v2829 = vsel %vm1039, %v2826, 0.0
        %2830 = vadd.xlane.f32.xlu0 %v2829
        %v2831 = vpop.xlane.xlu0 %2830
        %v2832 = vsel %vm1039, %v2828, 0.0
        %2833 = vadd.xlane.f32.xlu0 %v2832
        %v2834 = vpop.xlane.xlu0 %2833
        %v2835 = vrcp.pop %v2831
        %v2836 = vmul.f32 %v2826, %v2835
        %v2837 = vrcp.pop %v2834
        %v2838 = vmul.f32 %v2828, %v2837
        %2839 = vrot.lane.b32.xlu0 %v1013, 32
        %v2840 = vpop.permute.xlu0 %2839
        %2841 = vrot.lane.b32.xlu0 %v1018, 32
        %v2842 = vpop.permute.xlu0 %2841
        %v2846 = vsel %vm1039, %v2836, 0
        %v2849 = vsel %vm1039, %v2838, 0
        %2851 = vmatprep.subr.mxu0 0.0
        %2852 = vmatpush1.msra.mxu0 0.0
        %2853 = vmatprep.subr.mxu0 0.0
        %2854 = vmatpush1.msra.mxu0 0.0
        %2855 = vmatprep.subr.mxu0 0.0
        %2856 = vmatpush1.msra.mxu0 0.0
        %2857 = vmatprep.subr.mxu0 0.0
        %2858 = vmatpush1.msra.mxu0 0.0
        %2859 = vmatprep.subr.mxu0 0.0
        %2860 = vmatpush1.msra.mxu0 0.0
        %2861 = vmatprep.subr.mxu0 0.0
        %2862 = vmatpush1.msra.mxu0 0.0
        %2863 = vmatprep.subr.mxu0 0.0
        %2864 = vmatpush1.msra.mxu0 0.0
        %2865 = vmatprep.subr.mxu0 0.0
        %2866 = vmatpush1.msra.mxu0 0.0
        %2867 = vmatprep.subr.mxu0 0.0
        %2868 = vmatpush1.msra.mxu0 0.0
        %2869 = vmatprep.subr.mxu0 0.0
        %2870 = vmatpush1.msra.mxu0 0.0
        %2871 = vmatprep.subr.mxu0 0.0
        %2872 = vmatpush1.msra.mxu0 0.0
        %2873 = vmatprep.subr.mxu0 0.0
        %2874 = vmatpush1.msra.mxu0 0.0
        %2875 = vmatprep.subr.mxu0 0.0
        %2876 = vmatpush1.msra.mxu0 0.0
        %2877 = vmatprep.subr.mxu0 0.0
        %2878 = vmatpush1.msra.mxu0 0.0
        %2879 = vmatprep.subr.mxu0 0.0
        %2880 = vmatpush1.msra.mxu0 %v2842
        %2881 = vmatprep.subr.mxu0 0.0
        %2882 = vmatpush1.msra.mxu0 %v2840
        %2883 = vmatprep.subr.mxu0 0.0
        %2884 = vmatpush2.msra.mxu0 0.0
        %2885 = vmatprep.subr.mxu0 0.0
        %2886 = vmatpush2.msra.mxu0 0.0
        %2887 = vmatprep.subr.mxu0 0.0
        %2888 = vmatpush2.msra.mxu0 0.0
        %2889 = vmatprep.subr.mxu0 0.0
        %2890 = vmatpush2.msra.mxu0 0.0
        %2891 = vmatprep.subr.mxu0 0.0
        %2892 = vmatpush2.msra.mxu0 0.0
        %2893 = vmatprep.subr.mxu0 0.0
        %2894 = vmatpush2.msra.mxu0 0.0
        %2895 = vmatprep.subr.mxu0 0.0
        %2896 = vmatpush2.msra.mxu0 0.0
        %2897 = vmatprep.subr.mxu0 0.0
        %2898 = vmatpush2.msra.mxu0 0.0
        %2899 = vmatprep.subr.mxu0 0.0
        %2900 = vmatpush2.msra.mxu0 0.0
        %2901 = vmatprep.subr.mxu0 0.0
        %2902 = vmatpush2.msra.mxu0 0.0
        %2903 = vmatprep.subr.mxu0 0.0
        %2904 = vmatpush2.msra.mxu0 0.0
        %2905 = vmatprep.subr.mxu0 0.0
        %2906 = vmatpush2.msra.mxu0 0.0
        %2907 = vmatprep.subr.mxu0 0.0
        %2908 = vmatpush2.msra.mxu0 0.0
        %2909 = vmatprep.subr.mxu0 0.0
        %2910 = vmatpush2.msra.mxu0 0.0
        %2911 = vmatprep.subr.mxu0 0.0
        %2912 = vmatpush2.msra.mxu0 0.0
        %2913 = vmatprep.subr.mxu0 0.0
        %2914 = vmatpush2.msra.mxu0 0.0
        %2915 = vmatprep.mubr.f32.mxu0 0.0
        %2916 = vmatmul.mubr.f32.gmra.mxu0 %v2846
        %v2917 = vpop.f32.mrf.mxu0
        %v2918 = vadd.f32 0.0, %v2917
        %v2919 = vpop.f32.mrf.mxu0
        %2920 = vmatprep.mubr.f32.mxu0 0.0
        %2921 = vmatmul.mubr.f32.gmra.mxu0 %v2849
        %v2922 = vpop.f32.mrf.mxu0
        %v2923 = vadd.f32 0.0, %v2922
        %v2924 = vpop.f32.mrf.mxu0
        %2925 = vdwg.mxu0
        %v2927 = vsel %vm1039, %v2918, 0
        %v2930 = vsel %vm1039, %v2923, 0
        %2932 = vmatprep.subr.mxu0 0.0
        %2933 = vmatpush1.msra.mxu0 0.0
        %2934 = vmatprep.subr.mxu0 0.0
        %2935 = vmatpush1.msra.mxu0 0.0
        %2936 = vmatprep.subr.mxu0 0.0
        %2937 = vmatpush1.msra.mxu0 0.0
        %2938 = vmatprep.subr.mxu0 0.0
        %2939 = vmatpush1.msra.mxu0 0.0
        %2940 = vmatprep.subr.mxu0 0.0
        %2941 = vmatpush1.msra.mxu0 0.0
        %2942 = vmatprep.subr.mxu0 0.0
        %2943 = vmatpush1.msra.mxu0 0.0
        %2944 = vmatprep.subr.mxu0 0.0
        %2945 = vmatpush1.msra.mxu0 0.0
        %2946 = vmatprep.subr.mxu0 0.0
        %2947 = vmatpush1.msra.mxu0 0.0
        %2948 = vmatprep.subr.mxu0 0.0
        %2949 = vmatpush1.msra.mxu0 0.0
        %2950 = vmatprep.subr.mxu0 0.0
        %2951 = vmatpush1.msra.mxu0 0.0
        %2952 = vmatprep.subr.mxu0 0.0
        %2953 = vmatpush1.msra.mxu0 0.0
        %2954 = vmatprep.subr.mxu0 0.0
        %2955 = vmatpush1.msra.mxu0 0.0
        %2956 = vmatprep.subr.mxu0 0.0
        %2957 = vmatpush1.msra.mxu0 0.0
        %2958 = vmatprep.subr.mxu0 0.0
        %2959 = vmatpush1.msra.mxu0 0.0
        %2960 = vmatprep.subr.mxu0 0.0
        %2961 = vmatpush1.msra.mxu0 %v1034
        %2962 = vmatprep.subr.mxu0 0.0
        %2963 = vmatpush1.msra.mxu0 %v1033
        %2964 = vmatprep.subr.mxu0 0.0
        %2965 = vmatpush2.msra.mxu0 0.0
        %2966 = vmatprep.subr.mxu0 0.0
        %2967 = vmatpush2.msra.mxu0 0.0
        %2968 = vmatprep.subr.mxu0 0.0
        %2969 = vmatpush2.msra.mxu0 0.0
        %2970 = vmatprep.subr.mxu0 0.0
        %2971 = vmatpush2.msra.mxu0 0.0
        %2972 = vmatprep.subr.mxu0 0.0
        %2973 = vmatpush2.msra.mxu0 0.0
        %2974 = vmatprep.subr.mxu0 0.0
        %2975 = vmatpush2.msra.mxu0 0.0
        %2976 = vmatprep.subr.mxu0 0.0
        %2977 = vmatpush2.msra.mxu0 0.0
        %2978 = vmatprep.subr.mxu0 0.0
        %2979 = vmatpush2.msra.mxu0 0.0
        %2980 = vmatprep.subr.mxu0 0.0
        %2981 = vmatpush2.msra.mxu0 0.0
        %2982 = vmatprep.subr.mxu0 0.0
        %2983 = vmatpush2.msra.mxu0 0.0
        %2984 = vmatprep.subr.mxu0 0.0
        %2985 = vmatpush2.msra.mxu0 0.0
        %2986 = vmatprep.subr.mxu0 0.0
        %2987 = vmatpush2.msra.mxu0 0.0
        %2988 = vmatprep.subr.mxu0 0.0
        %2989 = vmatpush2.msra.mxu0 0.0
        %2990 = vmatprep.subr.mxu0 0.0
        %2991 = vmatpush2.msra.mxu0 0.0
        %2992 = vmatprep.subr.mxu0 0.0
        %2993 = vmatpush2.msra.mxu0 0.0
        %2994 = vmatprep.subr.mxu0 0.0
        %2995 = vmatpush2.msra.mxu0 0.0
        %2996 = vmatprep.mubr.f32.mxu0 0.0
        %2997 = vmatmul.mubr.f32.gmra.mxu0 %v2927
        %v2998 = vpop.f32.mrf.mxu0
        %v2999 = vadd.f32 0.0, %v2998
        %v3000 = vpop.f32.mrf.mxu0
        %3001 = vmatprep.mubr.f32.mxu0 0.0
        %3002 = vmatmul.mubr.f32.gmra.mxu0 %v2930
        %v3003 = vpop.f32.mrf.mxu0
        %v3004 = vadd.f32 0.0, %v3003
        %v3005 = vpop.f32.mrf.mxu0
        %3006 = vdwg.mxu0
        %v3007 = vadd.f32 %v2724, %v2999
        %v3008 = vadd.f32 %v2725, %v3004
        %3009 = vrot.lane.b32.xlu0 %v1037, 16
        %v3010 = vpop.permute.xlu0 %3009
        %3011 = vrot.lane.b32.xlu0 %v1038, 16
        %v3012 = vpop.permute.xlu0 %3011
        %3013 = vrot.lane.b32.xlu0 %v915, 16
        %v3014 = vpop.permute.xlu0 %3013
        %3015 = vrot.lane.b32.xlu0 %v920, 16
        %v3016 = vpop.permute.xlu0 %3015
        %v3017 = vsel %vm1039, %v3010, 0
        %v3019 = vsel %vm1039, %v3012, 0
        %v3021 = vsel %vm1039, %v3014, 0
        %v3023 = vsel %vm1039, %v3016, 0
        %3025 = vmatprep.subr.mxu0 0.0
        %3026 = vmatpush1.xpose.msra.mxu0 0.0
        %3027 = vmatprep.subr.mxu0 0.0
        %3028 = vmatpush1.xpose.msra.mxu0 0.0
        %3029 = vmatprep.subr.mxu0 0.0
        %3030 = vmatpush1.xpose.msra.mxu0 0.0
        %3031 = vmatprep.subr.mxu0 0.0
        %3032 = vmatpush1.xpose.msra.mxu0 0.0
        %3033 = vmatprep.subr.mxu0 0.0
        %3034 = vmatpush1.xpose.msra.mxu0 0.0
        %3035 = vmatprep.subr.mxu0 0.0
        %3036 = vmatpush1.xpose.msra.mxu0 0.0
        %3037 = vmatprep.subr.mxu0 0.0
        %3038 = vmatpush1.xpose.msra.mxu0 0.0
        %3039 = vmatprep.subr.mxu0 0.0
        %3040 = vmatpush1.xpose.msra.mxu0 0.0
        %3041 = vmatprep.subr.mxu0 0.0
        %3042 = vmatpush1.xpose.msra.mxu0 0.0
        %3043 = vmatprep.subr.mxu0 0.0
        %3044 = vmatpush1.xpose.msra.mxu0 0.0
        %3045 = vmatprep.subr.mxu0 0.0
        %3046 = vmatpush1.xpose.msra.mxu0 0.0
        %3047 = vmatprep.subr.mxu0 0.0
        %3048 = vmatpush1.xpose.msra.mxu0 0.0
        %3049 = vmatprep.subr.mxu0 0.0
        %3050 = vmatpush1.xpose.msra.mxu0 0.0
        %3051 = vmatprep.subr.mxu0 0.0
        %3052 = vmatpush1.xpose.msra.mxu0 0.0
        %3053 = vmatprep.subr.mxu0 0.0
        %3054 = vmatpush1.xpose.msra.mxu0 %v3023
        %3055 = vmatprep.subr.mxu0 0.0
        %3056 = vmatpush1.xpose.msra.mxu0 %v3021
        %3057 = vmatprep.subr.mxu0 0.0
        %3058 = vmatpush2.xpose.msra.mxu0 0.0
        %3059 = vmatprep.subr.mxu0 0.0
        %3060 = vmatpush2.xpose.msra.mxu0 0.0
        %3061 = vmatprep.subr.mxu0 0.0
        %3062 = vmatpush2.xpose.msra.mxu0 0.0
        %3063 = vmatprep.subr.mxu0 0.0
        %3064 = vmatpush2.xpose.msra.mxu0 0.0
        %3065 = vmatprep.subr.mxu0 0.0
        %3066 = vmatpush2.xpose.msra.mxu0 0.0
        %3067 = vmatprep.subr.mxu0 0.0
        %3068 = vmatpush2.xpose.msra.mxu0 0.0
        %3069 = vmatprep.subr.mxu0 0.0
        %3070 = vmatpush2.xpose.msra.mxu0 0.0
        %3071 = vmatprep.subr.mxu0 0.0
        %3072 = vmatpush2.xpose.msra.mxu0 0.0
        %3073 = vmatprep.subr.mxu0 0.0
        %3074 = vmatpush2.xpose.msra.mxu0 0.0
        %3075 = vmatprep.subr.mxu0 0.0
        %3076 = vmatpush2.xpose.msra.mxu0 0.0
        %3077 = vmatprep.subr.mxu0 0.0
        %3078 = vmatpush2.xpose.msra.mxu0 0.0
        %3079 = vmatprep.subr.mxu0 0.0
        %3080 = vmatpush2.xpose.msra.mxu0 0.0
        %3081 = vmatprep.subr.mxu0 0.0
        %3082 = vmatpush2.xpose.msra.mxu0 0.0
        %3083 = vmatprep.subr.mxu0 0.0
        %3084 = vmatpush2.xpose.msra.mxu0 0.0
        %3085 = vmatprep.subr.mxu0 0.0
        %3086 = vmatpush2.xpose.msra.mxu0 0.0
        %3087 = vmatprep.subr.mxu0 0.0
        %3088 = vmatpush2.xpose.msra.mxu0 0.0
        %3089 = vmatprep.mubr.f32.mxu0 0.0
        %3090 = vmatmul.mubr.f32.gmra.mxu0 %v3017
        %v3091 = vpop.f32.mrf.mxu0
        %v3092 = vadd.f32 0.0, %v3091
        %v3093 = vpop.f32.mrf.mxu0
        %3094 = vmatprep.mubr.f32.mxu0 0.0
        %3095 = vmatmul.mubr.f32.gmra.mxu0 %v3019
        %v3096 = vpop.f32.mrf.mxu0
        %v3097 = vadd.f32 0.0, %v3096
        %v3098 = vpop.f32.mrf.mxu0
        %3099 = vdwg.mxu0
        %v3100 = vsel %vm1039, %v3092, -inf
        %3101 = vmax.xlane.f32.xlu0 %v3100
        %v3102 = vpop.xlane.xlu0 %3101
        %v3103 = vsel %vm1039, %v3097, -inf
        %3104 = vmax.xlane.f32.xlu0 %v3103
        %v3105 = vpop.xlane.xlu0 %3104
        %v3106 = vsub.f32 %v3092, %v3102
        %v3107 = vsub.f32 %v3097, %v3105
        %v3108 = vmul.f32 %v3106, 1.442695
        %v3109 = vpow.pop %v3108
        %v3110 = vmul.f32 %v3107, 1.442695
        %v3111 = vpow.pop %v3110
        %v3112 = vsel %vm1039, %v3109, 0.0
        %3113 = vadd.xlane.f32.xlu0 %v3112
        %v3114 = vpop.xlane.xlu0 %3113
        %v3115 = vsel %vm1039, %v3111, 0.0
        %3116 = vadd.xlane.f32.xlu0 %v3115
        %v3117 = vpop.xlane.xlu0 %3116
        %v3118 = vrcp.pop %v3114
        %v3119 = vmul.f32 %v3109, %v3118
        %v3120 = vrcp.pop %v3117
        %v3121 = vmul.f32 %v3111, %v3120
        %3122 = vrot.lane.b32.xlu0 %v1013, 16
        %v3123 = vpop.permute.xlu0 %3122
        %3124 = vrot.lane.b32.xlu0 %v1018, 16
        %v3125 = vpop.permute.xlu0 %3124
        %v3129 = vsel %vm1039, %v3119, 0
        %v3132 = vsel %vm1039, %v3121, 0
        %3134 = vmatprep.subr.mxu0 0.0
        %3135 = vmatpush1.msra.mxu0 0.0
        %3136 = vmatprep.subr.mxu0 0.0
        %3137 = vmatpush1.msra.mxu0 0.0
        %3138 = vmatprep.subr.mxu0 0.0
        %3139 = vmatpush1.msra.mxu0 0.0
        %3140 = vmatprep.subr.mxu0 0.0
        %3141 = vmatpush1.msra.mxu0 0.0
        %3142 = vmatprep.subr.mxu0 0.0
        %3143 = vmatpush1.msra.mxu0 0.0
        %3144 = vmatprep.subr.mxu0 0.0
        %3145 = vmatpush1.msra.mxu0 0.0
        %3146 = vmatprep.subr.mxu0 0.0
        %3147 = vmatpush1.msra.mxu0 0.0
        %3148 = vmatprep.subr.mxu0 0.0
        %3149 = vmatpush1.msra.mxu0 0.0
        %3150 = vmatprep.subr.mxu0 0.0
        %3151 = vmatpush1.msra.mxu0 0.0
        %3152 = vmatprep.subr.mxu0 0.0
        %3153 = vmatpush1.msra.mxu0 0.0
        %3154 = vmatprep.subr.mxu0 0.0
        %3155 = vmatpush1.msra.mxu0 0.0
        %3156 = vmatprep.subr.mxu0 0.0
        %3157 = vmatpush1.msra.mxu0 0.0
        %3158 = vmatprep.subr.mxu0 0.0
        %3159 = vmatpush1.msra.mxu0 0.0
        %3160 = vmatprep.subr.mxu0 0.0
        %3161 = vmatpush1.msra.mxu0 0.0
        %3162 = vmatprep.subr.mxu0 0.0
        %3163 = vmatpush1.msra.mxu0 %v3125
        %3164 = vmatprep.subr.mxu0 0.0
        %3165 = vmatpush1.msra.mxu0 %v3123
        %3166 = vmatprep.subr.mxu0 0.0
        %3167 = vmatpush2.msra.mxu0 0.0
        %3168 = vmatprep.subr.mxu0 0.0
        %3169 = vmatpush2.msra.mxu0 0.0
        %3170 = vmatprep.subr.mxu0 0.0
        %3171 = vmatpush2.msra.mxu0 0.0
        %3172 = vmatprep.subr.mxu0 0.0
        %3173 = vmatpush2.msra.mxu0 0.0
        %3174 = vmatprep.subr.mxu0 0.0
        %3175 = vmatpush2.msra.mxu0 0.0
        %3176 = vmatprep.subr.mxu0 0.0
        %3177 = vmatpush2.msra.mxu0 0.0
        %3178 = vmatprep.subr.mxu0 0.0
        %3179 = vmatpush2.msra.mxu0 0.0
        %3180 = vmatprep.subr.mxu0 0.0
        %3181 = vmatpush2.msra.mxu0 0.0
        %3182 = vmatprep.subr.mxu0 0.0
        %3183 = vmatpush2.msra.mxu0 0.0
        %3184 = vmatprep.subr.mxu0 0.0
        %3185 = vmatpush2.msra.mxu0 0.0
        %3186 = vmatprep.subr.mxu0 0.0
        %3187 = vmatpush2.msra.mxu0 0.0
        %3188 = vmatprep.subr.mxu0 0.0
        %3189 = vmatpush2.msra.mxu0 0.0
        %3190 = vmatprep.subr.mxu0 0.0
        %3191 = vmatpush2.msra.mxu0 0.0
        %3192 = vmatprep.subr.mxu0 0.0
        %3193 = vmatpush2.msra.mxu0 0.0
        %3194 = vmatprep.subr.mxu0 0.0
        %3195 = vmatpush2.msra.mxu0 0.0
        %3196 = vmatprep.subr.mxu0 0.0
        %3197 = vmatpush2.msra.mxu0 0.0
        %3198 = vmatprep.mubr.f32.mxu0 0.0
        %3199 = vmatmul.mubr.f32.gmra.mxu0 %v3129
        %v3200 = vpop.f32.mrf.mxu0
        %v3201 = vadd.f32 0.0, %v3200
        %v3202 = vpop.f32.mrf.mxu0
        %3203 = vmatprep.mubr.f32.mxu0 0.0
        %3204 = vmatmul.mubr.f32.gmra.mxu0 %v3132
        %v3205 = vpop.f32.mrf.mxu0
        %v3206 = vadd.f32 0.0, %v3205
        %v3207 = vpop.f32.mrf.mxu0
        %3208 = vdwg.mxu0
        %v3210 = vsel %vm1039, %v3201, 0
        %v3213 = vsel %vm1039, %v3206, 0
        %3215 = vmatprep.subr.mxu0 0.0
        %3216 = vmatpush1.msra.mxu0 0.0
        %3217 = vmatprep.subr.mxu0 0.0
        %3218 = vmatpush1.msra.mxu0 0.0
        %3219 = vmatprep.subr.mxu0 0.0
        %3220 = vmatpush1.msra.mxu0 0.0
        %3221 = vmatprep.subr.mxu0 0.0
        %3222 = vmatpush1.msra.mxu0 0.0
        %3223 = vmatprep.subr.mxu0 0.0
        %3224 = vmatpush1.msra.mxu0 0.0
        %3225 = vmatprep.subr.mxu0 0.0
        %3226 = vmatpush1.msra.mxu0 0.0
        %3227 = vmatprep.subr.mxu0 0.0
        %3228 = vmatpush1.msra.mxu0 0.0
        %3229 = vmatprep.subr.mxu0 0.0
        %3230 = vmatpush1.msra.mxu0 0.0
        %3231 = vmatprep.subr.mxu0 0.0
        %3232 = vmatpush1.msra.mxu0 0.0
        %3233 = vmatprep.subr.mxu0 0.0
        %3234 = vmatpush1.msra.mxu0 0.0
        %3235 = vmatprep.subr.mxu0 0.0
        %3236 = vmatpush1.msra.mxu0 0.0
        %3237 = vmatprep.subr.mxu0 0.0
        %3238 = vmatpush1.msra.mxu0 0.0
        %3239 = vmatprep.subr.mxu0 0.0
        %3240 = vmatpush1.msra.mxu0 0.0
        %3241 = vmatprep.subr.mxu0 0.0
        %3242 = vmatpush1.msra.mxu0 0.0
        %3243 = vmatprep.subr.mxu0 0.0
        %3244 = vmatpush1.msra.mxu0 %v1036
        %3245 = vmatprep.subr.mxu0 0.0
        %3246 = vmatpush1.msra.mxu0 %v1035
        %3247 = vmatprep.subr.mxu0 0.0
        %3248 = vmatpush2.msra.mxu0 0.0
        %3249 = vmatprep.subr.mxu0 0.0
        %3250 = vmatpush2.msra.mxu0 0.0
        %3251 = vmatprep.subr.mxu0 0.0
        %3252 = vmatpush2.msra.mxu0 0.0
        %3253 = vmatprep.subr.mxu0 0.0
        %3254 = vmatpush2.msra.mxu0 0.0
        %3255 = vmatprep.subr.mxu0 0.0
        %3256 = vmatpush2.msra.mxu0 0.0
        %3257 = vmatprep.subr.mxu0 0.0
        %3258 = vmatpush2.msra.mxu0 0.0
        %3259 = vmatprep.subr.mxu0 0.0
        %3260 = vmatpush2.msra.mxu0 0.0
        %3261 = vmatprep.subr.mxu0 0.0
        %3262 = vmatpush2.msra.mxu0 0.0
        %3263 = vmatprep.subr.mxu0 0.0
        %3264 = vmatpush2.msra.mxu0 0.0
        %3265 = vmatprep.subr.mxu0 0.0
        %3266 = vmatpush2.msra.mxu0 0.0
        %3267 = vmatprep.subr.mxu0 0.0
        %3268 = vmatpush2.msra.mxu0 0.0
        %3269 = vmatprep.subr.mxu0 0.0
        %3270 = vmatpush2.msra.mxu0 0.0
        %3271 = vmatprep.subr.mxu0 0.0
        %3272 = vmatpush2.msra.mxu0 0.0
        %3273 = vmatprep.subr.mxu0 0.0
        %3274 = vmatpush2.msra.mxu0 0.0
        %3275 = vmatprep.subr.mxu0 0.0
        %3276 = vmatpush2.msra.mxu0 0.0
        %3277 = vmatprep.subr.mxu0 0.0
        %3278 = vmatpush2.msra.mxu0 0.0
        %3279 = vmatprep.mubr.f32.mxu0 0.0
        %3280 = vmatmul.mubr.f32.gmra.mxu0 %v3210
        %v3281 = vpop.f32.mrf.mxu0
        %v3282 = vadd.f32 0.0, %v3281
        %v3283 = vpop.f32.mrf.mxu0
        %3284 = vmatprep.mubr.f32.mxu0 0.0
        %3285 = vmatmul.mubr.f32.gmra.mxu0 %v3213
        %v3286 = vpop.f32.mrf.mxu0
        %v3287 = vadd.f32 0.0, %v3286
        %v3288 = vpop.f32.mrf.mxu0
        %3289 = vdwg.mxu0
        %v3290 = vadd.f32 %v3007, %v3282
        %v3291 = vadd.f32 %v3008, %v3287
        %v3292 = vld [vmem:[%s9] sm:$0x1]
        %v3294 = vlaneseq
        %v3295 = vshrl.u32 %v3294, 7
        %v3296 = vsub.s32 0, %v3295
        %v3297 = vrot.slane %v3292, %v3296
        %v3299 = vadd.f32 %v3290, %v3297
        %v3300 = vadd.f32 %v3291, %v3297
        %v3301 = vadd.f32 %v721, %v3299
        %v3302 = vadd.f32 %v722, %v3300
        %3303 = vadd.xlane.f32.xlu0 %v3301
        %v3304 = vpop.xlane.xlu0 %3303
        %3305 = vadd.xlane.f32.xlu0 %v3302
        %v3306 = vpop.xlane.xlu0 %3305
        %v3307 = vrcp.pop 128.0
        %v3308 = vmul.f32 %v3304, %v3307
        %v3309 = vmul.f32 %v3306, %v3307
        %v3310 = vsub.f32 %v3301, %v3308
        %v3311 = vsub.f32 %v3302, %v3309
        %v3312 = vmul.f32 %v3310, %v3310
        %v3313 = vmul.f32 %v3311, %v3311
        %3314 = vadd.xlane.f32.xlu0 %v3312
        %v3315 = vpop.xlane.xlu0 %3314
        %3316 = vadd.xlane.f32.xlu0 %v3313
        %v3317 = vpop.xlane.xlu0 %3316
        %v3318 = vmul.f32 %v3315, %v3307
        %v3319 = vmul.f32 %v3317, %v3307
        %v3320 = vadd.f32 %v3318, 1e-05
        %v3321 = vadd.f32 %v3319, 1e-05
        %v3322 = vrsqrt.pop %v3320
        %v3323 = vrsqrt.pop %v3321
        %v3324 = vmul.f32 %v3310, %v3322
        %v3325 = vmul.f32 %v3311, %v3323
        %v3326 = vld [vmem:[%s10] sm:$0x1]
        %v3328 = vlaneseq
        %v3329 = vshrl.u32 %v3328, 7
        %v3330 = vsub.s32 0, %v3329
        %v3331 = vrot.slane %v3326, %v3330
        %v3333 = vmul.f32 %v3324, %v3331
        %v3334 = vmul.f32 %v3325, %v3331
        %v3335 = vld [vmem:[%s11] sm:$0x1]
        %v3337 = vlaneseq
        %v3338 = vshrl.u32 %v3337, 7
        %v3339 = vsub.s32 0, %v3338
        %v3340 = vrot.slane %v3335, %v3339
        %v3342 = vadd.f32 %v3333, %v3340
        %v3343 = vadd.f32 %v3334, %v3340
        %v3344 = vld [vmem:[#allocation13] sm:$0xff]
        %v3345 = vld [vmem:[#allocation13 + $0x8] sm:$0xff]
        %v3346 = vld [vmem:[#allocation13 + $0x10] sm:$0xff]
        %v3347 = vld [vmem:[#allocation13 + $0x18] sm:$0xff]
        %v3348 = vld [vmem:[#allocation13 + $0x20] sm:$0xff]
        %v3349 = vld [vmem:[#allocation13 + $0x28] sm:$0xff]
        %v3350 = vld [vmem:[#allocation13 + $0x30] sm:$0xff]
        %v3351 = vld [vmem:[#allocation13 + $0x38] sm:$0xff]
        %v3352 = vld [vmem:[#allocation13 + $0x40] sm:$0xff]
        %v3353 = vld [vmem:[#allocation13 + $0x48] sm:$0xff]
        %v3354 = vld [vmem:[#allocation13 + $0x50] sm:$0xff]
        %v3355 = vld [vmem:[#allocation13 + $0x58] sm:$0xff]
        %v3356 = vld [vmem:[#allocation13 + $0x60] sm:$0xff]
        %v3357 = vld [vmem:[#allocation13 + $0x68] sm:$0xff]
        %v3358 = vld [vmem:[#allocation13 + $0x70] sm:$0xff]
        %v3359 = vld [vmem:[#allocation13 + $0x78] sm:$0xff]
        %v3360 = vld [vmem:[#allocation13 + $0x80] sm:$0xff]
        %v3361 = vld [vmem:[#allocation13 + $0x88] sm:$0xff]
        %v3362 = vld [vmem:[#allocation13 + $0x90] sm:$0xff]
        %v3363 = vld [vmem:[#allocation13 + $0x98] sm:$0xff]
        %v3364 = vld [vmem:[#allocation13 + $0xa0] sm:$0xff]
        %v3365 = vld [vmem:[#allocation13 + $0xa8] sm:$0xff]
        %v3366 = vld [vmem:[#allocation13 + $0xb0] sm:$0xff]
        %v3367 = vld [vmem:[#allocation13 + $0xb8] sm:$0xff]
        %v3368 = vld [vmem:[#allocation13 + $0xc0] sm:$0xff]
        %v3369 = vld [vmem:[#allocation13 + $0xc8] sm:$0xff]
        %v3370 = vld [vmem:[#allocation13 + $0xd0] sm:$0xff]
        %v3371 = vld [vmem:[#allocation13 + $0xd8] sm:$0xff]
        %v3372 = vld [vmem:[#allocation13 + $0xe0] sm:$0xff]
        %v3373 = vld [vmem:[#allocation13 + $0xe8] sm:$0xff]
        %v3374 = vld [vmem:[#allocation13 + $0xf0] sm:$0xff]
        %v3375 = vld [vmem:[#allocation13 + $0xf8] sm:$0xff]
        %v3376 = vld [vmem:[%s13] sm:$0x3]
        %v3378 = vlaneseq
        %v3379 = vshrl.u32 %v3378, 7
        %v3380 = vsub.s32 0, %v3379
        %v3381 = vrot.slane %v3376, %v3380
        %v3382 = vlaneseq
        %v3383 = vshrl.u32 %v3382, 7
        %v3384 = vsub.s32 1, %v3383
        %v3385 = vrot.slane %v3376, %v3384
        %3388 = vmatprep.subr.mxu0 %v3375
        %3389 = vmatpush1.msra.mxu0 %v3374
        %3390 = vmatprep.subr.mxu0 %v3373
        %3391 = vmatpush1.msra.mxu0 %v3372
        %3392 = vmatprep.subr.mxu0 %v3371
        %3393 = vmatpush1.msra.mxu0 %v3370
        %3394 = vmatprep.subr.mxu0 %v3369
        %3395 = vmatpush1.msra.mxu0 %v3368
        %3396 = vmatprep.subr.mxu0 %v3367
        %3397 = vmatpush1.msra.mxu0 %v3366
        %3398 = vmatprep.subr.mxu0 %v3365
        %3399 = vmatpush1.msra.mxu0 %v3364
        %3400 = vmatprep.subr.mxu0 %v3363
        %3401 = vmatpush1.msra.mxu0 %v3362
        %3402 = vmatprep.subr.mxu0 %v3361
        %3403 = vmatpush1.msra.mxu0 %v3360
        %3404 = vmatprep.subr.mxu0 %v3359
        %3405 = vmatpush1.msra.mxu0 %v3358
        %3406 = vmatprep.subr.mxu0 %v3357
        %3407 = vmatpush1.msra.mxu0 %v3356
        %3408 = vmatprep.subr.mxu0 %v3355
        %3409 = vmatpush1.msra.mxu0 %v3354
        %3410 = vmatprep.subr.mxu0 %v3353
        %3411 = vmatpush1.msra.mxu0 %v3352
        %3412 = vmatprep.subr.mxu0 %v3351
        %3413 = vmatpush1.msra.mxu0 %v3350
        %3414 = vmatprep.subr.mxu0 %v3349
        %3415 = vmatpush1.msra.mxu0 %v3348
        %3416 = vmatprep.subr.mxu0 %v3347
        %3417 = vmatpush1.msra.mxu0 %v3346
        %3418 = vmatprep.subr.mxu0 %v3345
        %3419 = vmatpush1.msra.mxu0 %v3344
        %3420 = vmatprep.subr.mxu0 0.0
        %3421 = vmatpush2.msra.mxu0 0.0
        %3422 = vmatprep.subr.mxu0 0.0
        %3423 = vmatpush2.msra.mxu0 0.0
        %3424 = vmatprep.subr.mxu0 0.0
        %3425 = vmatpush2.msra.mxu0 0.0
        %3426 = vmatprep.subr.mxu0 0.0
        %3427 = vmatpush2.msra.mxu0 0.0
        %3428 = vmatprep.subr.mxu0 0.0
        %3429 = vmatpush2.msra.mxu0 0.0
        %3430 = vmatprep.subr.mxu0 0.0
        %3431 = vmatpush2.msra.mxu0 0.0
        %3432 = vmatprep.subr.mxu0 0.0
        %3433 = vmatpush2.msra.mxu0 0.0
        %3434 = vmatprep.subr.mxu0 0.0
        %3435 = vmatpush2.msra.mxu0 0.0
        %3436 = vmatprep.subr.mxu0 0.0
        %3437 = vmatpush2.msra.mxu0 0.0
        %3438 = vmatprep.subr.mxu0 0.0
        %3439 = vmatpush2.msra.mxu0 0.0
        %3440 = vmatprep.subr.mxu0 0.0
        %3441 = vmatpush2.msra.mxu0 0.0
        %3442 = vmatprep.subr.mxu0 0.0
        %3443 = vmatpush2.msra.mxu0 0.0
        %3444 = vmatprep.subr.mxu0 0.0
        %3445 = vmatpush2.msra.mxu0 0.0
        %3446 = vmatprep.subr.mxu0 0.0
        %3447 = vmatpush2.msra.mxu0 0.0
        %3448 = vmatprep.subr.mxu0 0.0
        %3449 = vmatpush2.msra.mxu0 0.0
        %3450 = vmatprep.subr.mxu0 0.0
        %3451 = vmatpush2.msra.mxu0 0.0
        %3452 = vmatprep.mubr.f32.mxu0 0.0
        %3453 = vmatmul.mubr.f32.gmra.mxu0 %v3342
        %v3454 = vpop.f32.mrf.mxu0
        %v3455 = vadd.f32 %v3381, %v3454
        %v3456 = vpop.f32.mrf.mxu0
        %v3457 = vadd.f32 %v3385, %v3456
        %3458 = vmatprep.mubr.f32.mxu0 0.0
        %3459 = vmatmul.mubr.f32.gmra.mxu0 %v3343
        %v3460 = vpop.f32.mrf.mxu0
        %v3461 = vadd.f32 %v3381, %v3460
        %v3462 = vpop.f32.mrf.mxu0
        %v3463 = vadd.f32 %v3385, %v3462
        %3464 = vdwg.mxu0
        %v3465 = vmax.f32 %v3455, 0.0
        %v3466 = vmax.f32 %v3457, 0.0
        %v3467 = vmax.f32 %v3461, 0.0
        %v3468 = vmax.f32 %v3463, 0.0
        %v3469 = vld [vmem:[#allocation14] sm:$0xff]
        %v3470 = vld [vmem:[#allocation14 + $0x8] sm:$0xff]
        %v3471 = vld [vmem:[#allocation14 + $0x10] sm:$0xff]
        %v3472 = vld [vmem:[#allocation14 + $0x18] sm:$0xff]
        %v3473 = vld [vmem:[#allocation14 + $0x20] sm:$0xff]
        %v3474 = vld [vmem:[#allocation14 + $0x28] sm:$0xff]
        %v3475 = vld [vmem:[#allocation14 + $0x30] sm:$0xff]
        %v3476 = vld [vmem:[#allocation14 + $0x38] sm:$0xff]
        %v3477 = vld [vmem:[#allocation14 + $0x40] sm:$0xff]
        %v3478 = vld [vmem:[#allocation14 + $0x48] sm:$0xff]
        %v3479 = vld [vmem:[#allocation14 + $0x50] sm:$0xff]
        %v3480 = vld [vmem:[#allocation14 + $0x58] sm:$0xff]
        %v3481 = vld [vmem:[#allocation14 + $0x60] sm:$0xff]
        %v3482 = vld [vmem:[#allocation14 + $0x68] sm:$0xff]
        %v3483 = vld [vmem:[#allocation14 + $0x70] sm:$0xff]
        %v3484 = vld [vmem:[#allocation14 + $0x78] sm:$0xff]
        %v3485 = vld [vmem:[#allocation14 + $0x80] sm:$0xff]
        %v3486 = vld [vmem:[#allocation14 + $0x88] sm:$0xff]
        %v3487 = vld [vmem:[#allocation14 + $0x90] sm:$0xff]
        %v3488 = vld [vmem:[#allocation14 + $0x98] sm:$0xff]
        %v3489 = vld [vmem:[#allocation14 + $0xa0] sm:$0xff]
        %v3490 = vld [vmem:[#allocation14 + $0xa8] sm:$0xff]
        %v3491 = vld [vmem:[#allocation14 + $0xb0] sm:$0xff]
        %v3492 = vld [vmem:[#allocation14 + $0xb8] sm:$0xff]
        %v3493 = vld [vmem:[#allocation14 + $0xc0] sm:$0xff]
        %v3494 = vld [vmem:[#allocation14 + $0xc8] sm:$0xff]
        %v3495 = vld [vmem:[#allocation14 + $0xd0] sm:$0xff]
        %v3496 = vld [vmem:[#allocation14 + $0xd8] sm:$0xff]
        %v3497 = vld [vmem:[#allocation14 + $0xe0] sm:$0xff]
        %v3498 = vld [vmem:[#allocation14 + $0xe8] sm:$0xff]
        %v3499 = vld [vmem:[#allocation14 + $0xf0] sm:$0xff]
        %v3500 = vld [vmem:[#allocation14 + $0xf8] sm:$0xff]
        %v3501 = vld [vmem:[%s15] sm:$0x1]
        %v3503 = vlaneseq
        %v3504 = vshrl.u32 %v3503, 7
        %v3505 = vsub.s32 0, %v3504
        %v3506 = vrot.slane %v3501, %v3505
        %3508 = vmatprep.subr.mxu0 0.0
        %3509 = vmatpush1.msra.mxu0 %v3484
        %3510 = vmatprep.subr.mxu0 0.0
        %3511 = vmatpush1.msra.mxu0 %v3483
        %3512 = vmatprep.subr.mxu0 0.0
        %3513 = vmatpush1.msra.mxu0 %v3482
        %3514 = vmatprep.subr.mxu0 0.0
        %3515 = vmatpush1.msra.mxu0 %v3481
        %3516 = vmatprep.subr.mxu0 0.0
        %3517 = vmatpush1.msra.mxu0 %v3480
        %3518 = vmatprep.subr.mxu0 0.0
        %3519 = vmatpush1.msra.mxu0 %v3479
        %3520 = vmatprep.subr.mxu0 0.0
        %3521 = vmatpush1.msra.mxu0 %v3478
        %3522 = vmatprep.subr.mxu0 0.0
        %3523 = vmatpush1.msra.mxu0 %v3477
        %3524 = vmatprep.subr.mxu0 0.0
        %3525 = vmatpush1.msra.mxu0 %v3476
        %3526 = vmatprep.subr.mxu0 0.0
        %3527 = vmatpush1.msra.mxu0 %v3475
        %3528 = vmatprep.subr.mxu0 0.0
        %3529 = vmatpush1.msra.mxu0 %v3474
        %3530 = vmatprep.subr.mxu0 0.0
        %3531 = vmatpush1.msra.mxu0 %v3473
        %3532 = vmatprep.subr.mxu0 0.0
        %3533 = vmatpush1.msra.mxu0 %v3472
        %3534 = vmatprep.subr.mxu0 0.0
        %3535 = vmatpush1.msra.mxu0 %v3471
        %3536 = vmatprep.subr.mxu0 0.0
        %3537 = vmatpush1.msra.mxu0 %v3470
        %3538 = vmatprep.subr.mxu0 0.0
        %3539 = vmatpush1.msra.mxu0 %v3469
        %3540 = vmatprep.subr.mxu0 0.0
        %3541 = vmatpush2.msra.mxu0 %v3500
        %3542 = vmatprep.subr.mxu0 0.0
        %3543 = vmatpush2.msra.mxu0 %v3499
        %3544 = vmatprep.subr.mxu0 0.0
        %3545 = vmatpush2.msra.mxu0 %v3498
        %3546 = vmatprep.subr.mxu0 0.0
        %3547 = vmatpush2.msra.mxu0 %v3497
        %3548 = vmatprep.subr.mxu0 0.0
        %3549 = vmatpush2.msra.mxu0 %v3496
        %3550 = vmatprep.subr.mxu0 0.0
        %3551 = vmatpush2.msra.mxu0 %v3495
        %3552 = vmatprep.subr.mxu0 0.0
        %3553 = vmatpush2.msra.mxu0 %v3494
        %3554 = vmatprep.subr.mxu0 0.0
        %3555 = vmatpush2.msra.mxu0 %v3493
        %3556 = vmatprep.subr.mxu0 0.0
        %3557 = vmatpush2.msra.mxu0 %v3492
        %3558 = vmatprep.subr.mxu0 0.0
        %3559 = vmatpush2.msra.mxu0 %v3491
        %3560 = vmatprep.subr.mxu0 0.0
        %3561 = vmatpush2.msra.mxu0 %v3490
        %3562 = vmatprep.subr.mxu0 0.0
        %3563 = vmatpush2.msra.mxu0 %v3489
        %3564 = vmatprep.subr.mxu0 0.0
        %3565 = vmatpush2.msra.mxu0 %v3488
        %3566 = vmatprep.subr.mxu0 0.0
        %3567 = vmatpush2.msra.mxu0 %v3487
        %3568 = vmatprep.subr.mxu0 0.0
        %3569 = vmatpush2.msra.mxu0 %v3486
        %3570 = vmatprep.subr.mxu0 0.0
        %3571 = vmatpush2.msra.mxu0 %v3485
        %3572 = vmatprep.mubr.f32.mxu0 %v3466
        %3573 = vmatmul.mubr.f32.gmra.mxu0 %v3465
        %v3574 = vpop.f32.mrf.mxu0
        %v3575 = vadd.f32 %v3506, %v3574
        %v3576 = vpop.f32.mrf.mxu0
        %3577 = vmatprep.mubr.f32.mxu0 %v3468
        %3578 = vmatmul.mubr.f32.gmra.mxu0 %v3467
        %v3579 = vpop.f32.mrf.mxu0
        %v3580 = vadd.f32 %v3506, %v3579
        %v3581 = vpop.f32.mrf.mxu0
        %3582 = vdwg.mxu0
        %v3583 = vadd.f32 %v3342, %v3575
        %v3584 = vadd.f32 %v3343, %v3580
        %3585 = vadd.xlane.f32.xlu0 %v3583
        %v3586 = vpop.xlane.xlu0 %3585
        %3587 = vadd.xlane.f32.xlu0 %v3584
        %v3588 = vpop.xlane.xlu0 %3587
        %v3589 = vmul.f32 %v3586, %v3307
        %v3590 = vmul.f32 %v3588, %v3307
        %v3591 = vsub.f32 %v3583, %v3589
        %v3592 = vsub.f32 %v3584, %v3590
        %v3593 = vmul.f32 %v3591, %v3591
        %v3594 = vmul.f32 %v3592, %v3592
        %3595 = vadd.xlane.f32.xlu0 %v3593
        %v3596 = vpop.xlane.xlu0 %3595
        %3597 = vadd.xlane.f32.xlu0 %v3594
        %v3598 = vpop.xlane.xlu0 %3597
        %v3599 = vmul.f32 %v3596, %v3307
        %v3600 = vmul.f32 %v3598, %v3307
        %v3601 = vadd.f32 %v3599, 1e-05
        %v3602 = vadd.f32 %v3600, 1e-05
        %v3603 = vrsqrt.pop %v3601
        %v3604 = vrsqrt.pop %v3602
        %v3605 = vmul.f32 %v3591, %v3603
        %v3606 = vmul.f32 %v3592, %v3604
        %v3607 = vld [vmem:[%s16] sm:$0x1]
        %v3609 = vlaneseq
        %v3610 = vshrl.u32 %v3609, 7
        %v3611 = vsub.s32 0, %v3610
        %v3612 = vrot.slane %v3607, %v3611
        %v3614 = vmul.f32 %v3605, %v3612
        %v3615 = vmul.f32 %v3606, %v3612
        %v3616 = vld [vmem:[%s17] sm:$0x1]
        %v3618 = vlaneseq
        %v3619 = vshrl.u32 %v3618, 7
        %v3620 = vsub.s32 0, %v3619
        %v3621 = vrot.slane %v3616, %v3620
        %v3623 = vadd.f32 %v3614, %v3621
        %v3624 = vadd.f32 %v3615, %v3621
        %3625 = vst [vmem:[%s720] sm:$0xff] %v3623
        %3626 = vst [vmem:[%s720 + $0x8] sm:$0xff] %v3624
        %s3627 = sand.u32 %s437, 1
        %s3628 = scalar_lea.sflag [#allocation4], %s3627
        %s3629 = sand.u32 %s437, 1
        %s3630 = smul.addr %s3629, 16
        %s3631 = scalar_lea.vmem [#allocation16], %s3630
        // Predicated region
        $region125: #{tpu_custom_call.1} parent=91 // pred_check
          %p3632 = pneg %p447
        $region126: #{tpu_custom_call.1} parent=91 // pred_check_branch
          %3634 = sbr.rel (%p3632) target = $region128
        $region127: #{tpu_custom_call.1} parent=91 // pred_region
          %s3636 = ssub.s32 256, 256
          %3637 = vsyncadd %s3628, %s3636
          %s3638 = smul.addr %s41, 2
          %s3639 = smul.addr %s3638, 128
          %s3640 = scalar_lea.hbm %s18, %s3639
          %s3641 = sshll.u32 %s3631, 4
          %s3642 = int_to_ptr.vmem [resolvable:$true] %s3641
          %3647 = dma.vmem_to_hbm [thread:$0]  %s3642, 256, %s3640, %s3628, 128, 128, 8
        $region128: #{tpu_custom_call.1} parent=91 // pred_fallthru
          _
      $region92: #{tpu_custom_call.1} parent=5 // pred_fallthru
        _
      %p3648 = scmp.le.s32.totalorder 2, %s36
      // Predicated region
      $region129: #{tpu_custom_call.1} parent=5 // pred_check
        %p3649 = pneg %p3648
      $region130: #{tpu_custom_call.1} parent=5 // pred_check_branch
        %3651 = sbr.rel (%p3649) target = $region132
      $region131: #{tpu_custom_call.1} parent=5 // pred_region
        %s3652 = ssub.s32 %s36, 2
        // Predicated region
        $region133: #{tpu_custom_call.1} parent=131 // pred_check
          %p3653 = pneg %p453
        $region134: #{tpu_custom_call.1} parent=131 // pred_check_branch
          %3655 = sbr.rel (%p3653) target = $region136
        $region135: #{tpu_custom_call.1} parent=131 // pred_region
          %s3656 = sand.u32 %s438, 1
          %s3657 = scalar_lea.sflag [#allocation4], %s3656
          %s3658 = sand.u32 %s438, 1
          %s3659 = smul.addr %s3658, 16
          %s3660 = scalar_lea.vmem [#allocation16], %s3659
          %3661 = dma.done %s3657, 256
        $region136: #{tpu_custom_call.1} parent=131 // pred_fallthru
          _
      $region132: #{tpu_custom_call.1} parent=5 // pred_fallthru
        _
    $region6: #{tpu_custom_call.1} parent=1 // loop_footer
      %s40 = sadd.s32 1, %s36
    $region7: #{tpu_custom_call.1} parent=1 // loop_footer_branch
      %35 = sbr.rel target = $region3
    $region8: #{tpu_custom_call.1} parent=1 // loop_exit
      _
    %3662 = vsyncpa [#allocation3], 1
    %s3663 = scalar_lea.sflag [#allocation3], 1
    %3664 = vsyncpa %s3663, 1
    %3665 = vsyncpa [#allocation6], 1
    %s3666 = scalar_lea.sflag [#allocation6], 1
    %3667 = vsyncpa %s3666, 1
    %3668 = vsyncpa [#allocation9], 1
    %3669 = vsyncpa [#allocation12], 1
    %3670 = vsyncpa [#allocation15], 1
    %3671 = vsyncpa [#allocation4], 1
    %s3672 = scalar_lea.sflag [#allocation4], 1
    %3673 = vsyncpa %s3672, 1

</llo_original>
